<compile_context>
chip_gen: v7x
topology: tpu7x:2x2x1
jax: 0.10.0
libtpu: 0.0.40
codegen_flags: <defaults>
</compile_context>

<pallas_src>
import functools

import numpy as np
import jax
import jax.numpy as jnp
from jax.experimental import pallas as pl
from jax.experimental.pallas import tpu as pltpu


def _silu(y):
    return y * (1.0 / (1.0 + jnp.exp(-y)))


# ----------------------------------------------------------------------------
# Fused GhostBottleneck kernel: one grid step per image, channel-major (C, H*W)
# ----------------------------------------------------------------------------
def _ghost_bottleneck_kernel(x_ref,
                             w1_ref, s1_ref, b1_ref, dw1_ref, sd1_ref, bd1_ref,
                             w2a_ref, w2b_ref, s2_ref, b2_ref, dw2_ref, sd2_ref, bd2_ref,
                             o_ref,
                             pad1_ref, pad2_ref, *, H, W, Z):
    L = H * W                      # spatial pixels per image (lane axis)
    Lw = L + 4 * W                 # union of the 5 dy-shifted windows for one dx
    S0 = Z - (2 * W + 2)           # window start so that pad[Z + p] == feature[p]
    c_half = s2_ref.shape[0]

    x = x_ref[0]                                   # (C, L) f32, channel-major
    xb = x.astype(jnp.bfloat16)

    # Horizontal edge masks, one per dx tap offset (shape (1, Lw)), generated in-kernel.
    wpos = jax.lax.broadcasted_iota(jnp.int32, (1, Lw), 1) % W
    wmaskf = [((wpos + (dx - 2) >= 0) & (wpos + (dx - 2) < W)).astype(jnp.float32)
              for dx in range(5)]

    def dwconv5x5(y, dw_ref, pad_ref):
        """5x5 depthwise conv (pad=2) on a (Cd, H*W) channel-major feature."""
        cd, sl = pad_ref.shape
        # Zero bands cover the vertical halo (rows h < 0 and h >= H) -> no h masks.
        pad_ref[:, :Z] = jnp.zeros((cd, Z), jnp.float32)
        pad_ref[:, Z + L:] = jnp.zeros((cd, sl - Z - L), jnp.float32)
        pad_ref[:, Z:Z + L] = y                    # lane-aligned interior store (Z % 128 == 0)
        acc = jnp.zeros((cd, L), jnp.float32)
        for dx in range(5):
            wide = pad_ref[:, S0 + dx:S0 + dx + Lw]        # (cd, Lw) shifted window
            if dx != 2:
                wide = wide * wmaskf[dx]                   # w-edge mask, hoisted out of dy loop
            for dy in range(5):
                t = dy * 5 + dx
                tap = dw_ref[:, t:t + 1]                   # (cd, 1) per-channel tap weight
                acc = acc + wide[:, dy * W:dy * W + L] * tap
        return acc

    # ---- GhostConv #1, cv1: 1x1 conv (C -> C/4) + BN + SiLU  (MXU, bf16 -> f32) ----
    y1 = jnp.dot(w1_ref[...], xb, preferred_element_type=jnp.float32)       # (q, L)
    y1 = _silu(y1 * s1_ref[...] + b1_ref[...])

    # ---- GhostConv #1, cv2: 5x5 depthwise (C/4) + BN + SiLU ("ghost" half) ----
    z1 = _silu(dwconv5x5(y1, dw1_ref, pad1_ref) * sd1_ref[...] + bd1_ref[...])

    # ---- GhostConv #2, cv1: 1x1 conv (C/2 -> C/2) + BN, no act.
    #      W2 @ cat([y1, z1]) == W2[:, :q] @ y1 + W2[:, q:] @ z1  (split-K, no concat) ----
    y2 = (jnp.dot(w2a_ref[...], y1.astype(jnp.bfloat16), preferred_element_type=jnp.float32)
          + jnp.dot(w2b_ref[...], z1.astype(jnp.bfloat16), preferred_element_type=jnp.float32))
    y2 = y2 * s2_ref[...] + b2_ref[...]                                      # (C/2, L)

    # ---- GhostConv #2, cv2: 5x5 depthwise (C/2) + BN, no act ----
    z2 = dwconv5x5(y2, dw2_ref, pad2_ref) * sd2_ref[...] + bd2_ref[...]

    # ---- channel "concat" + identity shortcut, written as two direct half-stores ----
    o_ref[0, 0:c_half, :] = y2 + x[0:c_half, :]
    o_ref[0, c_half:, :] = z2 + x[c_half:, :]


@jax.jit
def ghost_bottleneck_forward(x_nchw, P):
    """GhostBottleneck(c, c, k=3, s=1) forward. x_nchw: (N, C, H, W) -> (N, C, H, W)."""
    N, C, H, W = x_nchw.shape
    L = H * W
    q = P['w1'].shape[0]                              # C // 4
    c_half = P['s2'].shape[0]                         # C // 2
    Z = ((2 * W + 2 + 127) // 128) * 128              # lane-aligned zero band (>= 2W + 2)
    SL = ((Z + L + 2 * W + 2 + 127) // 128) * 128     # scratch lanes, multiple of 128

    # NCHW -> (N, C, H*W): channel-major is the native layout, so this reshape is free
    # (no transpose, no extra HBM pass).  Same for the output reshape below.
    x3 = x_nchw.reshape(N, C, L).astype(jnp.float32)

    weights = (P['w1'].astype(jnp.bfloat16), P['s1'], P['b1'],
               P['dw1'], P['sd1'], P['bd1'],
               P['w2a'].astype(jnp.bfloat16), P['w2b'].astype(jnp.bfloat16),
               P['s2'], P['b2'],
               P['dw2'], P['sd2'], P['bd2'])

    out = pl.pallas_call(
        functools.partial(_ghost_bottleneck_kernel, H=H, W=W, Z=Z),
        out_shape=jax.ShapeDtypeStruct((N, C, L), jnp.float32),
        grid=(N,),
        in_specs=[pl.BlockSpec((1, C, L), lambda n: (n, 0, 0))]
                 + [pl.BlockSpec(w.shape, lambda n: (0, 0)) for w in weights],
        out_specs=pl.BlockSpec((1, C, L), lambda n: (n, 0, 0)),
        scratch_shapes=[pltpu.VMEM((q, SL), jnp.float32),
                        pltpu.VMEM((c_half, SL), jnp.float32)],
        compiler_params=pltpu.CompilerParams(dimension_semantics=("parallel",)),
    )(x3, *weights)

    return out.reshape(N, C, H, W)


# ----------------------------------------------------------------------------
# Deterministic parameter construction (matching the PyTorch __init__ shapes)
# ----------------------------------------------------------------------------
def init_params(key, c):
    """GhostBottleneck(c, c, k=3, s=1) parameters, BN folded (eval mode)."""
    assert c % 4 == 0
    c_half = c // 2                # GhostConv1 output / GhostConv2 hidden width
    q = c_half // 2                # GhostConv1 primary (cv1) channels
    ks = iter(jax.random.split(key, 24))

    def pw_weight(cout, cin):                       # 1x1 conv weight, PyTorch (out, in) layout
        bound = 1.0 / np.sqrt(cin)
        return jax.random.uniform(next(ks), (cout, cin), jnp.float32, -bound, bound)

    def dw_weight(ch):                              # 5x5 depthwise, (ch, 25), fan-in 25
        bound = 1.0 / np.sqrt(25)
        return jax.random.uniform(next(ks), (ch, 25), jnp.float32, -bound, bound)

    def bn_fold(ch):
        gamma = 1.0 + 0.1 * jax.random.normal(next(ks), (ch,), jnp.float32)
        beta = 0.1 * jax.random.normal(next(ks), (ch,), jnp.float32)
        mean = 0.1 * jax.random.normal(next(ks), (ch,), jnp.float32)
        var = 1.0 + 0.1 * jnp.abs(jax.random.normal(next(ks), (ch,), jnp.float32))
        scale = gamma / jnp.sqrt(var + 1e-5)
        bias = beta - mean * scale
        return scale.reshape(ch, 1), bias.reshape(ch, 1)

    P = {}
    P['w1'] = pw_weight(q, c);        P['s1'], P['b1'] = bn_fold(q)          # GhostConv1.cv1
    P['dw1'] = dw_weight(q);          P['sd1'], P['bd1'] = bn_fold(q)        # GhostConv1.cv2 (depthwise)
    w2 = pw_weight(c_half, c_half)                                           # GhostConv2.cv1
    P['w2a'], P['w2b'] = w2[:, :q], w2[:, q:]                                # split along input dim
    P['s2'], P['b2'] = bn_fold(c_half)
    P['dw2'] = dw_weight(c_half);     P['sd2'], P['bd2'] = bn_fold(c_half)   # GhostConv2.cv2 (depthwise)
    return P


# ----------------------------------------------------------------------------
# Pure-JAX reference (mirrors the PyTorch math, same bf16 MXU-input quantization)
# ----------------------------------------------------------------------------
@jax.jit
def ref_forward(x_nchw, P):
    x = jnp.transpose(x_nchw, (0, 2, 3, 1)).astype(jnp.float32)     # NHWC (reference only)
    H, W = x.shape[1], x.shape[2]

    def q16(a):                                   # mimic kernel's bf16 MXU inputs
        return a.astype(jnp.bfloat16).astype(jnp.float32)

    def pw(a, w, s, b, act):                      # w: (out, in)
        y = jnp.einsum('nhwc,dc->nhwd', q16(a), q16(w))
        y = y * s.reshape(1, 1, 1, -1) + b.reshape(1, 1, 1, -1)
        return _silu(y) if act else y

    def dw5(a, taps, s, b, act):                  # taps: (ch, 25)
        ap = jnp.pad(a, ((0, 0), (2, 2), (2, 2), (0, 0)))
        y = jnp.zeros_like(a)
        for dy in range(5):
            for dx in range(5):
                y = y + ap[:, dy:dy + H, dx:dx + W, :] * taps[:, dy * 5 + dx].reshape(1, 1, 1, -1)
        y = y * s.reshape(1, 1, 1, -1) + b.reshape(1, 1, 1, -1)
        return _silu(y) if act else y

    # GhostConv(c, c//2), act=SiLU
    y1 = pw(x, P['w1'], P['s1'], P['b1'], True)
    z1 = dw5(y1, P['dw1'], P['sd1'], P['bd1'], True)
    g1 = jnp.concatenate([y1, z1], axis=-1)
    # GhostConv(c//2, c), act=False
    w2 = jnp.concatenate([P['w2a'], P['w2b']], axis=1)
    y2 = pw(g1, w2, P['s2'], P['b2'], False)
    z2 = dw5(y2, P['dw2'], P['sd2'], P['bd2'], False)
    out = jnp.concatenate([y2, z2], axis=-1) + x                    # identity shortcut
    return jnp.transpose(out, (0, 3, 1, 2))


if __name__ == "__main__":
    key = jax.random.PRNGKey(0)
    kx, kp = jax.random.split(key)

    # GhostBottleneck(c1=64, c2=64, k=3, s=1) on a (2, 64, 16, 16) NCHW input.
    N, C, H, W = 2, 64, 16, 16
    x = jax.random.normal(kx, (N, C, H, W), jnp.float32)
    P = init_params(kp, C)

    out = jax.block_until_ready(ghost_bottleneck_forward(x, P))
    assert out.shape == (N, C, H, W)

    ref = jax.block_until_ready(ref_forward(x, P))
    np.testing.assert_allclose(np.asarray(out), np.asarray(ref), rtol=5e-3, atol=5e-3)

    print("KERNEL_OK")
</pallas_src>

<mosaic_0001>
module attributes {stable_mosaic.version = 11 : i64} {
  func.func @_ghost_bottleneck_kernel(%arg0: i32, %arg1: memref<1x64x256xf32, #tpu.memory_space<vmem>>, %arg2: memref<16x64xbf16, #tpu.memory_space<vmem>>, %arg3: memref<16x1xf32, #tpu.memory_space<vmem>>, %arg4: memref<16x1xf32, #tpu.memory_space<vmem>>, %arg5: memref<16x25xf32, #tpu.memory_space<vmem>>, %arg6: memref<16x1xf32, #tpu.memory_space<vmem>>, %arg7: memref<16x1xf32, #tpu.memory_space<vmem>>, %arg8: memref<32x16xbf16, #tpu.memory_space<vmem>>, %arg9: memref<32x16xbf16, #tpu.memory_space<vmem>>, %arg10: memref<32x1xf32, #tpu.memory_space<vmem>>, %arg11: memref<32x1xf32, #tpu.memory_space<vmem>>, %arg12: memref<32x25xf32, #tpu.memory_space<vmem>>, %arg13: memref<32x1xf32, #tpu.memory_space<vmem>>, %arg14: memref<32x1xf32, #tpu.memory_space<vmem>>, %arg15: memref<1x64x256xf32, #tpu.memory_space<vmem>>, %arg16: memref<16x512xf32, #tpu.memory_space<vmem>>, %arg17: memref<32x512xf32, #tpu.memory_space<vmem>>) attributes {dimension_semantics = [#tpu.dimension_semantics<parallel>], iteration_bounds = array<i64: 2>, scalar_prefetch = 0 : i64, scratch_operands = 2 : i64, tpu.core_type = #tpu.core_type<tc>, window_params = [{transform_indices = @transform_0, window_bounds = array<i64: 1, 64, 256>}, {pipeline_mode = #tpu.pipeline_mode<synchronous>, transform_indices = @transform_1, window_bounds = array<i64: 16, 64>}, {pipeline_mode = #tpu.pipeline_mode<synchronous>, transform_indices = @transform_2, window_bounds = array<i64: 16, 1>}, {pipeline_mode = #tpu.pipeline_mode<synchronous>, transform_indices = @transform_3, window_bounds = array<i64: 16, 1>}, {pipeline_mode = #tpu.pipeline_mode<synchronous>, transform_indices = @transform_4, window_bounds = array<i64: 16, 25>}, {pipeline_mode = #tpu.pipeline_mode<synchronous>, transform_indices = @transform_5, window_bounds = array<i64: 16, 1>}, {pipeline_mode = #tpu.pipeline_mode<synchronous>, transform_indices = @transform_6, window_bounds = array<i64: 16, 1>}, {pipeline_mode = #tpu.pipeline_mode<synchronous>, transform_indices = @transform_7, window_bounds = array<i64: 32, 16>}, {pipeline_mode = #tpu.pipeline_mode<synchronous>, transform_indices = @transform_8, window_bounds = array<i64: 32, 16>}, {pipeline_mode = #tpu.pipeline_mode<synchronous>, transform_indices = @transform_9, window_bounds = array<i64: 32, 1>}, {pipeline_mode = #tpu.pipeline_mode<synchronous>, transform_indices = @transform_10, window_bounds = array<i64: 32, 1>}, {pipeline_mode = #tpu.pipeline_mode<synchronous>, transform_indices = @transform_11, window_bounds = array<i64: 32, 25>}, {pipeline_mode = #tpu.pipeline_mode<synchronous>, transform_indices = @transform_12, window_bounds = array<i64: 32, 1>}, {pipeline_mode = #tpu.pipeline_mode<synchronous>, transform_indices = @transform_13, window_bounds = array<i64: 32, 1>}, {transform_indices = @transform_14, window_bounds = array<i64: 1, 64, 256>}]} {
    %c0 = arith.constant 0 : index
    %c0_0 = arith.constant 0 : index
    %c0_1 = arith.constant 0 : index
    %0 = vector.load %arg1[%c0, %c0_0, %c0_1] : memref<1x64x256xf32, #tpu.memory_space<vmem>>, vector<1x64x256xf32>
    %1 = vector.shape_cast %0 : vector<1x64x256xf32> to vector<64x256xf32>
    %2 = arith.truncf %1 : vector<64x256xf32> to vector<64x256xbf16>
    %3 = tpu.iota {dimensions = array<i32: 1>} : vector<1x320xi32>
    %c16_i32 = arith.constant 16 : i32
    %c0_i32 = arith.constant 0 : i32
    %4 = arith.cmpi eq, %c16_i32, %c0_i32 : i32
    %c1_i32 = arith.constant 1 : i32
    %5 = arith.select %4, %c1_i32, %c16_i32 : i32
    %6 = vector.broadcast %5 : i32 to vector<1x320xi32>
    %7 = arith.remsi %3, %6 : vector<1x320xi32>
    %c0_i32_2 = arith.constant 0 : i32
    %8 = vector.broadcast %c0_i32_2 : i32 to vector<1x320xi32>
    %9 = arith.cmpi ne, %7, %8 : vector<1x320xi32>
    %c0_i32_3 = arith.constant 0 : i32
    %10 = vector.broadcast %c0_i32_3 : i32 to vector<1x320xi32>
    %11 = arith.cmpi slt, %7, %10 : vector<1x320xi32>
    %c0_i32_4 = arith.constant 0 : i32
    %12 = arith.cmpi slt, %5, %c0_i32_4 : i32
    %13 = vector.broadcast %12 : i1 to vector<1x320xi1>
    %14 = vector.broadcast %13 : vector<1x320xi1> to vector<1x320xi1>
    %15 = arith.xori %11, %14 : vector<1x320xi1>
    %16 = arith.andi %15, %9 : vector<1x320xi1>
    %17 = vector.broadcast %5 : i32 to vector<1x320xi32>
    %18 = arith.addi %7, %17 : vector<1x320xi32>
    %19 = arith.select %16, %18, %7 : vector<1x320xi1>, vector<1x320xi32>
    %c-2_i32 = arith.constant -2 : i32
    %20 = vector.broadcast %c-2_i32 : i32 to vector<1x320xi32>
    %21 = arith.addi %19, %20 : vector<1x320xi32>
    %c0_i32_5 = arith.constant 0 : i32
    %22 = vector.broadcast %c0_i32_5 : i32 to vector<1x320xi32>
    %23 = arith.cmpi sge, %21, %22 : vector<1x320xi32>
    %c-2_i32_6 = arith.constant -2 : i32
    %24 = vector.broadcast %c-2_i32_6 : i32 to vector<1x320xi32>
    %25 = arith.addi %19, %24 : vector<1x320xi32>
    %c16_i32_7 = arith.constant 16 : i32
    %26 = vector.broadcast %c16_i32_7 : i32 to vector<1x320xi32>
    %27 = arith.cmpi slt, %25, %26 : vector<1x320xi32>
    %28 = arith.andi %23, %27 : vector<1x320xi1>
    %29 = arith.extui %28 : vector<1x320xi1> to vector<1x320xi32>
    %30 = arith.sitofp %29 : vector<1x320xi32> to vector<1x320xf32>
    %c-1_i32 = arith.constant -1 : i32
    %31 = vector.broadcast %c-1_i32 : i32 to vector<1x320xi32>
    %32 = arith.addi %19, %31 : vector<1x320xi32>
    %c0_i32_8 = arith.constant 0 : i32
    %33 = vector.broadcast %c0_i32_8 : i32 to vector<1x320xi32>
    %34 = arith.cmpi sge, %32, %33 : vector<1x320xi32>
    %c-1_i32_9 = arith.constant -1 : i32
    %35 = vector.broadcast %c-1_i32_9 : i32 to vector<1x320xi32>
    %36 = arith.addi %19, %35 : vector<1x320xi32>
    %c16_i32_10 = arith.constant 16 : i32
    %37 = vector.broadcast %c16_i32_10 : i32 to vector<1x320xi32>
    %38 = arith.cmpi slt, %36, %37 : vector<1x320xi32>
    %39 = arith.andi %34, %38 : vector<1x320xi1>
    %40 = arith.extui %39 : vector<1x320xi1> to vector<1x320xi32>
    %41 = arith.sitofp %40 : vector<1x320xi32> to vector<1x320xf32>
    %c1_i32_11 = arith.constant 1 : i32
    %42 = vector.broadcast %c1_i32_11 : i32 to vector<1x320xi32>
    %43 = arith.addi %19, %42 : vector<1x320xi32>
    %c0_i32_12 = arith.constant 0 : i32
    %44 = vector.broadcast %c0_i32_12 : i32 to vector<1x320xi32>
    %45 = arith.cmpi sge, %43, %44 : vector<1x320xi32>
    %c1_i32_13 = arith.constant 1 : i32
    %46 = vector.broadcast %c1_i32_13 : i32 to vector<1x320xi32>
    %47 = arith.addi %19, %46 : vector<1x320xi32>
    %c16_i32_14 = arith.constant 16 : i32
    %48 = vector.broadcast %c16_i32_14 : i32 to vector<1x320xi32>
    %49 = arith.cmpi slt, %47, %48 : vector<1x320xi32>
    %50 = arith.andi %45, %49 : vector<1x320xi1>
    %51 = arith.extui %50 : vector<1x320xi1> to vector<1x320xi32>
    %52 = arith.sitofp %51 : vector<1x320xi32> to vector<1x320xf32>
    %c2_i32 = arith.constant 2 : i32
    %53 = vector.broadcast %c2_i32 : i32 to vector<1x320xi32>
    %54 = arith.addi %19, %53 : vector<1x320xi32>
    %c0_i32_15 = arith.constant 0 : i32
    %55 = vector.broadcast %c0_i32_15 : i32 to vector<1x320xi32>
    %56 = arith.cmpi sge, %54, %55 : vector<1x320xi32>
    %c2_i32_16 = arith.constant 2 : i32
    %57 = vector.broadcast %c2_i32_16 : i32 to vector<1x320xi32>
    %58 = arith.addi %19, %57 : vector<1x320xi32>
    %c16_i32_17 = arith.constant 16 : i32
    %59 = vector.broadcast %c16_i32_17 : i32 to vector<1x320xi32>
    %60 = arith.cmpi slt, %58, %59 : vector<1x320xi32>
    %61 = arith.andi %56, %60 : vector<1x320xi1>
    %62 = arith.extui %61 : vector<1x320xi1> to vector<1x320xi32>
    %63 = arith.sitofp %62 : vector<1x320xi32> to vector<1x320xf32>
    %c0_18 = arith.constant 0 : index
    %c0_19 = arith.constant 0 : index
    %64 = vector.load %arg2[%c0_18, %c0_19] : memref<16x64xbf16, #tpu.memory_space<vmem>>, vector<16x64xbf16>
    %cst = arith.constant dense<0.000000e+00> : vector<16x256xf32>
    %65 = tpu.matmul %64, %2, %cst {dimension_numbers = #tpu.dot_dimension_numbers<[1], [0], [0], [1], [0, 0, 1, 1], [], []>} : vector<16x64xbf16>, vector<64x256xbf16>, vector<16x256xf32> -> vector<16x256xf32>
    %c0_20 = arith.constant 0 : index
    %c0_21 = arith.constant 0 : index
    %66 = vector.load %arg3[%c0_20, %c0_21] : memref<16x1xf32, #tpu.memory_space<vmem>>, vector<16x1xf32>
    %67 = vector.broadcast %66 : vector<16x1xf32> to vector<16x256xf32>
    %68 = arith.mulf %65, %67 : vector<16x256xf32>
    %c0_22 = arith.constant 0 : index
    %c0_23 = arith.constant 0 : index
    %69 = vector.load %arg4[%c0_22, %c0_23] : memref<16x1xf32, #tpu.memory_space<vmem>>, vector<16x1xf32>
    %70 = vector.broadcast %69 : vector<16x1xf32> to vector<16x256xf32>
    %71 = arith.addf %68, %70 : vector<16x256xf32>
    %cst_24 = arith.constant 0.000000e+00 : f32
    %72 = vector.broadcast %cst_24 : f32 to vector<16x256xf32>
    %73 = arith.subf %72, %71 : vector<16x256xf32>
    %74 = math.exp %73 : vector<16x256xf32>
    %cst_25 = arith.constant 1.000000e+00 : f32
    %75 = vector.broadcast %cst_25 : f32 to vector<16x256xf32>
    %76 = arith.addf %75, %74 : vector<16x256xf32>
    %cst_26 = arith.constant 1.000000e+00 : f32
    %77 = vector.broadcast %cst_26 : f32 to vector<16x256xf32>
    %78 = arith.divf %77, %76 : vector<16x256xf32>
    %79 = arith.mulf %71, %78 : vector<16x256xf32>
    %cst_27 = arith.constant 0.000000e+00 : f32
    %80 = vector.broadcast %cst_27 : f32 to vector<16x128xf32>
    %c0_28 = arith.constant 0 : index
    %c0_29 = arith.constant 0 : index
    %81 = vector.load %arg16[%c0_28, %c0_29] : memref<16x512xf32, #tpu.memory_space<vmem>>, vector<16x128xf32>
    tpu.vector_store %arg16[%c0_28, %c0_29], %80 {strides = array<i32>} : memref<16x512xf32, #tpu.memory_space<vmem>>, vector<16x128xf32>,
    %cst_30 = arith.constant 0.000000e+00 : f32
    %82 = vector.broadcast %cst_30 : f32 to vector<16x128xf32>
    %c0_31 = arith.constant 0 : index
    %c384 = arith.constant 384 : index
    %83 = vector.load %arg16[%c0_31, %c384] : memref<16x512xf32, #tpu.memory_space<vmem>>, vector<16x128xf32>
    tpu.vector_store %arg16[%c0_31, %c384], %82 {strides = array<i32>} : memref<16x512xf32, #tpu.memory_space<vmem>>, vector<16x128xf32>,
    %c0_32 = arith.constant 0 : index
    %c128 = arith.constant 128 : index
    %84 = vector.load %arg16[%c0_32, %c128] : memref<16x512xf32, #tpu.memory_space<vmem>>, vector<16x256xf32>
    tpu.vector_store %arg16[%c0_32, %c128], %79 {strides = array<i32>} : memref<16x512xf32, #tpu.memory_space<vmem>>, vector<16x256xf32>,
    %cst_33 = arith.constant 0.000000e+00 : f32
    %85 = vector.broadcast %cst_33 : f32 to vector<16x256xf32>
    %c0_34 = arith.constant 0 : index
    %c94 = arith.constant 94 : index
    %86 = vector.load %arg16[%c0_34, %c94] : memref<16x512xf32, #tpu.memory_space<vmem>>, vector<16x320xf32>
    %87 = vector.broadcast %30 : vector<1x320xf32> to vector<16x320xf32>
    %88 = arith.mulf %86, %87 : vector<16x320xf32>
    %c0_35 = arith.constant 0 : index
    %c0_36 = arith.constant 0 : index
    %89 = vector.load %arg5[%c0_35, %c0_36] : memref<16x25xf32, #tpu.memory_space<vmem>>, vector<16x1xf32>
    %90 = vector.extract_strided_slice %88 {offsets = [0, 0], sizes = [16, 256], strides = [1, 1]} : vector<16x320xf32> to vector<16x256xf32>
    %91 = vector.broadcast %89 : vector<16x1xf32> to vector<16x256xf32>
    %92 = arith.mulf %90, %91 : vector<16x256xf32>
    %93 = arith.addf %85, %92 : vector<16x256xf32>
    %c0_37 = arith.constant 0 : index
    %c5 = arith.constant 5 : index
    %94 = vector.load %arg5[%c0_37, %c5] : memref<16x25xf32, #tpu.memory_space<vmem>>, vector<16x1xf32>
    %95 = vector.extract_strided_slice %88 {offsets = [0, 16], sizes = [16, 256], strides = [1, 1]} : vector<16x320xf32> to vector<16x256xf32>
    %96 = vector.broadcast %94 : vector<16x1xf32> to vector<16x256xf32>
    %97 = arith.mulf %95, %96 : vector<16x256xf32>
    %98 = arith.addf %93, %97 : vector<16x256xf32>
    %c0_38 = arith.constant 0 : index
    %c10 = arith.constant 10 : index
    %99 = vector.load %arg5[%c0_38, %c10] : memref<16x25xf32, #tpu.memory_space<vmem>>, vector<16x1xf32>
    %100 = vector.extract_strided_slice %88 {offsets = [0, 32], sizes = [16, 256], strides = [1, 1]} : vector<16x320xf32> to vector<16x256xf32>
    %101 = vector.broadcast %99 : vector<16x1xf32> to vector<16x256xf32>
    %102 = arith.mulf %100, %101 : vector<16x256xf32>
    %103 = arith.addf %98, %102 : vector<16x256xf32>
    %c0_39 = arith.constant 0 : index
    %c15 = arith.constant 15 : index
    %104 = vector.load %arg5[%c0_39, %c15] : memref<16x25xf32, #tpu.memory_space<vmem>>, vector<16x1xf32>
    %105 = vector.extract_strided_slice %88 {offsets = [0, 48], sizes = [16, 256], strides = [1, 1]} : vector<16x320xf32> to vector<16x256xf32>
    %106 = vector.broadcast %104 : vector<16x1xf32> to vector<16x256xf32>
    %107 = arith.mulf %105, %106 : vector<16x256xf32>
    %108 = arith.addf %103, %107 : vector<16x256xf32>
    %c0_40 = arith.constant 0 : index
    %c20 = arith.constant 20 : index
    %109 = vector.load %arg5[%c0_40, %c20] : memref<16x25xf32, #tpu.memory_space<vmem>>, vector<16x1xf32>
    %110 = vector.extract_strided_slice %88 {offsets = [0, 64], sizes = [16, 256], strides = [1, 1]} : vector<16x320xf32> to vector<16x256xf32>
    %111 = vector.broadcast %109 : vector<16x1xf32> to vector<16x256xf32>
    %112 = arith.mulf %110, %111 : vector<16x256xf32>
    %113 = arith.addf %108, %112 : vector<16x256xf32>
    %c0_41 = arith.constant 0 : index
    %c95 = arith.constant 95 : index
    %114 = vector.load %arg16[%c0_41, %c95] : memref<16x512xf32, #tpu.memory_space<vmem>>, vector<16x320xf32>
    %115 = vector.broadcast %41 : vector<1x320xf32> to vector<16x320xf32>
    %116 = arith.mulf %114, %115 : vector<16x320xf32>
    %c0_42 = arith.constant 0 : index
    %c1 = arith.constant 1 : index
    %117 = vector.load %arg5[%c0_42, %c1] : memref<16x25xf32, #tpu.memory_space<vmem>>, vector<16x1xf32>
    %118 = vector.extract_strided_slice %116 {offsets = [0, 0], sizes = [16, 256], strides = [1, 1]} : vector<16x320xf32> to vector<16x256xf32>
    %119 = vector.broadcast %117 : vector<16x1xf32> to vector<16x256xf32>
    %120 = arith.mulf %118, %119 : vector<16x256xf32>
    %121 = arith.addf %113, %120 : vector<16x256xf32>
    %c0_43 = arith.constant 0 : index
    %c6 = arith.constant 6 : index
    %122 = vector.load %arg5[%c0_43, %c6] : memref<16x25xf32, #tpu.memory_space<vmem>>, vector<16x1xf32>
    %123 = vector.extract_strided_slice %116 {offsets = [0, 16], sizes = [16, 256], strides = [1, 1]} : vector<16x320xf32> to vector<16x256xf32>
    %124 = vector.broadcast %122 : vector<16x1xf32> to vector<16x256xf32>
    %125 = arith.mulf %123, %124 : vector<16x256xf32>
    %126 = arith.addf %121, %125 : vector<16x256xf32>
    %c0_44 = arith.constant 0 : index
    %c11 = arith.constant 11 : index
    %127 = vector.load %arg5[%c0_44, %c11] : memref<16x25xf32, #tpu.memory_space<vmem>>, vector<16x1xf32>
    %128 = vector.extract_strided_slice %116 {offsets = [0, 32], sizes = [16, 256], strides = [1, 1]} : vector<16x320xf32> to vector<16x256xf32>
    %129 = vector.broadcast %127 : vector<16x1xf32> to vector<16x256xf32>
    %130 = arith.mulf %128, %129 : vector<16x256xf32>
    %131 = arith.addf %126, %130 : vector<16x256xf32>
    %c0_45 = arith.constant 0 : index
    %c16 = arith.constant 16 : index
    %132 = vector.load %arg5[%c0_45, %c16] : memref<16x25xf32, #tpu.memory_space<vmem>>, vector<16x1xf32>
    %133 = vector.extract_strided_slice %116 {offsets = [0, 48], sizes = [16, 256], strides = [1, 1]} : vector<16x320xf32> to vector<16x256xf32>
    %134 = vector.broadcast %132 : vector<16x1xf32> to vector<16x256xf32>
    %135 = arith.mulf %133, %134 : vector<16x256xf32>
    %136 = arith.addf %131, %135 : vector<16x256xf32>
    %c0_46 = arith.constant 0 : index
    %c21 = arith.constant 21 : index
    %137 = vector.load %arg5[%c0_46, %c21] : memref<16x25xf32, #tpu.memory_space<vmem>>, vector<16x1xf32>
    %138 = vector.extract_strided_slice %116 {offsets = [0, 64], sizes = [16, 256], strides = [1, 1]} : vector<16x320xf32> to vector<16x256xf32>
    %139 = vector.broadcast %137 : vector<16x1xf32> to vector<16x256xf32>
    %140 = arith.mulf %138, %139 : vector<16x256xf32>
    %141 = arith.addf %136, %140 : vector<16x256xf32>
    %c0_47 = arith.constant 0 : index
    %c96 = arith.constant 96 : index
    %142 = vector.load %arg16[%c0_47, %c96] : memref<16x512xf32, #tpu.memory_space<vmem>>, vector<16x320xf32>
    %c0_48 = arith.constant 0 : index
    %c2 = arith.constant 2 : index
    %143 = vector.load %arg5[%c0_48, %c2] : memref<16x25xf32, #tpu.memory_space<vmem>>, vector<16x1xf32>
    %144 = vector.extract_strided_slice %142 {offsets = [0, 0], sizes = [16, 256], strides = [1, 1]} : vector<16x320xf32> to vector<16x256xf32>
    %145 = vector.broadcast %143 : vector<16x1xf32> to vector<16x256xf32>
    %146 = arith.mulf %144, %145 : vector<16x256xf32>
    %147 = arith.addf %141, %146 : vector<16x256xf32>
    %c0_49 = arith.constant 0 : index
    %c7 = arith.constant 7 : index
    %148 = vector.load %arg5[%c0_49, %c7] : memref<16x25xf32, #tpu.memory_space<vmem>>, vector<16x1xf32>
    %149 = vector.extract_strided_slice %142 {offsets = [0, 16], sizes = [16, 256], strides = [1, 1]} : vector<16x320xf32> to vector<16x256xf32>
    %150 = vector.broadcast %148 : vector<16x1xf32> to vector<16x256xf32>
    %151 = arith.mulf %149, %150 : vector<16x256xf32>
    %152 = arith.addf %147, %151 : vector<16x256xf32>
    %c0_50 = arith.constant 0 : index
    %c12 = arith.constant 12 : index
    %153 = vector.load %arg5[%c0_50, %c12] : memref<16x25xf32, #tpu.memory_space<vmem>>, vector<16x1xf32>
    %154 = vector.extract_strided_slice %142 {offsets = [0, 32], sizes = [16, 256], strides = [1, 1]} : vector<16x320xf32> to vector<16x256xf32>
    %155 = vector.broadcast %153 : vector<16x1xf32> to vector<16x256xf32>
    %156 = arith.mulf %154, %155 : vector<16x256xf32>
    %157 = arith.addf %152, %156 : vector<16x256xf32>
    %c0_51 = arith.constant 0 : index
    %c17 = arith.constant 17 : index
    %158 = vector.load %arg5[%c0_51, %c17] : memref<16x25xf32, #tpu.memory_space<vmem>>, vector<16x1xf32>
    %159 = vector.extract_strided_slice %142 {offsets = [0, 48], sizes = [16, 256], strides = [1, 1]} : vector<16x320xf32> to vector<16x256xf32>
    %160 = vector.broadcast %158 : vector<16x1xf32> to vector<16x256xf32>
    %161 = arith.mulf %159, %160 : vector<16x256xf32>
    %162 = arith.addf %157, %161 : vector<16x256xf32>
    %c0_52 = arith.constant 0 : index
    %c22 = arith.constant 22 : index
    %163 = vector.load %arg5[%c0_52, %c22] : memref<16x25xf32, #tpu.memory_space<vmem>>, vector<16x1xf32>
    %164 = vector.extract_strided_slice %142 {offsets = [0, 64], sizes = [16, 256], strides = [1, 1]} : vector<16x320xf32> to vector<16x256xf32>
    %165 = vector.broadcast %163 : vector<16x1xf32> to vector<16x256xf32>
    %166 = arith.mulf %164, %165 : vector<16x256xf32>
    %167 = arith.addf %162, %166 : vector<16x256xf32>
    %c0_53 = arith.constant 0 : index
    %c97 = arith.constant 97 : index
    %168 = vector.load %arg16[%c0_53, %c97] : memref<16x512xf32, #tpu.memory_space<vmem>>, vector<16x320xf32>
    %169 = vector.broadcast %52 : vector<1x320xf32> to vector<16x320xf32>
    %170 = arith.mulf %168, %169 : vector<16x320xf32>
    %c0_54 = arith.constant 0 : index
    %c3 = arith.constant 3 : index
    %171 = vector.load %arg5[%c0_54, %c3] : memref<16x25xf32, #tpu.memory_space<vmem>>, vector<16x1xf32>
    %172 = vector.extract_strided_slice %170 {offsets = [0, 0], sizes = [16, 256], strides = [1, 1]} : vector<16x320xf32> to vector<16x256xf32>
    %173 = vector.broadcast %171 : vector<16x1xf32> to vector<16x256xf32>
    %174 = arith.mulf %172, %173 : vector<16x256xf32>
    %175 = arith.addf %167, %174 : vector<16x256xf32>
    %c0_55 = arith.constant 0 : index
    %c8 = arith.constant 8 : index
    %176 = vector.load %arg5[%c0_55, %c8] : memref<16x25xf32, #tpu.memory_space<vmem>>, vector<16x1xf32>
    %177 = vector.extract_strided_slice %170 {offsets = [0, 16], sizes = [16, 256], strides = [1, 1]} : vector<16x320xf32> to vector<16x256xf32>
    %178 = vector.broadcast %176 : vector<16x1xf32> to vector<16x256xf32>
    %179 = arith.mulf %177, %178 : vector<16x256xf32>
    %180 = arith.addf %175, %179 : vector<16x256xf32>
    %c0_56 = arith.constant 0 : index
    %c13 = arith.constant 13 : index
    %181 = vector.load %arg5[%c0_56, %c13] : memref<16x25xf32, #tpu.memory_space<vmem>>, vector<16x1xf32>
    %182 = vector.extract_strided_slice %170 {offsets = [0, 32], sizes = [16, 256], strides = [1, 1]} : vector<16x320xf32> to vector<16x256xf32>
    %183 = vector.broadcast %181 : vector<16x1xf32> to vector<16x256xf32>
    %184 = arith.mulf %182, %183 : vector<16x256xf32>
    %185 = arith.addf %180, %184 : vector<16x256xf32>
    %c0_57 = arith.constant 0 : index
    %c18 = arith.constant 18 : index
    %186 = vector.load %arg5[%c0_57, %c18] : memref<16x25xf32, #tpu.memory_space<vmem>>, vector<16x1xf32>
    %187 = vector.extract_strided_slice %170 {offsets = [0, 48], sizes = [16, 256], strides = [1, 1]} : vector<16x320xf32> to vector<16x256xf32>
    %188 = vector.broadcast %186 : vector<16x1xf32> to vector<16x256xf32>
    %189 = arith.mulf %187, %188 : vector<16x256xf32>
    %190 = arith.addf %185, %189 : vector<16x256xf32>
    %c0_58 = arith.constant 0 : index
    %c23 = arith.constant 23 : index
    %191 = vector.load %arg5[%c0_58, %c23] : memref<16x25xf32, #tpu.memory_space<vmem>>, vector<16x1xf32>
    %192 = vector.extract_strided_slice %170 {offsets = [0, 64], sizes = [16, 256], strides = [1, 1]} : vector<16x320xf32> to vector<16x256xf32>
    %193 = vector.broadcast %191 : vector<16x1xf32> to vector<16x256xf32>
    %194 = arith.mulf %192, %193 : vector<16x256xf32>
    %195 = arith.addf %190, %194 : vector<16x256xf32>
    %c0_59 = arith.constant 0 : index
    %c98 = arith.constant 98 : index
    %196 = vector.load %arg16[%c0_59, %c98] : memref<16x512xf32, #tpu.memory_space<vmem>>, vector<16x320xf32>
    %197 = vector.broadcast %63 : vector<1x320xf32> to vector<16x320xf32>
    %198 = arith.mulf %196, %197 : vector<16x320xf32>
    %c0_60 = arith.constant 0 : index
    %c4 = arith.constant 4 : index
    %199 = vector.load %arg5[%c0_60, %c4] : memref<16x25xf32, #tpu.memory_space<vmem>>, vector<16x1xf32>
    %200 = vector.extract_strided_slice %198 {offsets = [0, 0], sizes = [16, 256], strides = [1, 1]} : vector<16x320xf32> to vector<16x256xf32>
    %201 = vector.broadcast %199 : vector<16x1xf32> to vector<16x256xf32>
    %202 = arith.mulf %200, %201 : vector<16x256xf32>
    %203 = arith.addf %195, %202 : vector<16x256xf32>
    %c0_61 = arith.constant 0 : index
    %c9 = arith.constant 9 : index
    %204 = vector.load %arg5[%c0_61, %c9] : memref<16x25xf32, #tpu.memory_space<vmem>>, vector<16x1xf32>
    %205 = vector.extract_strided_slice %198 {offsets = [0, 16], sizes = [16, 256], strides = [1, 1]} : vector<16x320xf32> to vector<16x256xf32>
    %206 = vector.broadcast %204 : vector<16x1xf32> to vector<16x256xf32>
    %207 = arith.mulf %205, %206 : vector<16x256xf32>
    %208 = arith.addf %203, %207 : vector<16x256xf32>
    %c0_62 = arith.constant 0 : index
    %c14 = arith.constant 14 : index
    %209 = vector.load %arg5[%c0_62, %c14] : memref<16x25xf32, #tpu.memory_space<vmem>>, vector<16x1xf32>
    %210 = vector.extract_strided_slice %198 {offsets = [0, 32], sizes = [16, 256], strides = [1, 1]} : vector<16x320xf32> to vector<16x256xf32>
    %211 = vector.broadcast %209 : vector<16x1xf32> to vector<16x256xf32>
    %212 = arith.mulf %210, %211 : vector<16x256xf32>
    %213 = arith.addf %208, %212 : vector<16x256xf32>
    %c0_63 = arith.constant 0 : index
    %c19 = arith.constant 19 : index
    %214 = vector.load %arg5[%c0_63, %c19] : memref<16x25xf32, #tpu.memory_space<vmem>>, vector<16x1xf32>
    %215 = vector.extract_strided_slice %198 {offsets = [0, 48], sizes = [16, 256], strides = [1, 1]} : vector<16x320xf32> to vector<16x256xf32>
    %216 = vector.broadcast %214 : vector<16x1xf32> to vector<16x256xf32>
    %217 = arith.mulf %215, %216 : vector<16x256xf32>
    %218 = arith.addf %213, %217 : vector<16x256xf32>
    %c0_64 = arith.constant 0 : index
    %c24 = arith.constant 24 : index
    %219 = vector.load %arg5[%c0_64, %c24] : memref<16x25xf32, #tpu.memory_space<vmem>>, vector<16x1xf32>
    %220 = vector.extract_strided_slice %198 {offsets = [0, 64], sizes = [16, 256], strides = [1, 1]} : vector<16x320xf32> to vector<16x256xf32>
    %221 = vector.broadcast %219 : vector<16x1xf32> to vector<16x256xf32>
    %222 = arith.mulf %220, %221 : vector<16x256xf32>
    %223 = arith.addf %218, %222 : vector<16x256xf32>
    %c0_65 = arith.constant 0 : index
    %c0_66 = arith.constant 0 : index
    %224 = vector.load %arg6[%c0_65, %c0_66] : memref<16x1xf32, #tpu.memory_space<vmem>>, vector<16x1xf32>
    %225 = vector.broadcast %224 : vector<16x1xf32> to vector<16x256xf32>
    %226 = arith.mulf %223, %225 : vector<16x256xf32>
    %c0_67 = arith.constant 0 : index
    %c0_68 = arith.constant 0 : index
    %227 = vector.load %arg7[%c0_67, %c0_68] : memref<16x1xf32, #tpu.memory_space<vmem>>, vector<16x1xf32>
    %228 = vector.broadcast %227 : vector<16x1xf32> to vector<16x256xf32>
    %229 = arith.addf %226, %228 : vector<16x256xf32>
    %cst_69 = arith.constant 0.000000e+00 : f32
    %230 = vector.broadcast %cst_69 : f32 to vector<16x256xf32>
    %231 = arith.subf %230, %229 : vector<16x256xf32>
    %232 = math.exp %231 : vector<16x256xf32>
    %cst_70 = arith.constant 1.000000e+00 : f32
    %233 = vector.broadcast %cst_70 : f32 to vector<16x256xf32>
    %234 = arith.addf %233, %232 : vector<16x256xf32>
    %cst_71 = arith.constant 1.000000e+00 : f32
    %235 = vector.broadcast %cst_71 : f32 to vector<16x256xf32>
    %236 = arith.divf %235, %234 : vector<16x256xf32>
    %237 = arith.mulf %229, %236 : vector<16x256xf32>
    %c0_72 = arith.constant 0 : index
    %c0_73 = arith.constant 0 : index
    %238 = vector.load %arg8[%c0_72, %c0_73] : memref<32x16xbf16, #tpu.memory_space<vmem>>, vector<32x16xbf16>
    %239 = arith.truncf %79 : vector<16x256xf32> to vector<16x256xbf16>
    %cst_74 = arith.constant dense<0.000000e+00> : vector<32x256xf32>
    %240 = tpu.matmul %238, %239, %cst_74 {dimension_numbers = #tpu.dot_dimension_numbers<[1], [0], [0], [1], [0, 0, 1, 1], [], []>} : vector<32x16xbf16>, vector<16x256xbf16>, vector<32x256xf32> -> vector<32x256xf32>
    %c0_75 = arith.constant 0 : index
    %c0_76 = arith.constant 0 : index
    %241 = vector.load %arg9[%c0_75, %c0_76] : memref<32x16xbf16, #tpu.memory_space<vmem>>, vector<32x16xbf16>
    %242 = arith.truncf %237 : vector<16x256xf32> to vector<16x256xbf16>
    %cst_77 = arith.constant dense<0.000000e+00> : vector<32x256xf32>
    %243 = tpu.matmul %241, %242, %cst_77 {dimension_numbers = #tpu.dot_dimension_numbers<[1], [0], [0], [1], [0, 0, 1, 1], [], []>} : vector<32x16xbf16>, vector<16x256xbf16>, vector<32x256xf32> -> vector<32x256xf32>
    %244 = arith.addf %240, %243 : vector<32x256xf32>
    %c0_78 = arith.constant 0 : index
    %c0_79 = arith.constant 0 : index
    %245 = vector.load %arg10[%c0_78, %c0_79] : memref<32x1xf32, #tpu.memory_space<vmem>>, vector<32x1xf32>
    %246 = vector.broadcast %245 : vector<32x1xf32> to vector<32x256xf32>
    %247 = arith.mulf %244, %246 : vector<32x256xf32>
    %c0_80 = arith.constant 0 : index
    %c0_81 = arith.constant 0 : index
    %248 = vector.load %arg11[%c0_80, %c0_81] : memref<32x1xf32, #tpu.memory_space<vmem>>, vector<32x1xf32>
    %249 = vector.broadcast %248 : vector<32x1xf32> to vector<32x256xf32>
    %250 = arith.addf %247, %249 : vector<32x256xf32>
    %cst_82 = arith.constant 0.000000e+00 : f32
    %251 = vector.broadcast %cst_82 : f32 to vector<32x128xf32>
    %c0_83 = arith.constant 0 : index
    %c0_84 = arith.constant 0 : index
    %252 = vector.load %arg17[%c0_83, %c0_84] : memref<32x512xf32, #tpu.memory_space<vmem>>, vector<32x128xf32>
    tpu.vector_store %arg17[%c0_83, %c0_84], %251 {strides = array<i32>} : memref<32x512xf32, #tpu.memory_space<vmem>>, vector<32x128xf32>,
    %cst_85 = arith.constant 0.000000e+00 : f32
    %253 = vector.broadcast %cst_85 : f32 to vector<32x128xf32>
    %c0_86 = arith.constant 0 : index
    %c384_87 = arith.constant 384 : index
    %254 = vector.load %arg17[%c0_86, %c384_87] : memref<32x512xf32, #tpu.memory_space<vmem>>, vector<32x128xf32>
    tpu.vector_store %arg17[%c0_86, %c384_87], %253 {strides = array<i32>} : memref<32x512xf32, #tpu.memory_space<vmem>>, vector<32x128xf32>,
    %c0_88 = arith.constant 0 : index
    %c128_89 = arith.constant 128 : index
    %255 = vector.load %arg17[%c0_88, %c128_89] : memref<32x512xf32, #tpu.memory_space<vmem>>, vector<32x256xf32>
    tpu.vector_store %arg17[%c0_88, %c128_89], %250 {strides = array<i32>} : memref<32x512xf32, #tpu.memory_space<vmem>>, vector<32x256xf32>,
    %cst_90 = arith.constant 0.000000e+00 : f32
    %256 = vector.broadcast %cst_90 : f32 to vector<32x256xf32>
    %c0_91 = arith.constant 0 : index
    %c94_92 = arith.constant 94 : index
    %257 = vector.load %arg17[%c0_91, %c94_92] : memref<32x512xf32, #tpu.memory_space<vmem>>, vector<32x320xf32>
    %258 = vector.broadcast %30 : vector<1x320xf32> to vector<32x320xf32>
    %259 = arith.mulf %257, %258 : vector<32x320xf32>
    %c0_93 = arith.constant 0 : index
    %c0_94 = arith.constant 0 : index
    %260 = vector.load %arg12[%c0_93, %c0_94] : memref<32x25xf32, #tpu.memory_space<vmem>>, vector<32x1xf32>
    %261 = vector.extract_strided_slice %259 {offsets = [0, 0], sizes = [32, 256], strides = [1, 1]} : vector<32x320xf32> to vector<32x256xf32>
    %262 = vector.broadcast %260 : vector<32x1xf32> to vector<32x256xf32>
    %263 = arith.mulf %261, %262 : vector<32x256xf32>
    %264 = arith.addf %256, %263 : vector<32x256xf32>
    %c0_95 = arith.constant 0 : index
    %c5_96 = arith.constant 5 : index
    %265 = vector.load %arg12[%c0_95, %c5_96] : memref<32x25xf32, #tpu.memory_space<vmem>>, vector<32x1xf32>
    %266 = vector.extract_strided_slice %259 {offsets = [0, 16], sizes = [32, 256], strides = [1, 1]} : vector<32x320xf32> to vector<32x256xf32>
    %267 = vector.broadcast %265 : vector<32x1xf32> to vector<32x256xf32>
    %268 = arith.mulf %266, %267 : vector<32x256xf32>
    %269 = arith.addf %264, %268 : vector<32x256xf32>
    %c0_97 = arith.constant 0 : index
    %c10_98 = arith.constant 10 : index
    %270 = vector.load %arg12[%c0_97, %c10_98] : memref<32x25xf32, #tpu.memory_space<vmem>>, vector<32x1xf32>
    %271 = vector.extract_strided_slice %259 {offsets = [0, 32], sizes = [32, 256], strides = [1, 1]} : vector<32x320xf32> to vector<32x256xf32>
    %272 = vector.broadcast %270 : vector<32x1xf32> to vector<32x256xf32>
    %273 = arith.mulf %271, %272 : vector<32x256xf32>
    %274 = arith.addf %269, %273 : vector<32x256xf32>
    %c0_99 = arith.constant 0 : index
    %c15_100 = arith.constant 15 : index
    %275 = vector.load %arg12[%c0_99, %c15_100] : memref<32x25xf32, #tpu.memory_space<vmem>>, vector<32x1xf32>
    %276 = vector.extract_strided_slice %259 {offsets = [0, 48], sizes = [32, 256], strides = [1, 1]} : vector<32x320xf32> to vector<32x256xf32>
    %277 = vector.broadcast %275 : vector<32x1xf32> to vector<32x256xf32>
    %278 = arith.mulf %276, %277 : vector<32x256xf32>
    %279 = arith.addf %274, %278 : vector<32x256xf32>
    %c0_101 = arith.constant 0 : index
    %c20_102 = arith.constant 20 : index
    %280 = vector.load %arg12[%c0_101, %c20_102] : memref<32x25xf32, #tpu.memory_space<vmem>>, vector<32x1xf32>
    %281 = vector.extract_strided_slice %259 {offsets = [0, 64], sizes = [32, 256], strides = [1, 1]} : vector<32x320xf32> to vector<32x256xf32>
    %282 = vector.broadcast %280 : vector<32x1xf32> to vector<32x256xf32>
    %283 = arith.mulf %281, %282 : vector<32x256xf32>
    %284 = arith.addf %279, %283 : vector<32x256xf32>
    %c0_103 = arith.constant 0 : index
    %c95_104 = arith.constant 95 : index
    %285 = vector.load %arg17[%c0_103, %c95_104] : memref<32x512xf32, #tpu.memory_space<vmem>>, vector<32x320xf32>
    %286 = vector.broadcast %41 : vector<1x320xf32> to vector<32x320xf32>
    %287 = arith.mulf %285, %286 : vector<32x320xf32>
    %c0_105 = arith.constant 0 : index
    %c1_106 = arith.constant 1 : index
    %288 = vector.load %arg12[%c0_105, %c1_106] : memref<32x25xf32, #tpu.memory_space<vmem>>, vector<32x1xf32>
    %289 = vector.extract_strided_slice %287 {offsets = [0, 0], sizes = [32, 256], strides = [1, 1]} : vector<32x320xf32> to vector<32x256xf32>
    %290 = vector.broadcast %288 : vector<32x1xf32> to vector<32x256xf32>
    %291 = arith.mulf %289, %290 : vector<32x256xf32>
    %292 = arith.addf %284, %291 : vector<32x256xf32>
    %c0_107 = arith.constant 0 : index
    %c6_108 = arith.constant 6 : index
    %293 = vector.load %arg12[%c0_107, %c6_108] : memref<32x25xf32, #tpu.memory_space<vmem>>, vector<32x1xf32>
    %294 = vector.extract_strided_slice %287 {offsets = [0, 16], sizes = [32, 256], strides = [1, 1]} : vector<32x320xf32> to vector<32x256xf32>
    %295 = vector.broadcast %293 : vector<32x1xf32> to vector<32x256xf32>
    %296 = arith.mulf %294, %295 : vector<32x256xf32>
    %297 = arith.addf %292, %296 : vector<32x256xf32>
    %c0_109 = arith.constant 0 : index
    %c11_110 = arith.constant 11 : index
    %298 = vector.load %arg12[%c0_109, %c11_110] : memref<32x25xf32, #tpu.memory_space<vmem>>, vector<32x1xf32>
    %299 = vector.extract_strided_slice %287 {offsets = [0, 32], sizes = [32, 256], strides = [1, 1]} : vector<32x320xf32> to vector<32x256xf32>
    %300 = vector.broadcast %298 : vector<32x1xf32> to vector<32x256xf32>
    %301 = arith.mulf %299, %300 : vector<32x256xf32>
    %302 = arith.addf %297, %301 : vector<32x256xf32>
    %c0_111 = arith.constant 0 : index
    %c16_112 = arith.constant 16 : index
    %303 = vector.load %arg12[%c0_111, %c16_112] : memref<32x25xf32, #tpu.memory_space<vmem>>, vector<32x1xf32>
    %304 = vector.extract_strided_slice %287 {offsets = [0, 48], sizes = [32, 256], strides = [1, 1]} : vector<32x320xf32> to vector<32x256xf32>
    %305 = vector.broadcast %303 : vector<32x1xf32> to vector<32x256xf32>
    %306 = arith.mulf %304, %305 : vector<32x256xf32>
    %307 = arith.addf %302, %306 : vector<32x256xf32>
    %c0_113 = arith.constant 0 : index
    %c21_114 = arith.constant 21 : index
    %308 = vector.load %arg12[%c0_113, %c21_114] : memref<32x25xf32, #tpu.memory_space<vmem>>, vector<32x1xf32>
    %309 = vector.extract_strided_slice %287 {offsets = [0, 64], sizes = [32, 256], strides = [1, 1]} : vector<32x320xf32> to vector<32x256xf32>
    %310 = vector.broadcast %308 : vector<32x1xf32> to vector<32x256xf32>
    %311 = arith.mulf %309, %310 : vector<32x256xf32>
    %312 = arith.addf %307, %311 : vector<32x256xf32>
    %c0_115 = arith.constant 0 : index
    %c96_116 = arith.constant 96 : index
    %313 = vector.load %arg17[%c0_115, %c96_116] : memref<32x512xf32, #tpu.memory_space<vmem>>, vector<32x320xf32>
    %c0_117 = arith.constant 0 : index
    %c2_118 = arith.constant 2 : index
    %314 = vector.load %arg12[%c0_117, %c2_118] : memref<32x25xf32, #tpu.memory_space<vmem>>, vector<32x1xf32>
    %315 = vector.extract_strided_slice %313 {offsets = [0, 0], sizes = [32, 256], strides = [1, 1]} : vector<32x320xf32> to vector<32x256xf32>
    %316 = vector.broadcast %314 : vector<32x1xf32> to vector<32x256xf32>
    %317 = arith.mulf %315, %316 : vector<32x256xf32>
    %318 = arith.addf %312, %317 : vector<32x256xf32>
    %c0_119 = arith.constant 0 : index
    %c7_120 = arith.constant 7 : index
    %319 = vector.load %arg12[%c0_119, %c7_120] : memref<32x25xf32, #tpu.memory_space<vmem>>, vector<32x1xf32>
    %320 = vector.extract_strided_slice %313 {offsets = [0, 16], sizes = [32, 256], strides = [1, 1]} : vector<32x320xf32> to vector<32x256xf32>
    %321 = vector.broadcast %319 : vector<32x1xf32> to vector<32x256xf32>
    %322 = arith.mulf %320, %321 : vector<32x256xf32>
    %323 = arith.addf %318, %322 : vector<32x256xf32>
    %c0_121 = arith.constant 0 : index
    %c12_122 = arith.constant 12 : index
    %324 = vector.load %arg12[%c0_121, %c12_122] : memref<32x25xf32, #tpu.memory_space<vmem>>, vector<32x1xf32>
    %325 = vector.extract_strided_slice %313 {offsets = [0, 32], sizes = [32, 256], strides = [1, 1]} : vector<32x320xf32> to vector<32x256xf32>
    %326 = vector.broadcast %324 : vector<32x1xf32> to vector<32x256xf32>
    %327 = arith.mulf %325, %326 : vector<32x256xf32>
    %328 = arith.addf %323, %327 : vector<32x256xf32>
    %c0_123 = arith.constant 0 : index
    %c17_124 = arith.constant 17 : index
    %329 = vector.load %arg12[%c0_123, %c17_124] : memref<32x25xf32, #tpu.memory_space<vmem>>, vector<32x1xf32>
    %330 = vector.extract_strided_slice %313 {offsets = [0, 48], sizes = [32, 256], strides = [1, 1]} : vector<32x320xf32> to vector<32x256xf32>
    %331 = vector.broadcast %329 : vector<32x1xf32> to vector<32x256xf32>
    %332 = arith.mulf %330, %331 : vector<32x256xf32>
    %333 = arith.addf %328, %332 : vector<32x256xf32>
    %c0_125 = arith.constant 0 : index
    %c22_126 = arith.constant 22 : index
    %334 = vector.load %arg12[%c0_125, %c22_126] : memref<32x25xf32, #tpu.memory_space<vmem>>, vector<32x1xf32>
    %335 = vector.extract_strided_slice %313 {offsets = [0, 64], sizes = [32, 256], strides = [1, 1]} : vector<32x320xf32> to vector<32x256xf32>
    %336 = vector.broadcast %334 : vector<32x1xf32> to vector<32x256xf32>
    %337 = arith.mulf %335, %336 : vector<32x256xf32>
    %338 = arith.addf %333, %337 : vector<32x256xf32>
    %c0_127 = arith.constant 0 : index
    %c97_128 = arith.constant 97 : index
    %339 = vector.load %arg17[%c0_127, %c97_128] : memref<32x512xf32, #tpu.memory_space<vmem>>, vector<32x320xf32>
    %340 = vector.broadcast %52 : vector<1x320xf32> to vector<32x320xf32>
    %341 = arith.mulf %339, %340 : vector<32x320xf32>
    %c0_129 = arith.constant 0 : index
    %c3_130 = arith.constant 3 : index
    %342 = vector.load %arg12[%c0_129, %c3_130] : memref<32x25xf32, #tpu.memory_space<vmem>>, vector<32x1xf32>
    %343 = vector.extract_strided_slice %341 {offsets = [0, 0], sizes = [32, 256], strides = [1, 1]} : vector<32x320xf32> to vector<32x256xf32>
    %344 = vector.broadcast %342 : vector<32x1xf32> to vector<32x256xf32>
    %345 = arith.mulf %343, %344 : vector<32x256xf32>
    %346 = arith.addf %338, %345 : vector<32x256xf32>
    %c0_131 = arith.constant 0 : index
    %c8_132 = arith.constant 8 : index
    %347 = vector.load %arg12[%c0_131, %c8_132] : memref<32x25xf32, #tpu.memory_space<vmem>>, vector<32x1xf32>
    %348 = vector.extract_strided_slice %341 {offsets = [0, 16], sizes = [32, 256], strides = [1, 1]} : vector<32x320xf32> to vector<32x256xf32>
    %349 = vector.broadcast %347 : vector<32x1xf32> to vector<32x256xf32>
    %350 = arith.mulf %348, %349 : vector<32x256xf32>
    %351 = arith.addf %346, %350 : vector<32x256xf32>
    %c0_133 = arith.constant 0 : index
    %c13_134 = arith.constant 13 : index
    %352 = vector.load %arg12[%c0_133, %c13_134] : memref<32x25xf32, #tpu.memory_space<vmem>>, vector<32x1xf32>
    %353 = vector.extract_strided_slice %341 {offsets = [0, 32], sizes = [32, 256], strides = [1, 1]} : vector<32x320xf32> to vector<32x256xf32>
    %354 = vector.broadcast %352 : vector<32x1xf32> to vector<32x256xf32>
    %355 = arith.mulf %353, %354 : vector<32x256xf32>
    %356 = arith.addf %351, %355 : vector<32x256xf32>
    %c0_135 = arith.constant 0 : index
    %c18_136 = arith.constant 18 : index
    %357 = vector.load %arg12[%c0_135, %c18_136] : memref<32x25xf32, #tpu.memory_space<vmem>>, vector<32x1xf32>
    %358 = vector.extract_strided_slice %341 {offsets = [0, 48], sizes = [32, 256], strides = [1, 1]} : vector<32x320xf32> to vector<32x256xf32>
    %359 = vector.broadcast %357 : vector<32x1xf32> to vector<32x256xf32>
    %360 = arith.mulf %358, %359 : vector<32x256xf32>
    %361 = arith.addf %356, %360 : vector<32x256xf32>
    %c0_137 = arith.constant 0 : index
    %c23_138 = arith.constant 23 : index
    %362 = vector.load %arg12[%c0_137, %c23_138] : memref<32x25xf32, #tpu.memory_space<vmem>>, vector<32x1xf32>
    %363 = vector.extract_strided_slice %341 {offsets = [0, 64], sizes = [32, 256], strides = [1, 1]} : vector<32x320xf32> to vector<32x256xf32>
    %364 = vector.broadcast %362 : vector<32x1xf32> to vector<32x256xf32>
    %365 = arith.mulf %363, %364 : vector<32x256xf32>
    %366 = arith.addf %361, %365 : vector<32x256xf32>
    %c0_139 = arith.constant 0 : index
    %c98_140 = arith.constant 98 : index
    %367 = vector.load %arg17[%c0_139, %c98_140] : memref<32x512xf32, #tpu.memory_space<vmem>>, vector<32x320xf32>
    %368 = vector.broadcast %63 : vector<1x320xf32> to vector<32x320xf32>
    %369 = arith.mulf %367, %368 : vector<32x320xf32>
    %c0_141 = arith.constant 0 : index
    %c4_142 = arith.constant 4 : index
    %370 = vector.load %arg12[%c0_141, %c4_142] : memref<32x25xf32, #tpu.memory_space<vmem>>, vector<32x1xf32>
    %371 = vector.extract_strided_slice %369 {offsets = [0, 0], sizes = [32, 256], strides = [1, 1]} : vector<32x320xf32> to vector<32x256xf32>
    %372 = vector.broadcast %370 : vector<32x1xf32> to vector<32x256xf32>
    %373 = arith.mulf %371, %372 : vector<32x256xf32>
    %374 = arith.addf %366, %373 : vector<32x256xf32>
    %c0_143 = arith.constant 0 : index
    %c9_144 = arith.constant 9 : index
    %375 = vector.load %arg12[%c0_143, %c9_144] : memref<32x25xf32, #tpu.memory_space<vmem>>, vector<32x1xf32>
    %376 = vector.extract_strided_slice %369 {offsets = [0, 16], sizes = [32, 256], strides = [1, 1]} : vector<32x320xf32> to vector<32x256xf32>
    %377 = vector.broadcast %375 : vector<32x1xf32> to vector<32x256xf32>
    %378 = arith.mulf %376, %377 : vector<32x256xf32>
    %379 = arith.addf %374, %378 : vector<32x256xf32>
    %c0_145 = arith.constant 0 : index
    %c14_146 = arith.constant 14 : index
    %380 = vector.load %arg12[%c0_145, %c14_146] : memref<32x25xf32, #tpu.memory_space<vmem>>, vector<32x1xf32>
    %381 = vector.extract_strided_slice %369 {offsets = [0, 32], sizes = [32, 256], strides = [1, 1]} : vector<32x320xf32> to vector<32x256xf32>
    %382 = vector.broadcast %380 : vector<32x1xf32> to vector<32x256xf32>
    %383 = arith.mulf %381, %382 : vector<32x256xf32>
    %384 = arith.addf %379, %383 : vector<32x256xf32>
    %c0_147 = arith.constant 0 : index
    %c19_148 = arith.constant 19 : index
    %385 = vector.load %arg12[%c0_147, %c19_148] : memref<32x25xf32, #tpu.memory_space<vmem>>, vector<32x1xf32>
    %386 = vector.extract_strided_slice %369 {offsets = [0, 48], sizes = [32, 256], strides = [1, 1]} : vector<32x320xf32> to vector<32x256xf32>
    %387 = vector.broadcast %385 : vector<32x1xf32> to vector<32x256xf32>
    %388 = arith.mulf %386, %387 : vector<32x256xf32>
    %389 = arith.addf %384, %388 : vector<32x256xf32>
    %c0_149 = arith.constant 0 : index
    %c24_150 = arith.constant 24 : index
    %390 = vector.load %arg12[%c0_149, %c24_150] : memref<32x25xf32, #tpu.memory_space<vmem>>, vector<32x1xf32>
    %391 = vector.extract_strided_slice %369 {offsets = [0, 64], sizes = [32, 256], strides = [1, 1]} : vector<32x320xf32> to vector<32x256xf32>
    %392 = vector.broadcast %390 : vector<32x1xf32> to vector<32x256xf32>
    %393 = arith.mulf %391, %392 : vector<32x256xf32>
    %394 = arith.addf %389, %393 : vector<32x256xf32>
    %c0_151 = arith.constant 0 : index
    %c0_152 = arith.constant 0 : index
    %395 = vector.load %arg13[%c0_151, %c0_152] : memref<32x1xf32, #tpu.memory_space<vmem>>, vector<32x1xf32>
    %396 = vector.broadcast %395 : vector<32x1xf32> to vector<32x256xf32>
    %397 = arith.mulf %394, %396 : vector<32x256xf32>
    %c0_153 = arith.constant 0 : index
    %c0_154 = arith.constant 0 : index
    %398 = vector.load %arg14[%c0_153, %c0_154] : memref<32x1xf32, #tpu.memory_space<vmem>>, vector<32x1xf32>
    %399 = vector.broadcast %398 : vector<32x1xf32> to vector<32x256xf32>
    %400 = arith.addf %397, %399 : vector<32x256xf32>
    %401 = vector.extract_strided_slice %1 {offsets = [0, 0], sizes = [32, 256], strides = [1, 1]} : vector<64x256xf32> to vector<32x256xf32>
    %402 = arith.addf %250, %401 : vector<32x256xf32>
    %c0_155 = arith.constant 0 : index
    %c0_156 = arith.constant 0 : index
    %c0_157 = arith.constant 0 : index
    %403 = vector.load %arg15[%c0_155, %c0_156, %c0_157] : memref<1x64x256xf32, #tpu.memory_space<vmem>>, vector<1x32x256xf32>
    %404 = vector.shape_cast %403 : vector<1x32x256xf32> to vector<32x256xf32>
    %405 = vector.shape_cast %402 : vector<32x256xf32> to vector<1x32x256xf32>
    tpu.vector_store %arg15[%c0_155, %c0_156, %c0_157], %405 {strides = array<i32>} : memref<1x64x256xf32, #tpu.memory_space<vmem>>, vector<1x32x256xf32>,
    %406 = vector.extract_strided_slice %1 {offsets = [32, 0], sizes = [32, 256], strides = [1, 1]} : vector<64x256xf32> to vector<32x256xf32>
    %407 = arith.addf %400, %406 : vector<32x256xf32>
    %c0_158 = arith.constant 0 : index
    %c32 = arith.constant 32 : index
    %c0_159 = arith.constant 0 : index
    %408 = vector.load %arg15[%c0_158, %c32, %c0_159] : memref<1x64x256xf32, #tpu.memory_space<vmem>>, vector<1x32x256xf32>
    %409 = vector.shape_cast %408 : vector<1x32x256xf32> to vector<32x256xf32>
    %410 = vector.shape_cast %407 : vector<32x256xf32> to vector<1x32x256xf32>
    tpu.vector_store %arg15[%c0_158, %c32, %c0_159], %410 {strides = array<i32>} : memref<1x64x256xf32, #tpu.memory_space<vmem>>, vector<1x32x256xf32>,
    return
  }
  func.func @transform_0(%arg0: i32) -> (i32, i32, i32) {
    %c0_i32 = arith.constant 0 : i32
    %c0_i32_0 = arith.constant 0 : i32
    %c0_i32_1 = arith.constant 0 : i32
    return %arg0, %c0_i32, %c0_i32_0 : i32, i32, i32
  }
  func.func @transform_1(%arg0: i32) -> (i32, i32) {
    %c0_i32 = arith.constant 0 : i32
    %c0_i32_0 = arith.constant 0 : i32
    %c0_i32_1 = arith.constant 0 : i32
    return %c0_i32, %c0_i32_0 : i32, i32
  }
  func.func @transform_2(%arg0: i32) -> (i32, i32) {
    %c0_i32 = arith.constant 0 : i32
    %c0_i32_0 = arith.constant 0 : i32
    %c0_i32_1 = arith.constant 0 : i32
    return %c0_i32, %c0_i32_0 : i32, i32
  }
  func.func @transform_3(%arg0: i32) -> (i32, i32) {
    %c0_i32 = arith.constant 0 : i32
    %c0_i32_0 = arith.constant 0 : i32
    %c0_i32_1 = arith.constant 0 : i32
    return %c0_i32, %c0_i32_0 : i32, i32
  }
  func.func @transform_4(%arg0: i32) -> (i32, i32) {
    %c0_i32 = arith.constant 0 : i32
    %c0_i32_0 = arith.constant 0 : i32
    %c0_i32_1 = arith.constant 0 : i32
    return %c0_i32, %c0_i32_0 : i32, i32
  }
  func.func @transform_5(%arg0: i32) -> (i32, i32) {
    %c0_i32 = arith.constant 0 : i32
    %c0_i32_0 = arith.constant 0 : i32
    %c0_i32_1 = arith.constant 0 : i32
    return %c0_i32, %c0_i32_0 : i32, i32
  }
  func.func @transform_6(%arg0: i32) -> (i32, i32) {
    %c0_i32 = arith.constant 0 : i32
    %c0_i32_0 = arith.constant 0 : i32
    %c0_i32_1 = arith.constant 0 : i32
    return %c0_i32, %c0_i32_0 : i32, i32
  }
  func.func @transform_7(%arg0: i32) -> (i32, i32) {
    %c0_i32 = arith.constant 0 : i32
    %c0_i32_0 = arith.constant 0 : i32
    %c0_i32_1 = arith.constant 0 : i32
    return %c0_i32, %c0_i32_0 : i32, i32
  }
  func.func @transform_8(%arg0: i32) -> (i32, i32) {
    %c0_i32 = arith.constant 0 : i32
    %c0_i32_0 = arith.constant 0 : i32
    %c0_i32_1 = arith.constant 0 : i32
    return %c0_i32, %c0_i32_0 : i32, i32
  }
  func.func @transform_9(%arg0: i32) -> (i32, i32) {
    %c0_i32 = arith.constant 0 : i32
    %c0_i32_0 = arith.constant 0 : i32
    %c0_i32_1 = arith.constant 0 : i32
    return %c0_i32, %c0_i32_0 : i32, i32
  }
  func.func @transform_10(%arg0: i32) -> (i32, i32) {
    %c0_i32 = arith.constant 0 : i32
    %c0_i32_0 = arith.constant 0 : i32
    %c0_i32_1 = arith.constant 0 : i32
    return %c0_i32, %c0_i32_0 : i32, i32
  }
  func.func @transform_11(%arg0: i32) -> (i32, i32) {
    %c0_i32 = arith.constant 0 : i32
    %c0_i32_0 = arith.constant 0 : i32
    %c0_i32_1 = arith.constant 0 : i32
    return %c0_i32, %c0_i32_0 : i32, i32
  }
  func.func @transform_12(%arg0: i32) -> (i32, i32) {
    %c0_i32 = arith.constant 0 : i32
    %c0_i32_0 = arith.constant 0 : i32
    %c0_i32_1 = arith.constant 0 : i32
    return %c0_i32, %c0_i32_0 : i32, i32
  }
  func.func @transform_13(%arg0: i32) -> (i32, i32) {
    %c0_i32 = arith.constant 0 : i32
    %c0_i32_0 = arith.constant 0 : i32
    %c0_i32_1 = arith.constant 0 : i32
    return %c0_i32, %c0_i32_0 : i32, i32
  }
  func.func @transform_14(%arg0: i32) -> (i32, i32, i32) {
    %c0_i32 = arith.constant 0 : i32
    %c0_i32_0 = arith.constant 0 : i32
    %c0_i32_1 = arith.constant 0 : i32
    return %arg0, %c0_i32, %c0_i32_0 : i32, i32, i32
  }
}

</mosaic_0001>

<llo_original>
// kernel: ghost_bottleneck_forward.1
$region0: #{ghost_bottleneck_forward.1}
  #allocation0 [shape = 'u32[]', space=smem, size = 0x4, offset = 0x4, fixed_abs, tag = 'smem constant byte address 0x4 - core index']
  #allocation1 [shape = 'u32[144,128]{1,0:T(1,128)}', space=vmem, size = 0x12000, scoped, tag = 'internal scratch']
  #allocation2 [shape = 'f32[16,512]{1,0:T(8,128)}', space=vmem, size = 0x8000, scoped, tag = 'scratch operand']
  #allocation3 [shape = 'f32[32,512]{1,0:T(8,128)}', space=vmem, size = 0x10000, scoped, tag = 'scratch operand']
  %s0 = inlined_call_operand.vmem [shape: f32[2,64,256], index: 0, kind: input, shape index: {}]
  %s1 = inlined_call_operand.vmem [shape: bf16[16,64], index: 1, kind: input, shape index: {}]
  %s2 = inlined_call_operand.vmem [shape: f32[16,1], index: 2, kind: input, shape index: {}]
  %s3 = inlined_call_operand.vmem [shape: f32[16,1], index: 3, kind: input, shape index: {}]
  %s4 = inlined_call_operand.vmem [shape: f32[16,25], index: 4, kind: input, shape index: {}]
  %s5 = inlined_call_operand.vmem [shape: f32[16,1], index: 5, kind: input, shape index: {}]
  %s6 = inlined_call_operand.vmem [shape: f32[16,1], index: 6, kind: input, shape index: {}]
  %s7 = inlined_call_operand.vmem [shape: bf16[32,16], index: 7, kind: input, shape index: {}]
  %s8 = inlined_call_operand.vmem [shape: bf16[32,16], index: 8, kind: input, shape index: {}]
  %s9 = inlined_call_operand.vmem [shape: f32[32,1], index: 9, kind: input, shape index: {}]
  %s10 = inlined_call_operand.vmem [shape: f32[32,1], index: 10, kind: input, shape index: {}]
  %s11 = inlined_call_operand.vmem [shape: f32[32,25], index: 11, kind: input, shape index: {}]
  %s12 = inlined_call_operand.vmem [shape: f32[32,1], index: 12, kind: input, shape index: {}]
  %s13 = inlined_call_operand.vmem [shape: f32[32,1], index: 13, kind: input, shape index: {}]
  %s14 = inlined_call_operand.vmem [shape: f32[2,64,256], index: 14, kind: output, shape index: {}]
  %s15 = sld [smem:[#allocation0]]
  $region89: #{ghost_bottleneck_forward.1} parent=0
    _
  %s17 = ssub.s32 1, %s15
  %s18 = scalar_select 0, %s17, %s15
  loop: start=0, step=1, limit=4
  $region2: #{ghost_bottleneck_forward.1} parent=0 // loop_pre_header
    _
  $region3: #{ghost_bottleneck_forward.1} parent=0 // loop_header
    %s20 = sphi 0, %s24
    %p21 = scmp.ge.s32.totalorder %s20, 4
    %s30 = sphi 0, %s32
    %s33 = sphi 0, %s30
    %s34 = sphi 0, %s33
    %s50 = sphi 0, %s34
    %s54 = sphi 0, %s54
    %s56 = sphi 0, %s54
    %s57 = sphi 0, %s56
    %s71 = sphi 0, %s57
    %s75 = sphi 0, %s75
    %s77 = sphi 0, %s75
    %s78 = sphi 0, %s77
    %s92 = sphi 0, %s78
    %s96 = sphi 0, %s96
    %s98 = sphi 0, %s96
    %s99 = sphi 0, %s98
    %s113 = sphi 0, %s99
    %s117 = sphi 0, %s117
    %s119 = sphi 0, %s117
    %s120 = sphi 0, %s119
    %s134 = sphi 0, %s120
    %s138 = sphi 0, %s138
    %s140 = sphi 0, %s138
    %s141 = sphi 0, %s140
    %s155 = sphi 0, %s141
    %s159 = sphi 0, %s159
    %s161 = sphi 0, %s159
    %s162 = sphi 0, %s161
    %s176 = sphi 0, %s162
    %s180 = sphi 0, %s180
    %s182 = sphi 0, %s180
    %s183 = sphi 0, %s182
    %s197 = sphi 0, %s183
    %s201 = sphi 0, %s201
    %s203 = sphi 0, %s201
    %s204 = sphi 0, %s203
    %s218 = sphi 0, %s204
    %s222 = sphi 0, %s222
    %s224 = sphi 0, %s222
    %s225 = sphi 0, %s224
    %s239 = sphi 0, %s225
    %s243 = sphi 0, %s243
    %s245 = sphi 0, %s243
    %s246 = sphi 0, %s245
    %s260 = sphi 0, %s246
    %s264 = sphi 0, %s264
    %s266 = sphi 0, %s264
    %s267 = sphi 0, %s266
    %s281 = sphi 0, %s267
    %s285 = sphi 0, %s285
    %s287 = sphi 0, %s285
    %s288 = sphi 0, %s287
    %s302 = sphi 0, %s288
    %s306 = sphi 0, %s306
    %s308 = sphi 0, %s306
    %s309 = sphi 0, %s308
    %s323 = sphi 0, %s309
    %s329 = sphi 0, %s331
    %s332 = sphi 0, %s329
    %s333 = sphi 0, %s332
    %s349 = sphi 0, %s333
  $region4: #{ghost_bottleneck_forward.1} parent=0 // loop_header_branch
    %23 = sbr.rel (%p21) target = $region8
  $region5: #{ghost_bottleneck_forward.1} parent=0 // loop_body
    %s25 = ssub.s32 %s20, 1
    %s26 = ssub.s32 %s20, 2
    %s27 = sadd.s32 %s20, 1
    %s28 = ssub.s32 %s20, %s27
    %p29 = scmp.eq.s32.totalorder %s28, 0
    %s31 = sadd.s32 %s30, 1
    %s32 = scalar_select %p29, %s30, %s31
    %p35 = pneg %p29
    %p36 = scmp.eq.s32.totalorder %s20, 1
    %p37 = por %p35, %p36
    %p38 = scmp.ne.s32.totalorder %s30, %s33
    %p39 = scmp.eq.s32.totalorder %s20, 0
    %p40 = por %p38, %p39
    %p41 = scmp.ne.s32.totalorder %s30, %s33
    %p42 = scmp.eq.s32.totalorder %s25, 1
    %p43 = por %p41, %p42
    %p44 = scmp.ne.s32.totalorder %s33, %s34
    %p45 = scmp.eq.s32.totalorder %s25, 0
    %p46 = por %p44, %p45
    %p47 = scmp.ne.s32.totalorder %s33, %s34
    %p48 = scmp.eq.s32.totalorder %s26, 1
    %p49 = por %p47, %p48
    %p51 = scmp.ne.s32.totalorder %s34, %s50
    %p52 = scmp.eq.s32.totalorder %s26, 0
    %p53 = por %p51, %p52
    %s55 = sadd.s32 %s54, 1
    %p58 = scmp.eq.s32.totalorder %s20, 1
    %p59 = scmp.ne.s32.totalorder %s54, %s56
    %p60 = scmp.eq.s32.totalorder %s20, 0
    %p61 = por %p59, %p60
    %p62 = scmp.ne.s32.totalorder %s54, %s56
    %p63 = scmp.eq.s32.totalorder %s25, 1
    %p64 = por %p62, %p63
    %p65 = scmp.ne.s32.totalorder %s56, %s57
    %p66 = scmp.eq.s32.totalorder %s25, 0
    %p67 = por %p65, %p66
    %p68 = scmp.ne.s32.totalorder %s56, %s57
    %p69 = scmp.eq.s32.totalorder %s26, 1
    %p70 = por %p68, %p69
    %p72 = scmp.ne.s32.totalorder %s57, %s71
    %p73 = scmp.eq.s32.totalorder %s26, 0
    %p74 = por %p72, %p73
    %s76 = sadd.s32 %s75, 1
    %p79 = scmp.eq.s32.totalorder %s20, 1
    %p80 = scmp.ne.s32.totalorder %s75, %s77
    %p81 = scmp.eq.s32.totalorder %s20, 0
    %p82 = por %p80, %p81
    %p83 = scmp.ne.s32.totalorder %s75, %s77
    %p84 = scmp.eq.s32.totalorder %s25, 1
    %p85 = por %p83, %p84
    %p86 = scmp.ne.s32.totalorder %s77, %s78
    %p87 = scmp.eq.s32.totalorder %s25, 0
    %p88 = por %p86, %p87
    %p89 = scmp.ne.s32.totalorder %s77, %s78
    %p90 = scmp.eq.s32.totalorder %s26, 1
    %p91 = por %p89, %p90
    %p93 = scmp.ne.s32.totalorder %s78, %s92
    %p94 = scmp.eq.s32.totalorder %s26, 0
    %p95 = por %p93, %p94
    %s97 = sadd.s32 %s96, 1
    %p100 = scmp.eq.s32.totalorder %s20, 1
    %p101 = scmp.ne.s32.totalorder %s96, %s98
    %p102 = scmp.eq.s32.totalorder %s20, 0
    %p103 = por %p101, %p102
    %p104 = scmp.ne.s32.totalorder %s96, %s98
    %p105 = scmp.eq.s32.totalorder %s25, 1
    %p106 = por %p104, %p105
    %p107 = scmp.ne.s32.totalorder %s98, %s99
    %p108 = scmp.eq.s32.totalorder %s25, 0
    %p109 = por %p107, %p108
    %p110 = scmp.ne.s32.totalorder %s98, %s99
    %p111 = scmp.eq.s32.totalorder %s26, 1
    %p112 = por %p110, %p111
    %p114 = scmp.ne.s32.totalorder %s99, %s113
    %p115 = scmp.eq.s32.totalorder %s26, 0
    %p116 = por %p114, %p115
    %s118 = sadd.s32 %s117, 1
    %p121 = scmp.eq.s32.totalorder %s20, 1
    %p122 = scmp.ne.s32.totalorder %s117, %s119
    %p123 = scmp.eq.s32.totalorder %s20, 0
    %p124 = por %p122, %p123
    %p125 = scmp.ne.s32.totalorder %s117, %s119
    %p126 = scmp.eq.s32.totalorder %s25, 1
    %p127 = por %p125, %p126
    %p128 = scmp.ne.s32.totalorder %s119, %s120
    %p129 = scmp.eq.s32.totalorder %s25, 0
    %p130 = por %p128, %p129
    %p131 = scmp.ne.s32.totalorder %s119, %s120
    %p132 = scmp.eq.s32.totalorder %s26, 1
    %p133 = por %p131, %p132
    %p135 = scmp.ne.s32.totalorder %s120, %s134
    %p136 = scmp.eq.s32.totalorder %s26, 0
    %p137 = por %p135, %p136
    %s139 = sadd.s32 %s138, 1
    %p142 = scmp.eq.s32.totalorder %s20, 1
    %p143 = scmp.ne.s32.totalorder %s138, %s140
    %p144 = scmp.eq.s32.totalorder %s20, 0
    %p145 = por %p143, %p144
    %p146 = scmp.ne.s32.totalorder %s138, %s140
    %p147 = scmp.eq.s32.totalorder %s25, 1
    %p148 = por %p146, %p147
    %p149 = scmp.ne.s32.totalorder %s140, %s141
    %p150 = scmp.eq.s32.totalorder %s25, 0
    %p151 = por %p149, %p150
    %p152 = scmp.ne.s32.totalorder %s140, %s141
    %p153 = scmp.eq.s32.totalorder %s26, 1
    %p154 = por %p152, %p153
    %p156 = scmp.ne.s32.totalorder %s141, %s155
    %p157 = scmp.eq.s32.totalorder %s26, 0
    %p158 = por %p156, %p157
    %s160 = sadd.s32 %s159, 1
    %p163 = scmp.eq.s32.totalorder %s20, 1
    %p164 = scmp.ne.s32.totalorder %s159, %s161
    %p165 = scmp.eq.s32.totalorder %s20, 0
    %p166 = por %p164, %p165
    %p167 = scmp.ne.s32.totalorder %s159, %s161
    %p168 = scmp.eq.s32.totalorder %s25, 1
    %p169 = por %p167, %p168
    %p170 = scmp.ne.s32.totalorder %s161, %s162
    %p171 = scmp.eq.s32.totalorder %s25, 0
    %p172 = por %p170, %p171
    %p173 = scmp.ne.s32.totalorder %s161, %s162
    %p174 = scmp.eq.s32.totalorder %s26, 1
    %p175 = por %p173, %p174
    %p177 = scmp.ne.s32.totalorder %s162, %s176
    %p178 = scmp.eq.s32.totalorder %s26, 0
    %p179 = por %p177, %p178
    %s181 = sadd.s32 %s180, 1
    %p184 = scmp.eq.s32.totalorder %s20, 1
    %p185 = scmp.ne.s32.totalorder %s180, %s182
    %p186 = scmp.eq.s32.totalorder %s20, 0
    %p187 = por %p185, %p186
    %p188 = scmp.ne.s32.totalorder %s180, %s182
    %p189 = scmp.eq.s32.totalorder %s25, 1
    %p190 = por %p188, %p189
    %p191 = scmp.ne.s32.totalorder %s182, %s183
    %p192 = scmp.eq.s32.totalorder %s25, 0
    %p193 = por %p191, %p192
    %p194 = scmp.ne.s32.totalorder %s182, %s183
    %p195 = scmp.eq.s32.totalorder %s26, 1
    %p196 = por %p194, %p195
    %p198 = scmp.ne.s32.totalorder %s183, %s197
    %p199 = scmp.eq.s32.totalorder %s26, 0
    %p200 = por %p198, %p199
    %s202 = sadd.s32 %s201, 1
    %p205 = scmp.eq.s32.totalorder %s20, 1
    %p206 = scmp.ne.s32.totalorder %s201, %s203
    %p207 = scmp.eq.s32.totalorder %s20, 0
    %p208 = por %p206, %p207
    %p209 = scmp.ne.s32.totalorder %s201, %s203
    %p210 = scmp.eq.s32.totalorder %s25, 1
    %p211 = por %p209, %p210
    %p212 = scmp.ne.s32.totalorder %s203, %s204
    %p213 = scmp.eq.s32.totalorder %s25, 0
    %p214 = por %p212, %p213
    %p215 = scmp.ne.s32.totalorder %s203, %s204
    %p216 = scmp.eq.s32.totalorder %s26, 1
    %p217 = por %p215, %p216
    %p219 = scmp.ne.s32.totalorder %s204, %s218
    %p220 = scmp.eq.s32.totalorder %s26, 0
    %p221 = por %p219, %p220
    %s223 = sadd.s32 %s222, 1
    %p226 = scmp.eq.s32.totalorder %s20, 1
    %p227 = scmp.ne.s32.totalorder %s222, %s224
    %p228 = scmp.eq.s32.totalorder %s20, 0
    %p229 = por %p227, %p228
    %p230 = scmp.ne.s32.totalorder %s222, %s224
    %p231 = scmp.eq.s32.totalorder %s25, 1
    %p232 = por %p230, %p231
    %p233 = scmp.ne.s32.totalorder %s224, %s225
    %p234 = scmp.eq.s32.totalorder %s25, 0
    %p235 = por %p233, %p234
    %p236 = scmp.ne.s32.totalorder %s224, %s225
    %p237 = scmp.eq.s32.totalorder %s26, 1
    %p238 = por %p236, %p237
    %p240 = scmp.ne.s32.totalorder %s225, %s239
    %p241 = scmp.eq.s32.totalorder %s26, 0
    %p242 = por %p240, %p241
    %s244 = sadd.s32 %s243, 1
    %p247 = scmp.eq.s32.totalorder %s20, 1
    %p248 = scmp.ne.s32.totalorder %s243, %s245
    %p249 = scmp.eq.s32.totalorder %s20, 0
    %p250 = por %p248, %p249
    %p251 = scmp.ne.s32.totalorder %s243, %s245
    %p252 = scmp.eq.s32.totalorder %s25, 1
    %p253 = por %p251, %p252
    %p254 = scmp.ne.s32.totalorder %s245, %s246
    %p255 = scmp.eq.s32.totalorder %s25, 0
    %p256 = por %p254, %p255
    %p257 = scmp.ne.s32.totalorder %s245, %s246
    %p258 = scmp.eq.s32.totalorder %s26, 1
    %p259 = por %p257, %p258
    %p261 = scmp.ne.s32.totalorder %s246, %s260
    %p262 = scmp.eq.s32.totalorder %s26, 0
    %p263 = por %p261, %p262
    %s265 = sadd.s32 %s264, 1
    %p268 = scmp.eq.s32.totalorder %s20, 1
    %p269 = scmp.ne.s32.totalorder %s264, %s266
    %p270 = scmp.eq.s32.totalorder %s20, 0
    %p271 = por %p269, %p270
    %p272 = scmp.ne.s32.totalorder %s264, %s266
    %p273 = scmp.eq.s32.totalorder %s25, 1
    %p274 = por %p272, %p273
    %p275 = scmp.ne.s32.totalorder %s266, %s267
    %p276 = scmp.eq.s32.totalorder %s25, 0
    %p277 = por %p275, %p276
    %p278 = scmp.ne.s32.totalorder %s266, %s267
    %p279 = scmp.eq.s32.totalorder %s26, 1
    %p280 = por %p278, %p279
    %p282 = scmp.ne.s32.totalorder %s267, %s281
    %p283 = scmp.eq.s32.totalorder %s26, 0
    %p284 = por %p282, %p283
    %s286 = sadd.s32 %s285, 1
    %p289 = scmp.eq.s32.totalorder %s20, 1
    %p290 = scmp.ne.s32.totalorder %s285, %s287
    %p291 = scmp.eq.s32.totalorder %s20, 0
    %p292 = por %p290, %p291
    %p293 = scmp.ne.s32.totalorder %s285, %s287
    %p294 = scmp.eq.s32.totalorder %s25, 1
    %p295 = por %p293, %p294
    %p296 = scmp.ne.s32.totalorder %s287, %s288
    %p297 = scmp.eq.s32.totalorder %s25, 0
    %p298 = por %p296, %p297
    %p299 = scmp.ne.s32.totalorder %s287, %s288
    %p300 = scmp.eq.s32.totalorder %s26, 1
    %p301 = por %p299, %p300
    %p303 = scmp.ne.s32.totalorder %s288, %s302
    %p304 = scmp.eq.s32.totalorder %s26, 0
    %p305 = por %p303, %p304
    %s307 = sadd.s32 %s306, 1
    %p310 = scmp.eq.s32.totalorder %s20, 1
    %p311 = scmp.ne.s32.totalorder %s306, %s308
    %p312 = scmp.eq.s32.totalorder %s20, 0
    %p313 = por %p311, %p312
    %p314 = scmp.ne.s32.totalorder %s306, %s308
    %p315 = scmp.eq.s32.totalorder %s25, 1
    %p316 = por %p314, %p315
    %p317 = scmp.ne.s32.totalorder %s308, %s309
    %p318 = scmp.eq.s32.totalorder %s25, 0
    %p319 = por %p317, %p318
    %p320 = scmp.ne.s32.totalorder %s308, %s309
    %p321 = scmp.eq.s32.totalorder %s26, 1
    %p322 = por %p320, %p321
    %p324 = scmp.ne.s32.totalorder %s309, %s323
    %p325 = scmp.eq.s32.totalorder %s26, 0
    %p326 = por %p324, %p325
    %s327 = ssub.s32 %s20, %s27
    %p328 = scmp.eq.s32.totalorder %s327, 0
    %s330 = sadd.s32 %s329, 1
    %s331 = scalar_select %p328, %s329, %s330
    %p334 = pneg %p328
    %p335 = scmp.eq.s32.totalorder %s20, 1
    %p336 = por %p334, %p335
    %p337 = scmp.ne.s32.totalorder %s329, %s332
    %p338 = scmp.eq.s32.totalorder %s20, 0
    %p339 = por %p337, %p338
    %p340 = scmp.ne.s32.totalorder %s329, %s332
    %p341 = scmp.eq.s32.totalorder %s25, 1
    %p342 = por %p340, %p341
    %p343 = scmp.ne.s32.totalorder %s332, %s333
    %p344 = scmp.eq.s32.totalorder %s25, 0
    %p345 = por %p343, %p344
    %p346 = scmp.ne.s32.totalorder %s332, %s333
    %p347 = scmp.eq.s32.totalorder %s26, 1
    %p348 = por %p346, %p347
    %p350 = scmp.ne.s32.totalorder %s333, %s349
    %p351 = scmp.eq.s32.totalorder %s26, 0
    %p352 = por %p350, %p351
    %p353 = scmp.le.s32.totalorder 1, %s20
    %p354 = scmp.lt.s32.totalorder %s20, 3
    %p355 = pnand %p353, %p354
    %p356 = pneg %p355
    // Predicated region
    $region9: #{ghost_bottleneck_forward.1} parent=5 // pred_check
      _
    $region10: #{ghost_bottleneck_forward.1} parent=5 // pred_check_branch
      %358 = sbr.rel (%p355) target = $region12
    $region11: #{ghost_bottleneck_forward.1} parent=5 // pred_region
      %s359 = ssub.s32 %s20, 1
      // Predicated region
      $region13: #{ghost_bottleneck_forward.1} parent=11 // pred_check
        %p360 = pneg %p67
      $region14: #{ghost_bottleneck_forward.1} parent=11 // pred_check_branch
        %362 = sbr.rel (%p360) target = $region16
      $region15: #{ghost_bottleneck_forward.1} parent=11 // pred_region
        _
      $region16: #{ghost_bottleneck_forward.1} parent=11 // pred_fallthru
        _
      // Predicated region
      $region17: #{ghost_bottleneck_forward.1} parent=11 // pred_check
        %p363 = pneg %p88
      $region18: #{ghost_bottleneck_forward.1} parent=11 // pred_check_branch
        %365 = sbr.rel (%p363) target = $region20
      $region19: #{ghost_bottleneck_forward.1} parent=11 // pred_region
        _
      $region20: #{ghost_bottleneck_forward.1} parent=11 // pred_fallthru
        _
      // Predicated region
      $region21: #{ghost_bottleneck_forward.1} parent=11 // pred_check
        %p366 = pneg %p109
      $region22: #{ghost_bottleneck_forward.1} parent=11 // pred_check_branch
        %368 = sbr.rel (%p366) target = $region24
      $region23: #{ghost_bottleneck_forward.1} parent=11 // pred_region
        _
      $region24: #{ghost_bottleneck_forward.1} parent=11 // pred_fallthru
        _
      // Predicated region
      $region25: #{ghost_bottleneck_forward.1} parent=11 // pred_check
        %p369 = pneg %p130
      $region26: #{ghost_bottleneck_forward.1} parent=11 // pred_check_branch
        %371 = sbr.rel (%p369) target = $region28
      $region27: #{ghost_bottleneck_forward.1} parent=11 // pred_region
        _
      $region28: #{ghost_bottleneck_forward.1} parent=11 // pred_fallthru
        _
      // Predicated region
      $region29: #{ghost_bottleneck_forward.1} parent=11 // pred_check
        %p372 = pneg %p151
      $region30: #{ghost_bottleneck_forward.1} parent=11 // pred_check_branch
        %374 = sbr.rel (%p372) target = $region32
      $region31: #{ghost_bottleneck_forward.1} parent=11 // pred_region
        _
      $region32: #{ghost_bottleneck_forward.1} parent=11 // pred_fallthru
        _
      // Predicated region
      $region33: #{ghost_bottleneck_forward.1} parent=11 // pred_check
        %p375 = pneg %p172
      $region34: #{ghost_bottleneck_forward.1} parent=11 // pred_check_branch
        %377 = sbr.rel (%p375) target = $region36
      $region35: #{ghost_bottleneck_forward.1} parent=11 // pred_region
        _
      $region36: #{ghost_bottleneck_forward.1} parent=11 // pred_fallthru
        _
      // Predicated region
      $region37: #{ghost_bottleneck_forward.1} parent=11 // pred_check
        %p378 = pneg %p193
      $region38: #{ghost_bottleneck_forward.1} parent=11 // pred_check_branch
        %380 = sbr.rel (%p378) target = $region40
      $region39: #{ghost_bottleneck_forward.1} parent=11 // pred_region
        _
      $region40: #{ghost_bottleneck_forward.1} parent=11 // pred_fallthru
        _
      // Predicated region
      $region41: #{ghost_bottleneck_forward.1} parent=11 // pred_check
        %p381 = pneg %p214
      $region42: #{ghost_bottleneck_forward.1} parent=11 // pred_check_branch
        %383 = sbr.rel (%p381) target = $region44
      $region43: #{ghost_bottleneck_forward.1} parent=11 // pred_region
        _
      $region44: #{ghost_bottleneck_forward.1} parent=11 // pred_fallthru
        _
      // Predicated region
      $region45: #{ghost_bottleneck_forward.1} parent=11 // pred_check
        %p384 = pneg %p235
      $region46: #{ghost_bottleneck_forward.1} parent=11 // pred_check_branch
        %386 = sbr.rel (%p384) target = $region48
      $region47: #{ghost_bottleneck_forward.1} parent=11 // pred_region
        _
      $region48: #{ghost_bottleneck_forward.1} parent=11 // pred_fallthru
        _
      // Predicated region
      $region49: #{ghost_bottleneck_forward.1} parent=11 // pred_check
        %p387 = pneg %p256
      $region50: #{ghost_bottleneck_forward.1} parent=11 // pred_check_branch
        %389 = sbr.rel (%p387) target = $region52
      $region51: #{ghost_bottleneck_forward.1} parent=11 // pred_region
        _
      $region52: #{ghost_bottleneck_forward.1} parent=11 // pred_fallthru
        _
      // Predicated region
      $region53: #{ghost_bottleneck_forward.1} parent=11 // pred_check
        %p390 = pneg %p277
      $region54: #{ghost_bottleneck_forward.1} parent=11 // pred_check_branch
        %392 = sbr.rel (%p390) target = $region56
      $region55: #{ghost_bottleneck_forward.1} parent=11 // pred_region
        _
      $region56: #{ghost_bottleneck_forward.1} parent=11 // pred_fallthru
        _
      // Predicated region
      $region57: #{ghost_bottleneck_forward.1} parent=11 // pred_check
        %p393 = pneg %p298
      $region58: #{ghost_bottleneck_forward.1} parent=11 // pred_check_branch
        %395 = sbr.rel (%p393) target = $region60
      $region59: #{ghost_bottleneck_forward.1} parent=11 // pred_region
        _
      $region60: #{ghost_bottleneck_forward.1} parent=11 // pred_fallthru
        _
      // Predicated region
      $region61: #{ghost_bottleneck_forward.1} parent=11 // pred_check
        %p396 = pneg %p319
      $region62: #{ghost_bottleneck_forward.1} parent=11 // pred_check_branch
        %398 = sbr.rel (%p396) target = $region64
      $region63: #{ghost_bottleneck_forward.1} parent=11 // pred_region
        _
      $region64: #{ghost_bottleneck_forward.1} parent=11 // pred_fallthru
        _
    $region12: #{ghost_bottleneck_forward.1} parent=5 // pred_fallthru
      _
    %p399 = scmp.lt.s32.totalorder %s20, 2
    // Predicated region
    $region65: #{ghost_bottleneck_forward.1} parent=5 // pred_check
      %p400 = pneg %p399
    $region66: #{ghost_bottleneck_forward.1} parent=5 // pred_check_branch
      %402 = sbr.rel (%p400) target = $region68
    $region67: #{ghost_bottleneck_forward.1} parent=5 // pred_region
      // Predicated region
      $region69: #{ghost_bottleneck_forward.1} parent=67 // pred_check
        %p403 = pneg %p40
      $region70: #{ghost_bottleneck_forward.1} parent=67 // pred_check_branch
        %405 = sbr.rel (%p403) target = $region72
      $region71: #{ghost_bottleneck_forward.1} parent=67 // pred_region
        %p406 = scmp.lt.s32.totalorder %s20, 1
        %s407 = scalar_select %p406, %s20, 1
        %s408 = smul.addr %s407, 16
        %s409 = smul.addr %s408, 8
        %s410 = scalar_lea.vmem %s0, %s409
      $region72: #{ghost_bottleneck_forward.1} parent=67 // pred_fallthru
        _
    $region68: #{ghost_bottleneck_forward.1} parent=5 // pred_fallthru
      _
    %p411 = scmp.le.s32.totalorder 1, %s20
    %p412 = scmp.lt.s32.totalorder %s20, 3
    %p413 = pnand %p411, %p412
    %p414 = pneg %p413
    // Predicated region
    $region73: #{ghost_bottleneck_forward.1} parent=5 // pred_check
      _
    $region74: #{ghost_bottleneck_forward.1} parent=5 // pred_check_branch
      %416 = sbr.rel (%p413) target = $region76
    $region75: #{ghost_bottleneck_forward.1} parent=5 // pred_region
      %s417 = ssub.s32 %s20, 1
      %p418 = scmp.lt.s32.totalorder %s25, 1
      %s419 = scalar_select %p418, %s25, 1
      %s420 = smul.addr %s419, 16
      %s421 = smul.addr %s420, 8
      %s422 = scalar_lea.vmem %s0, %s421
      %p423 = pneg %p46
      %p424 = pneg %p43
      %p425 = pneg %p67
      %p426 = pneg %p64
      %p427 = pneg %p88
      %p428 = pneg %p85
      %p429 = pneg %p109
      %p430 = pneg %p106
      %p431 = pneg %p130
      %p432 = pneg %p127
      %p433 = pneg %p151
      %p434 = pneg %p148
      %p435 = pneg %p172
      %p436 = pneg %p169
      %p437 = pneg %p193
      %p438 = pneg %p190
      %p439 = pneg %p214
      %p440 = pneg %p211
      %p441 = pneg %p235
      %p442 = pneg %p232
      %p443 = pneg %p256
      %p444 = pneg %p253
      %p445 = pneg %p277
      %p446 = pneg %p274
      %p447 = pneg %p298
      %p448 = pneg %p295
      %p449 = pneg %p319
      %p450 = pneg %p316
      %p451 = pneg %p345
      %p452 = pneg %p342
      %p453 = scmp.lt.s32.totalorder %s25, 1
      %s454 = scalar_select %p453, %s25, 1
      %s455 = smul.addr %s454, 16
      %s456 = smul.addr %s455, 8
      %s457 = scalar_lea.vmem %s14, %s456
      %p458 = scmp.lt.s32.totalorder %s25, 1
      %s459 = scalar_select %p458, %s25, 1
      %s460 = smul.addr %s459, 16
      %s461 = smul.addr %s460, 8
      %s462 = scalar_lea.vmem %s0, %s461
      %p463 = scmp.lt.s32.totalorder %s25, 1
      %s464 = scalar_select %p463, %s25, 1
      %s465 = smul.addr %s464, 16
      %s466 = smul.addr %s465, 8
      %s467 = scalar_lea.vmem %s14, %s466
      %v469 = vld [vmem:[%s462] sm:$0xff]
      %v470 = vld [vmem:[%s462 + $0x8] sm:$0xff]
      %v471 = vld [vmem:[%s462 + $0x10] sm:$0xff]
      %v472 = vld [vmem:[%s462 + $0x18] sm:$0xff]
      %v473 = vld [vmem:[%s462 + $0x20] sm:$0xff]
      %v474 = vld [vmem:[%s462 + $0x28] sm:$0xff]
      %v475 = vld [vmem:[%s462 + $0x30] sm:$0xff]
      %v476 = vld [vmem:[%s462 + $0x38] sm:$0xff]
      %v477 = vld [vmem:[%s462 + $0x40] sm:$0xff]
      %v478 = vld [vmem:[%s462 + $0x48] sm:$0xff]
      %v479 = vld [vmem:[%s462 + $0x50] sm:$0xff]
      %v480 = vld [vmem:[%s462 + $0x58] sm:$0xff]
      %v481 = vld [vmem:[%s462 + $0x60] sm:$0xff]
      %v482 = vld [vmem:[%s462 + $0x68] sm:$0xff]
      %v483 = vld [vmem:[%s462 + $0x70] sm:$0xff]
      %v484 = vld [vmem:[%s462 + $0x78] sm:$0xff]
      %v485 = vpack.c.bf16 %v471, %v469
      %v486 = vpack.c.bf16 %v472, %v470
      %v487 = vpack.c.bf16 %v475, %v473
      %v488 = vpack.c.bf16 %v476, %v474
      %v489 = vpack.c.bf16 %v479, %v477
      %v490 = vpack.c.bf16 %v480, %v478
      %v491 = vpack.c.bf16 %v483, %v481
      %v492 = vpack.c.bf16 %v484, %v482
      %v493 = vlaneseq
      %v494 = vand.u32 %v493, 127
      %v495 = vadd.s32 %v494, 128
      %v496 = vadd.s32 %v494, 256
      %vm497 = vcmp.lt.s32.totalorder %v494, 0
      %v498 = vsub.s32 0, %v494
      %v499 = vsel %vm497, %v498, %v494
      %v500 = vshrl.u32 %v499, 4
      %v501 = vand.u32 %v499, 15
      %v502 = vsub.s32 0, %v501
      %v503 = vsel %vm497, %v502, %v501
      %vm504 = vcmp.lt.s32.totalorder %v495, 0
      %v505 = vsub.s32 0, %v495
      %v506 = vsel %vm504, %v505, %v495
      %v507 = vshrl.u32 %v506, 4
      %v508 = vand.u32 %v506, 15
      %v509 = vsub.s32 0, %v508
      %v510 = vsel %vm504, %v509, %v508
      %vm511 = vcmp.lt.s32.totalorder %v496, 0
      %v512 = vsub.s32 0, %v496
      %v513 = vsel %vm511, %v512, %v496
      %v514 = vshrl.u32 %v513, 4
      %v515 = vand.u32 %v513, 15
      %v516 = vsub.s32 0, %v515
      %v517 = vsel %vm511, %v516, %v515
      %vm518 = vcmp.ne.s32.totalorder %v503, 0
      %vm519 = vcmp.ne.s32.totalorder %v510, 0
      %vm520 = vcmp.ne.s32.totalorder %v517, 0
      %vm521 = vcmp.lt.s32.totalorder %v503, 0
      %vm522 = vcmp.lt.s32.totalorder %v510, 0
      %vm523 = vcmp.lt.s32.totalorder %v517, 0
      %vm524 = vmand %vm521, %vm518
      %vm525 = vmand %vm522, %vm519
      %vm526 = vmand %vm523, %vm520
      %v527 = vadd.s32 %v503, 16
      %v528 = vadd.s32 %v510, 16
      %v529 = vadd.s32 %v517, 16
      %v530 = vsel %vm524, %v527, %v503
      %v531 = vsel %vm525, %v528, %v510
      %v532 = vsel %vm526, %v529, %v517
      %v533 = vadd.s32 %v530, 4294967294
      %v534 = vadd.s32 %v531, 4294967294
      %v535 = vadd.s32 %v532, 4294967294
      %vm536 = vcmp.ge.s32.totalorder %v533, 0
      %vm537 = vcmp.ge.s32.totalorder %v534, 0
      %vm538 = vcmp.ge.s32.totalorder %v535, 0
      %vm539 = vcmp.lt.s32.totalorder %v533, 16
      %vm540 = vcmp.lt.s32.totalorder %v534, 16
      %vm541 = vcmp.lt.s32.totalorder %v535, 16
      %vm542 = vmand %vm536, %vm539
      %vm543 = vmand %vm537, %vm540
      %vm544 = vmand %vm538, %vm541
      %v545 = vsel %vm542, 1, 0
      %v546 = vsel %vm543, 1, 0
      %v547 = vsel %vm544, 1, 0
      %v548 = vcvt.s32.f32 %v545
      %v549 = vcvt.s32.f32 %v546
      %v550 = vcvt.s32.f32 %v547
      %v551 = vadd.s32 %v530, 4294967295
      %v552 = vadd.s32 %v531, 4294967295
      %v553 = vadd.s32 %v532, 4294967295
      %vm554 = vcmp.ge.s32.totalorder %v551, 0
      %vm555 = vcmp.ge.s32.totalorder %v552, 0
      %vm556 = vcmp.ge.s32.totalorder %v553, 0
      %vm557 = vcmp.lt.s32.totalorder %v551, 16
      %vm558 = vcmp.lt.s32.totalorder %v552, 16
      %vm559 = vcmp.lt.s32.totalorder %v553, 16
      %vm560 = vmand %vm554, %vm557
      %vm561 = vmand %vm555, %vm558
      %vm562 = vmand %vm556, %vm559
      %v563 = vsel %vm560, 1, 0
      %v564 = vsel %vm561, 1, 0
      %v565 = vsel %vm562, 1, 0
      %v566 = vcvt.s32.f32 %v563
      %v567 = vcvt.s32.f32 %v564
      %v568 = vcvt.s32.f32 %v565
      %v569 = vadd.s32 %v530, 1
      %v570 = vadd.s32 %v531, 1
      %v571 = vadd.s32 %v532, 1
      %vm572 = vcmp.ge.s32.totalorder %v569, 0
      %vm573 = vcmp.ge.s32.totalorder %v570, 0
      %vm574 = vcmp.ge.s32.totalorder %v571, 0
      %vm575 = vcmp.lt.s32.totalorder %v569, 16
      %vm576 = vcmp.lt.s32.totalorder %v570, 16
      %vm577 = vcmp.lt.s32.totalorder %v571, 16
      %vm578 = vmand %vm572, %vm575
      %vm579 = vmand %vm573, %vm576
      %vm580 = vmand %vm574, %vm577
      %v581 = vsel %vm578, 1, 0
      %v582 = vsel %vm579, 1, 0
      %v583 = vsel %vm580, 1, 0
      %v584 = vcvt.s32.f32 %v581
      %v585 = vcvt.s32.f32 %v582
      %v586 = vcvt.s32.f32 %v583
      %v587 = vadd.s32 %v530, 2
      %v588 = vadd.s32 %v531, 2
      %v589 = vadd.s32 %v532, 2
      %vm590 = vcmp.ge.s32.totalorder %v587, 0
      %vm591 = vcmp.ge.s32.totalorder %v588, 0
      %vm592 = vcmp.ge.s32.totalorder %v589, 0
      %vm593 = vcmp.lt.s32.totalorder %v587, 16
      %vm594 = vcmp.lt.s32.totalorder %v588, 16
      %vm595 = vcmp.lt.s32.totalorder %v589, 16
      %vm596 = vmand %vm590, %vm593
      %vm597 = vmand %vm591, %vm594
      %vm598 = vmand %vm592, %vm595
      %v599 = vsel %vm596, 1, 0
      %v600 = vsel %vm597, 1, 0
      %v601 = vsel %vm598, 1, 0
      %v602 = vcvt.s32.f32 %v599
      %v603 = vcvt.s32.f32 %v600
      %v604 = vcvt.s32.f32 %v601
      %v605 = vld [vmem:[%s1] sm:$0xf]
      %v606 = vld [vmem:[%s1 + $0x4] sm:$0xf]
      %v609 = vunpack.c.l.b16 %v605
      %v610 = vunpack.c.l.b16 %v606
      %v611 = vpack.c.b16 %v610, %v609
      %vm612 = vcmask 523264
      %v614 = vsel %vm612, %v611, 0
      %616 = vmatprep.subr.bf16.mxu0 %v486
      %617 = vmatpush1.bf16.msra.mxu0 %v485
      %618 = vmatprep.subr.bf16.mxu0 %v488
      %619 = vmatpush1.bf16.msra.mxu0 %v487
      %620 = vmatprep.subr.bf16.mxu0 %v490
      %621 = vmatpush1.bf16.msra.mxu0 %v489
      %622 = vmatprep.subr.bf16.mxu0 %v492
      %623 = vmatpush1.bf16.msra.mxu0 %v491
      %624 = vmatprep.subr.bf16.mxu0 0
      %625 = vmatpush1.bf16.msra.mxu0 0
      %626 = vmatprep.subr.bf16.mxu0 0
      %627 = vmatpush1.bf16.msra.mxu0 0
      %628 = vmatprep.subr.bf16.mxu0 0
      %629 = vmatpush1.bf16.msra.mxu0 0
      %630 = vmatprep.subr.bf16.mxu0 0
      %631 = vmatpush1.bf16.msra.mxu0 0
      %632 = vmatprep.subr.bf16.mxu0 0
      %633 = vmatpush1.bf16.msra.mxu0 0
      %634 = vmatprep.subr.bf16.mxu0 0
      %635 = vmatpush1.bf16.msra.mxu0 0
      %636 = vmatprep.subr.bf16.mxu0 0
      %637 = vmatpush1.bf16.msra.mxu0 0
      %638 = vmatprep.subr.bf16.mxu0 0
      %639 = vmatpush1.bf16.msra.mxu0 0
      %640 = vmatprep.subr.bf16.mxu0 0
      %641 = vmatpush1.bf16.msra.mxu0 0
      %642 = vmatprep.subr.bf16.mxu0 0
      %643 = vmatpush1.bf16.msra.mxu0 0
      %644 = vmatprep.subr.bf16.mxu0 0
      %645 = vmatpush1.bf16.msra.mxu0 0
      %646 = vmatprep.subr.bf16.mxu0 0
      %647 = vmatpush1.bf16.msra.mxu0 0
      %648 = vmatprep.mubr.bf16.mxu0 0
      %649 = vmatmul.mubr.bf16.gmra.mrb[0].mxu0 %v614
      %v650 = vpop.f32.mrb[0].mxu0
      %v651 = vadd.f32 0.0, %v650
      %v652 = vpop.f32.mrb[0].mxu0
      %v653 = vadd.f32 0.0, %v652
      %v654 = vpop.f32.mrb[0].mxu0
      %v655 = vadd.f32 0.0, %v654
      %v656 = vpop.f32.mrb[0].mxu0
      %v657 = vadd.f32 0.0, %v656
      %658 = vdwg.mxu0
      %v659 = vld [vmem:[%s2] sm:$0xff]
      %v660 = vld [vmem:[%s2 + $0x8] sm:$0xff]
      %662 = vset.pattern.permute.xlu0 0
      %663 = vperm.xlu0 %662, %v659
      %v664 = vpop.permute.xlu0 %663
      %667 = vset.pattern.permute.xlu0 0
      %668 = vperm.xlu0 %667, %v660
      %v669 = vpop.permute.xlu0 %668
      %v671 = vmul.f32 %v651, %v664
      %v672 = vmul.f32 %v653, %v664
      %v673 = vmul.f32 %v655, %v669
      %v674 = vmul.f32 %v657, %v669
      %v675 = vld [vmem:[%s3] sm:$0xff]
      %v676 = vld [vmem:[%s3 + $0x8] sm:$0xff]
      %678 = vset.pattern.permute.xlu0 0
      %679 = vperm.xlu0 %678, %v675
      %v680 = vpop.permute.xlu0 %679
      %683 = vset.pattern.permute.xlu0 0
      %684 = vperm.xlu0 %683, %v676
      %v685 = vpop.permute.xlu0 %684
      %v687 = vadd.f32 %v671, %v680
      %v688 = vadd.f32 %v672, %v680
      %v689 = vadd.f32 %v673, %v685
      %v690 = vadd.f32 %v674, %v685
      %v691 = vsub.f32 0.0, %v687
      %v692 = vsub.f32 0.0, %v688
      %v693 = vsub.f32 0.0, %v689
      %v694 = vsub.f32 0.0, %v690
      %v695 = vmul.f32 %v691, 1.442695
      %v696 = vpow.pop %v695
      %v697 = vmul.f32 %v692, 1.442695
      %v698 = vpow.pop %v697
      %v699 = vmul.f32 %v693, 1.442695
      %v700 = vpow.pop %v699
      %v701 = vmul.f32 %v694, 1.442695
      %v702 = vpow.pop %v701
      %v703 = vadd.f32 %v696, 1.0
      %v704 = vadd.f32 %v698, 1.0
      %v705 = vadd.f32 %v700, 1.0
      %v706 = vadd.f32 %v702, 1.0
      %v707 = vrcp.pop %v703
      %v708 = vmul.f32 1.0, %v707
      %v709 = vrcp.pop %v704
      %v710 = vmul.f32 1.0, %v709
      %v711 = vrcp.pop %v705
      %v712 = vmul.f32 1.0, %v711
      %v713 = vrcp.pop %v706
      %v714 = vmul.f32 1.0, %v713
      %v715 = vmul.f32 %v687, %v708
      %v716 = vmul.f32 %v688, %v710
      %v717 = vmul.f32 %v689, %v712
      %v718 = vmul.f32 %v690, %v714
      %719 = vst [vmem:[#allocation2] sm:$0xff] 0.0
      %720 = vst [vmem:[#allocation2 + $0x20] sm:$0xff] 0.0
      %721 = vst [vmem:[#allocation2 + $0x18] sm:$0xff] 0.0
      %722 = vst [vmem:[#allocation2 + $0x38] sm:$0xff] 0.0
      %723 = vst [vmem:[#allocation2 + $0x8] sm:$0xff] %v715
      %724 = vst [vmem:[#allocation2 + $0x10] sm:$0xff] %v716
      %725 = vst [vmem:[#allocation2 + $0x28] sm:$0xff] %v717
      %726 = vst [vmem:[#allocation2 + $0x30] sm:$0xff] %v718
      %v727 = vld [vmem:[#allocation2] sm:$0xff]
      %v728 = vld [vmem:[#allocation2 + $0x8] sm:$0xff]
      %v729 = vld [vmem:[#allocation2 + $0x10] sm:$0xff]
      %v730 = vld [vmem:[#allocation2 + $0x18] sm:$0xff]
      %v731 = vld [vmem:[#allocation2 + $0x20] sm:$0xff]
      %v732 = vld [vmem:[#allocation2 + $0x28] sm:$0xff]
      %v733 = vld [vmem:[#allocation2 + $0x30] sm:$0xff]
      %v734 = vld [vmem:[#allocation2 + $0x38] sm:$0xff]
      %738 = vrot.lane.b32.xlu0 %v548, 94
      %v739 = vpop.permute.xlu0 %738
      %740 = vrot.lane.b32.xlu0 %v549, 94
      %v741 = vpop.permute.xlu0 %740
      %742 = vrot.lane.b32.xlu0 %v550, 94
      %v743 = vpop.permute.xlu0 %742
      %vm744 = vcmask 769024
      %v745 = vsel %vm744, %v739, %v741
      %v746 = vsel %vm744, %v741, %v743
      %v751 = vmul.f32 %v727, %v739
      %v752 = vmul.f32 %v728, %v745
      %v753 = vmul.f32 %v729, %v746
      %v754 = vmul.f32 %v730, %v743
      %v755 = vmul.f32 %v731, %v739
      %v756 = vmul.f32 %v732, %v745
      %v757 = vmul.f32 %v733, %v746
      %v758 = vmul.f32 %v734, %v743
      %v759 = vld [vmem:[%s4] sm:$0xff]
      %v760 = vld [vmem:[%s4 + $0x8] sm:$0xff]
      %762 = vset.pattern.permute.xlu0 0
      %763 = vperm.xlu0 %762, %v759
      %v764 = vpop.permute.xlu0 %763
      %767 = vset.pattern.permute.xlu0 0
      %768 = vperm.xlu0 %767, %v760
      %v769 = vpop.permute.xlu0 %768
      %v771 = vmul.f32 %v751, %v764
      %v772 = vmul.f32 %v752, %v764
      %v773 = vmul.f32 %v753, %v764
      %v774 = vmul.f32 %v755, %v769
      %v775 = vmul.f32 %v756, %v769
      %v776 = vmul.f32 %v757, %v769
      %v777 = vadd.f32 %v771, 0.0
      %v778 = vadd.f32 %v772, 0.0
      %v779 = vadd.f32 %v773, 0.0
      %v780 = vadd.f32 %v774, 0.0
      %v781 = vadd.f32 %v775, 0.0
      %v782 = vadd.f32 %v776, 0.0
      %783 = vset.pattern.permute.xlu0 5
      %784 = vperm.xlu0 %783, %v759
      %v785 = vpop.permute.xlu0 %784
      %787 = vset.pattern.permute.xlu0 5
      %788 = vperm.xlu0 %787, %v760
      %v789 = vpop.permute.xlu0 %788
      %v791 = vmul.f32 %v751, %v785
      %v792 = vmul.f32 %v752, %v785
      %v793 = vmul.f32 %v753, %v785
      %v794 = vmul.f32 %v755, %v789
      %v795 = vmul.f32 %v756, %v789
      %v796 = vmul.f32 %v757, %v789
      %803 = vrot.lane.b32.xlu0 %v791, 112
      %v804 = vpop.permute.xlu0 %803
      %805 = vrot.lane.b32.xlu0 %v792, 112
      %v806 = vpop.permute.xlu0 %805
      %807 = vrot.lane.b32.xlu0 %v793, 112
      %v808 = vpop.permute.xlu0 %807
      %809 = vrot.lane.b32.xlu0 %v794, 112
      %v810 = vpop.permute.xlu0 %809
      %811 = vrot.lane.b32.xlu0 %v795, 112
      %v812 = vpop.permute.xlu0 %811
      %813 = vrot.lane.b32.xlu0 %v796, 112
      %v814 = vpop.permute.xlu0 %813
      %vm815 = vcmask 916480
      %v816 = vsel %vm815, %v804, %v806
      %v817 = vsel %vm815, %v806, %v808
      %v818 = vsel %vm815, %v810, %v812
      %v819 = vsel %vm815, %v812, %v814
      %v826 = vadd.f32 %v777, %v816
      %v827 = vadd.f32 %v778, %v817
      %v828 = vadd.f32 %v779, %v808
      %v829 = vadd.f32 %v780, %v818
      %v830 = vadd.f32 %v781, %v819
      %v831 = vadd.f32 %v782, %v814
      %832 = vset.pattern.permute.xlu0 10
      %833 = vperm.xlu0 %832, %v759
      %v834 = vpop.permute.xlu0 %833
      %836 = vset.pattern.permute.xlu0 10
      %837 = vperm.xlu0 %836, %v760
      %v838 = vpop.permute.xlu0 %837
      %v840 = vmul.f32 %v751, %v834
      %v841 = vmul.f32 %v752, %v834
      %v842 = vmul.f32 %v753, %v834
      %v843 = vmul.f32 %v755, %v838
      %v844 = vmul.f32 %v756, %v838
      %v845 = vmul.f32 %v757, %v838
      %852 = vrot.lane.b32.xlu0 %v840, 96
      %v853 = vpop.permute.xlu0 %852
      %854 = vrot.lane.b32.xlu0 %v841, 96
      %v855 = vpop.permute.xlu0 %854
      %856 = vrot.lane.b32.xlu0 %v842, 96
      %v857 = vpop.permute.xlu0 %856
      %858 = vrot.lane.b32.xlu0 %v843, 96
      %v859 = vpop.permute.xlu0 %858
      %860 = vrot.lane.b32.xlu0 %v844, 96
      %v861 = vpop.permute.xlu0 %860
      %862 = vrot.lane.b32.xlu0 %v845, 96
      %v863 = vpop.permute.xlu0 %862
      %vm864 = vcmask 785408
      %v865 = vsel %vm864, %v853, %v855
      %v866 = vsel %vm864, %v855, %v857
      %v867 = vsel %vm864, %v859, %v861
      %v868 = vsel %vm864, %v861, %v863
      %v875 = vadd.f32 %v826, %v865
      %v876 = vadd.f32 %v827, %v866
      %v877 = vadd.f32 %v828, %v857
      %v878 = vadd.f32 %v829, %v867
      %v879 = vadd.f32 %v830, %v868
      %v880 = vadd.f32 %v831, %v863
      %881 = vset.pattern.permute.xlu0 15
      %882 = vperm.xlu0 %881, %v759
      %v883 = vpop.permute.xlu0 %882
      %885 = vset.pattern.permute.xlu0 15
      %886 = vperm.xlu0 %885, %v760
      %v887 = vpop.permute.xlu0 %886
      %v889 = vmul.f32 %v752, %v883
      %v890 = vmul.f32 %v753, %v883
      %v891 = vmul.f32 %v754, %v883
      %v892 = vmul.f32 %v756, %v887
      %v893 = vmul.f32 %v757, %v887
      %v894 = vmul.f32 %v758, %v887
      %901 = vrot.lane.b32.xlu0 %v889, 80
      %v902 = vpop.permute.xlu0 %901
      %903 = vrot.lane.b32.xlu0 %v890, 80
      %v904 = vpop.permute.xlu0 %903
      %905 = vrot.lane.b32.xlu0 %v891, 80
      %v906 = vpop.permute.xlu0 %905
      %907 = vrot.lane.b32.xlu0 %v892, 80
      %v908 = vpop.permute.xlu0 %907
      %909 = vrot.lane.b32.xlu0 %v893, 80
      %v910 = vpop.permute.xlu0 %909
      %911 = vrot.lane.b32.xlu0 %v894, 80
      %v912 = vpop.permute.xlu0 %911
      %vm913 = vcmask 654336
      %v914 = vsel %vm913, %v902, %v904
      %v915 = vsel %vm913, %v904, %v906
      %v916 = vsel %vm913, %v908, %v910
      %v917 = vsel %vm913, %v910, %v912
      %v924 = vadd.f32 %v875, %v902
      %v925 = vadd.f32 %v876, %v914
      %v926 = vadd.f32 %v877, %v915
      %v927 = vadd.f32 %v878, %v908
      %v928 = vadd.f32 %v879, %v916
      %v929 = vadd.f32 %v880, %v917
      %930 = vset.pattern.permute.xlu0 20
      %931 = vperm.xlu0 %930, %v759
      %v932 = vpop.permute.xlu0 %931
      %934 = vset.pattern.permute.xlu0 20
      %935 = vperm.xlu0 %934, %v760
      %v936 = vpop.permute.xlu0 %935
      %v938 = vmul.f32 %v752, %v932
      %v939 = vmul.f32 %v753, %v932
      %v940 = vmul.f32 %v754, %v932
      %v941 = vmul.f32 %v756, %v936
      %v942 = vmul.f32 %v757, %v936
      %v943 = vmul.f32 %v758, %v936
      %950 = vrot.lane.b32.xlu0 %v938, 64
      %v951 = vpop.permute.xlu0 %950
      %952 = vrot.lane.b32.xlu0 %v939, 64
      %v953 = vpop.permute.xlu0 %952
      %954 = vrot.lane.b32.xlu0 %v940, 64
      %v955 = vpop.permute.xlu0 %954
      %956 = vrot.lane.b32.xlu0 %v941, 64
      %v957 = vpop.permute.xlu0 %956
      %958 = vrot.lane.b32.xlu0 %v942, 64
      %v959 = vpop.permute.xlu0 %958
      %960 = vrot.lane.b32.xlu0 %v943, 64
      %v961 = vpop.permute.xlu0 %960
      %v962 = vsel %vm612, %v951, %v953
      %v963 = vsel %vm612, %v953, %v955
      %v964 = vsel %vm612, %v957, %v959
      %v965 = vsel %vm612, %v959, %v961
      %v972 = vadd.f32 %v924, %v951
      %v973 = vadd.f32 %v925, %v962
      %v974 = vadd.f32 %v926, %v963
      %v975 = vadd.f32 %v927, %v957
      %v976 = vadd.f32 %v928, %v964
      %v977 = vadd.f32 %v929, %v965
      %981 = vrot.lane.b32.xlu0 %v566, 95
      %v982 = vpop.permute.xlu0 %981
      %983 = vrot.lane.b32.xlu0 %v567, 95
      %v984 = vpop.permute.xlu0 %983
      %985 = vrot.lane.b32.xlu0 %v568, 95
      %v986 = vpop.permute.xlu0 %985
      %vm987 = vcmask 777216
      %v988 = vsel %vm987, %v982, %v984
      %v989 = vsel %vm987, %v984, %v986
      %v994 = vmul.f32 %v727, %v982
      %v995 = vmul.f32 %v728, %v988
      %v996 = vmul.f32 %v729, %v989
      %v997 = vmul.f32 %v730, %v986
      %v998 = vmul.f32 %v731, %v982
      %v999 = vmul.f32 %v732, %v988
      %v1000 = vmul.f32 %v733, %v989
      %v1001 = vmul.f32 %v734, %v986
      %1002 = vset.pattern.permute.xlu0 1
      %1003 = vperm.xlu0 %1002, %v759
      %v1004 = vpop.permute.xlu0 %1003
      %1006 = vset.pattern.permute.xlu0 1
      %1007 = vperm.xlu0 %1006, %v760
      %v1008 = vpop.permute.xlu0 %1007
      %v1010 = vmul.f32 %v994, %v1004
      %v1011 = vmul.f32 %v995, %v1004
      %v1012 = vmul.f32 %v996, %v1004
      %v1013 = vmul.f32 %v998, %v1008
      %v1014 = vmul.f32 %v999, %v1008
      %v1015 = vmul.f32 %v1000, %v1008
      %1022 = vrot.lane.b32.xlu0 %v1010, 127
      %v1023 = vpop.permute.xlu0 %1022
      %1024 = vrot.lane.b32.xlu0 %v1011, 127
      %v1025 = vpop.permute.xlu0 %1024
      %1026 = vrot.lane.b32.xlu0 %v1012, 127
      %v1027 = vpop.permute.xlu0 %1026
      %1028 = vrot.lane.b32.xlu0 %v1013, 127
      %v1029 = vpop.permute.xlu0 %1028
      %1030 = vrot.lane.b32.xlu0 %v1014, 127
      %v1031 = vpop.permute.xlu0 %1030
      %1032 = vrot.lane.b32.xlu0 %v1015, 127
      %v1033 = vpop.permute.xlu0 %1032
      %vm1034 = vcmask 1039360
      %v1035 = vsel %vm1034, %v1023, %v1025
      %v1036 = vsel %vm1034, %v1025, %v1027
      %v1037 = vsel %vm1034, %v1029, %v1031
      %v1038 = vsel %vm1034, %v1031, %v1033
      %v1045 = vadd.f32 %v972, %v1035
      %v1046 = vadd.f32 %v973, %v1036
      %v1047 = vadd.f32 %v974, %v1027
      %v1048 = vadd.f32 %v975, %v1037
      %v1049 = vadd.f32 %v976, %v1038
      %v1050 = vadd.f32 %v977, %v1033
      %1051 = vset.pattern.permute.xlu0 6
      %1052 = vperm.xlu0 %1051, %v759
      %v1053 = vpop.permute.xlu0 %1052
      %1055 = vset.pattern.permute.xlu0 6
      %1056 = vperm.xlu0 %1055, %v760
      %v1057 = vpop.permute.xlu0 %1056
      %v1059 = vmul.f32 %v994, %v1053
      %v1060 = vmul.f32 %v995, %v1053
      %v1061 = vmul.f32 %v996, %v1053
      %v1062 = vmul.f32 %v998, %v1057
      %v1063 = vmul.f32 %v999, %v1057
      %v1064 = vmul.f32 %v1000, %v1057
      %1071 = vrot.lane.b32.xlu0 %v1059, 111
      %v1072 = vpop.permute.xlu0 %1071
      %1073 = vrot.lane.b32.xlu0 %v1060, 111
      %v1074 = vpop.permute.xlu0 %1073
      %1075 = vrot.lane.b32.xlu0 %v1061, 111
      %v1076 = vpop.permute.xlu0 %1075
      %1077 = vrot.lane.b32.xlu0 %v1062, 111
      %v1078 = vpop.permute.xlu0 %1077
      %1079 = vrot.lane.b32.xlu0 %v1063, 111
      %v1080 = vpop.permute.xlu0 %1079
      %1081 = vrot.lane.b32.xlu0 %v1064, 111
      %v1082 = vpop.permute.xlu0 %1081
      %vm1083 = vcmask 908288
      %v1084 = vsel %vm1083, %v1072, %v1074
      %v1085 = vsel %vm1083, %v1074, %v1076
      %v1086 = vsel %vm1083, %v1078, %v1080
      %v1087 = vsel %vm1083, %v1080, %v1082
      %v1094 = vadd.f32 %v1045, %v1084
      %v1095 = vadd.f32 %v1046, %v1085
      %v1096 = vadd.f32 %v1047, %v1076
      %v1097 = vadd.f32 %v1048, %v1086
      %v1098 = vadd.f32 %v1049, %v1087
      %v1099 = vadd.f32 %v1050, %v1082
      %1100 = vset.pattern.permute.xlu0 11
      %1101 = vperm.xlu0 %1100, %v759
      %v1102 = vpop.permute.xlu0 %1101
      %1104 = vset.pattern.permute.xlu0 11
      %1105 = vperm.xlu0 %1104, %v760
      %v1106 = vpop.permute.xlu0 %1105
      %v1108 = vmul.f32 %v994, %v1102
      %v1109 = vmul.f32 %v995, %v1102
      %v1110 = vmul.f32 %v996, %v1102
      %v1111 = vmul.f32 %v998, %v1106
      %v1112 = vmul.f32 %v999, %v1106
      %v1113 = vmul.f32 %v1000, %v1106
      %1120 = vrot.lane.b32.xlu0 %v1108, 95
      %v1121 = vpop.permute.xlu0 %1120
      %1122 = vrot.lane.b32.xlu0 %v1109, 95
      %v1123 = vpop.permute.xlu0 %1122
      %1124 = vrot.lane.b32.xlu0 %v1110, 95
      %v1125 = vpop.permute.xlu0 %1124
      %1126 = vrot.lane.b32.xlu0 %v1111, 95
      %v1127 = vpop.permute.xlu0 %1126
      %1128 = vrot.lane.b32.xlu0 %v1112, 95
      %v1129 = vpop.permute.xlu0 %1128
      %1130 = vrot.lane.b32.xlu0 %v1113, 95
      %v1131 = vpop.permute.xlu0 %1130
      %v1132 = vsel %vm987, %v1121, %v1123
      %v1133 = vsel %vm987, %v1123, %v1125
      %v1134 = vsel %vm987, %v1127, %v1129
      %v1135 = vsel %vm987, %v1129, %v1131
      %v1142 = vadd.f32 %v1094, %v1132
      %v1143 = vadd.f32 %v1095, %v1133
      %v1144 = vadd.f32 %v1096, %v1125
      %v1145 = vadd.f32 %v1097, %v1134
      %v1146 = vadd.f32 %v1098, %v1135
      %v1147 = vadd.f32 %v1099, %v1131
      %1148 = vset.pattern.permute.xlu0 16
      %1149 = vperm.xlu0 %1148, %v759
      %v1150 = vpop.permute.xlu0 %1149
      %1152 = vset.pattern.permute.xlu0 16
      %1153 = vperm.xlu0 %1152, %v760
      %v1154 = vpop.permute.xlu0 %1153
      %v1156 = vmul.f32 %v995, %v1150
      %v1157 = vmul.f32 %v996, %v1150
      %v1158 = vmul.f32 %v997, %v1150
      %v1159 = vmul.f32 %v999, %v1154
      %v1160 = vmul.f32 %v1000, %v1154
      %v1161 = vmul.f32 %v1001, %v1154
      %1168 = vrot.lane.b32.xlu0 %v1156, 79
      %v1169 = vpop.permute.xlu0 %1168
      %1170 = vrot.lane.b32.xlu0 %v1157, 79
      %v1171 = vpop.permute.xlu0 %1170
      %1172 = vrot.lane.b32.xlu0 %v1158, 79
      %v1173 = vpop.permute.xlu0 %1172
      %1174 = vrot.lane.b32.xlu0 %v1159, 79
      %v1175 = vpop.permute.xlu0 %1174
      %1176 = vrot.lane.b32.xlu0 %v1160, 79
      %v1177 = vpop.permute.xlu0 %1176
      %1178 = vrot.lane.b32.xlu0 %v1161, 79
      %v1179 = vpop.permute.xlu0 %1178
      %vm1180 = vcmask 646144
      %v1181 = vsel %vm1180, %v1169, %v1171
      %v1182 = vsel %vm1180, %v1171, %v1173
      %v1183 = vsel %vm1180, %v1175, %v1177
      %v1184 = vsel %vm1180, %v1177, %v1179
      %v1191 = vadd.f32 %v1142, %v1169
      %v1192 = vadd.f32 %v1143, %v1181
      %v1193 = vadd.f32 %v1144, %v1182
      %v1194 = vadd.f32 %v1145, %v1175
      %v1195 = vadd.f32 %v1146, %v1183
      %v1196 = vadd.f32 %v1147, %v1184
      %1197 = vset.pattern.permute.xlu0 21
      %1198 = vperm.xlu0 %1197, %v759
      %v1199 = vpop.permute.xlu0 %1198
      %1201 = vset.pattern.permute.xlu0 21
      %1202 = vperm.xlu0 %1201, %v760
      %v1203 = vpop.permute.xlu0 %1202
      %v1205 = vmul.f32 %v995, %v1199
      %v1206 = vmul.f32 %v996, %v1199
      %v1207 = vmul.f32 %v997, %v1199
      %v1208 = vmul.f32 %v999, %v1203
      %v1209 = vmul.f32 %v1000, %v1203
      %v1210 = vmul.f32 %v1001, %v1203
      %1217 = vrot.lane.b32.xlu0 %v1205, 63
      %v1218 = vpop.permute.xlu0 %1217
      %1219 = vrot.lane.b32.xlu0 %v1206, 63
      %v1220 = vpop.permute.xlu0 %1219
      %1221 = vrot.lane.b32.xlu0 %v1207, 63
      %v1222 = vpop.permute.xlu0 %1221
      %1223 = vrot.lane.b32.xlu0 %v1208, 63
      %v1224 = vpop.permute.xlu0 %1223
      %1225 = vrot.lane.b32.xlu0 %v1209, 63
      %v1226 = vpop.permute.xlu0 %1225
      %1227 = vrot.lane.b32.xlu0 %v1210, 63
      %v1228 = vpop.permute.xlu0 %1227
      %vm1229 = vcmask 515072
      %v1230 = vsel %vm1229, %v1218, %v1220
      %v1231 = vsel %vm1229, %v1220, %v1222
      %v1232 = vsel %vm1229, %v1224, %v1226
      %v1233 = vsel %vm1229, %v1226, %v1228
      %v1240 = vadd.f32 %v1191, %v1218
      %v1241 = vadd.f32 %v1192, %v1230
      %v1242 = vadd.f32 %v1193, %v1231
      %v1243 = vadd.f32 %v1194, %v1224
      %v1244 = vadd.f32 %v1195, %v1232
      %v1245 = vadd.f32 %v1196, %v1233
      %1246 = vset.pattern.permute.xlu0 2
      %1247 = vperm.xlu0 %1246, %v759
      %v1248 = vpop.permute.xlu0 %1247
      %1250 = vset.pattern.permute.xlu0 2
      %1251 = vperm.xlu0 %1250, %v760
      %v1252 = vpop.permute.xlu0 %1251
      %v1254 = vmul.f32 %v727, %v1248
      %v1255 = vmul.f32 %v728, %v1248
      %v1256 = vmul.f32 %v729, %v1248
      %v1257 = vmul.f32 %v731, %v1252
      %v1258 = vmul.f32 %v732, %v1252
      %v1259 = vmul.f32 %v733, %v1252
      %1266 = vrot.lane.b32.xlu0 %v1254, 126
      %v1267 = vpop.permute.xlu0 %1266
      %1268 = vrot.lane.b32.xlu0 %v1255, 126
      %v1269 = vpop.permute.xlu0 %1268
      %1270 = vrot.lane.b32.xlu0 %v1256, 126
      %v1271 = vpop.permute.xlu0 %1270
      %1272 = vrot.lane.b32.xlu0 %v1257, 126
      %v1273 = vpop.permute.xlu0 %1272
      %1274 = vrot.lane.b32.xlu0 %v1258, 126
      %v1275 = vpop.permute.xlu0 %1274
      %1276 = vrot.lane.b32.xlu0 %v1259, 126
      %v1277 = vpop.permute.xlu0 %1276
      %vm1278 = vcmask 1031168
      %v1279 = vsel %vm1278, %v1267, %v1269
      %v1280 = vsel %vm1278, %v1269, %v1271
      %v1281 = vsel %vm1278, %v1273, %v1275
      %v1282 = vsel %vm1278, %v1275, %v1277
      %v1289 = vadd.f32 %v1240, %v1279
      %v1290 = vadd.f32 %v1241, %v1280
      %v1291 = vadd.f32 %v1242, %v1271
      %v1292 = vadd.f32 %v1243, %v1281
      %v1293 = vadd.f32 %v1244, %v1282
      %v1294 = vadd.f32 %v1245, %v1277
      %1295 = vset.pattern.permute.xlu0 7
      %1296 = vperm.xlu0 %1295, %v759
      %v1297 = vpop.permute.xlu0 %1296
      %1299 = vset.pattern.permute.xlu0 7
      %1300 = vperm.xlu0 %1299, %v760
      %v1301 = vpop.permute.xlu0 %1300
      %v1303 = vmul.f32 %v727, %v1297
      %v1304 = vmul.f32 %v728, %v1297
      %v1305 = vmul.f32 %v729, %v1297
      %v1306 = vmul.f32 %v731, %v1301
      %v1307 = vmul.f32 %v732, %v1301
      %v1308 = vmul.f32 %v733, %v1301
      %1315 = vrot.lane.b32.xlu0 %v1303, 110
      %v1316 = vpop.permute.xlu0 %1315
      %1317 = vrot.lane.b32.xlu0 %v1304, 110
      %v1318 = vpop.permute.xlu0 %1317
      %1319 = vrot.lane.b32.xlu0 %v1305, 110
      %v1320 = vpop.permute.xlu0 %1319
      %1321 = vrot.lane.b32.xlu0 %v1306, 110
      %v1322 = vpop.permute.xlu0 %1321
      %1323 = vrot.lane.b32.xlu0 %v1307, 110
      %v1324 = vpop.permute.xlu0 %1323
      %1325 = vrot.lane.b32.xlu0 %v1308, 110
      %v1326 = vpop.permute.xlu0 %1325
      %vm1327 = vcmask 900096
      %v1328 = vsel %vm1327, %v1316, %v1318
      %v1329 = vsel %vm1327, %v1318, %v1320
      %v1330 = vsel %vm1327, %v1322, %v1324
      %v1331 = vsel %vm1327, %v1324, %v1326
      %v1338 = vadd.f32 %v1289, %v1328
      %v1339 = vadd.f32 %v1290, %v1329
      %v1340 = vadd.f32 %v1291, %v1320
      %v1341 = vadd.f32 %v1292, %v1330
      %v1342 = vadd.f32 %v1293, %v1331
      %v1343 = vadd.f32 %v1294, %v1326
      %1344 = vset.pattern.permute.xlu0 12
      %1345 = vperm.xlu0 %1344, %v759
      %v1346 = vpop.permute.xlu0 %1345
      %1348 = vset.pattern.permute.xlu0 12
      %1349 = vperm.xlu0 %1348, %v760
      %v1350 = vpop.permute.xlu0 %1349
      %v1352 = vmul.f32 %v728, %v1346
      %v1353 = vmul.f32 %v729, %v1346
      %v1354 = vmul.f32 %v732, %v1350
      %v1355 = vmul.f32 %v733, %v1350
      %1360 = vrot.lane.b32.xlu0 %v1352, 94
      %v1361 = vpop.permute.xlu0 %1360
      %1362 = vrot.lane.b32.xlu0 %v1353, 94
      %v1363 = vpop.permute.xlu0 %1362
      %1364 = vrot.lane.b32.xlu0 %v1354, 94
      %v1365 = vpop.permute.xlu0 %1364
      %1366 = vrot.lane.b32.xlu0 %v1355, 94
      %v1367 = vpop.permute.xlu0 %1366
      %v1368 = vsel %vm744, %v1361, %v1363
      %v1369 = vsel %vm744, %v1365, %v1367
      %v1376 = vadd.f32 %v1338, %v1361
      %v1377 = vadd.f32 %v1339, %v1368
      %v1378 = vadd.f32 %v1340, %v1363
      %v1379 = vadd.f32 %v1341, %v1365
      %v1380 = vadd.f32 %v1342, %v1369
      %v1381 = vadd.f32 %v1343, %v1367
      %1382 = vset.pattern.permute.xlu0 17
      %1383 = vperm.xlu0 %1382, %v759
      %v1384 = vpop.permute.xlu0 %1383
      %1386 = vset.pattern.permute.xlu0 17
      %1387 = vperm.xlu0 %1386, %v760
      %v1388 = vpop.permute.xlu0 %1387
      %v1390 = vmul.f32 %v728, %v1384
      %v1391 = vmul.f32 %v729, %v1384
      %v1392 = vmul.f32 %v730, %v1384
      %v1393 = vmul.f32 %v732, %v1388
      %v1394 = vmul.f32 %v733, %v1388
      %v1395 = vmul.f32 %v734, %v1388
      %1402 = vrot.lane.b32.xlu0 %v1390, 78
      %v1403 = vpop.permute.xlu0 %1402
      %1404 = vrot.lane.b32.xlu0 %v1391, 78
      %v1405 = vpop.permute.xlu0 %1404
      %1406 = vrot.lane.b32.xlu0 %v1392, 78
      %v1407 = vpop.permute.xlu0 %1406
      %1408 = vrot.lane.b32.xlu0 %v1393, 78
      %v1409 = vpop.permute.xlu0 %1408
      %1410 = vrot.lane.b32.xlu0 %v1394, 78
      %v1411 = vpop.permute.xlu0 %1410
      %1412 = vrot.lane.b32.xlu0 %v1395, 78
      %v1413 = vpop.permute.xlu0 %1412
      %vm1414 = vcmask 637952
      %v1415 = vsel %vm1414, %v1403, %v1405
      %v1416 = vsel %vm1414, %v1405, %v1407
      %v1417 = vsel %vm1414, %v1409, %v1411
      %v1418 = vsel %vm1414, %v1411, %v1413
      %v1425 = vadd.f32 %v1376, %v1403
      %v1426 = vadd.f32 %v1377, %v1415
      %v1427 = vadd.f32 %v1378, %v1416
      %v1428 = vadd.f32 %v1379, %v1409
      %v1429 = vadd.f32 %v1380, %v1417
      %v1430 = vadd.f32 %v1381, %v1418
      %1431 = vset.pattern.permute.xlu0 22
      %1432 = vperm.xlu0 %1431, %v759
      %v1433 = vpop.permute.xlu0 %1432
      %1435 = vset.pattern.permute.xlu0 22
      %1436 = vperm.xlu0 %1435, %v760
      %v1437 = vpop.permute.xlu0 %1436
      %v1439 = vmul.f32 %v728, %v1433
      %v1440 = vmul.f32 %v729, %v1433
      %v1441 = vmul.f32 %v730, %v1433
      %v1442 = vmul.f32 %v732, %v1437
      %v1443 = vmul.f32 %v733, %v1437
      %v1444 = vmul.f32 %v734, %v1437
      %1451 = vrot.lane.b32.xlu0 %v1439, 62
      %v1452 = vpop.permute.xlu0 %1451
      %1453 = vrot.lane.b32.xlu0 %v1440, 62
      %v1454 = vpop.permute.xlu0 %1453
      %1455 = vrot.lane.b32.xlu0 %v1441, 62
      %v1456 = vpop.permute.xlu0 %1455
      %1457 = vrot.lane.b32.xlu0 %v1442, 62
      %v1458 = vpop.permute.xlu0 %1457
      %1459 = vrot.lane.b32.xlu0 %v1443, 62
      %v1460 = vpop.permute.xlu0 %1459
      %1461 = vrot.lane.b32.xlu0 %v1444, 62
      %v1462 = vpop.permute.xlu0 %1461
      %vm1463 = vcmask 506880
      %v1464 = vsel %vm1463, %v1452, %v1454
      %v1465 = vsel %vm1463, %v1454, %v1456
      %v1466 = vsel %vm1463, %v1458, %v1460
      %v1467 = vsel %vm1463, %v1460, %v1462
      %v1474 = vadd.f32 %v1425, %v1452
      %v1475 = vadd.f32 %v1426, %v1464
      %v1476 = vadd.f32 %v1427, %v1465
      %v1477 = vadd.f32 %v1428, %v1458
      %v1478 = vadd.f32 %v1429, %v1466
      %v1479 = vadd.f32 %v1430, %v1467
      %1483 = vrot.lane.b32.xlu0 %v584, 97
      %v1484 = vpop.permute.xlu0 %1483
      %1485 = vrot.lane.b32.xlu0 %v585, 97
      %v1486 = vpop.permute.xlu0 %1485
      %1487 = vrot.lane.b32.xlu0 %v586, 97
      %v1488 = vpop.permute.xlu0 %1487
      %vm1489 = vcmask 793600
      %v1490 = vsel %vm1489, %v1484, %v1486
      %v1491 = vsel %vm1489, %v1486, %v1488
      %v1496 = vmul.f32 %v727, %v1484
      %v1497 = vmul.f32 %v728, %v1490
      %v1498 = vmul.f32 %v729, %v1491
      %v1499 = vmul.f32 %v730, %v1488
      %v1500 = vmul.f32 %v731, %v1484
      %v1501 = vmul.f32 %v732, %v1490
      %v1502 = vmul.f32 %v733, %v1491
      %v1503 = vmul.f32 %v734, %v1488
      %1504 = vset.pattern.permute.xlu0 3
      %1505 = vperm.xlu0 %1504, %v759
      %v1506 = vpop.permute.xlu0 %1505
      %1508 = vset.pattern.permute.xlu0 3
      %1509 = vperm.xlu0 %1508, %v760
      %v1510 = vpop.permute.xlu0 %1509
      %v1512 = vmul.f32 %v1496, %v1506
      %v1513 = vmul.f32 %v1497, %v1506
      %v1514 = vmul.f32 %v1498, %v1506
      %v1515 = vmul.f32 %v1500, %v1510
      %v1516 = vmul.f32 %v1501, %v1510
      %v1517 = vmul.f32 %v1502, %v1510
      %1524 = vrot.lane.b32.xlu0 %v1512, 125
      %v1525 = vpop.permute.xlu0 %1524
      %1526 = vrot.lane.b32.xlu0 %v1513, 125
      %v1527 = vpop.permute.xlu0 %1526
      %1528 = vrot.lane.b32.xlu0 %v1514, 125
      %v1529 = vpop.permute.xlu0 %1528
      %1530 = vrot.lane.b32.xlu0 %v1515, 125
      %v1531 = vpop.permute.xlu0 %1530
      %1532 = vrot.lane.b32.xlu0 %v1516, 125
      %v1533 = vpop.permute.xlu0 %1532
      %1534 = vrot.lane.b32.xlu0 %v1517, 125
      %v1535 = vpop.permute.xlu0 %1534
      %vm1536 = vcmask 1022976
      %v1537 = vsel %vm1536, %v1525, %v1527
      %v1538 = vsel %vm1536, %v1527, %v1529
      %v1539 = vsel %vm1536, %v1531, %v1533
      %v1540 = vsel %vm1536, %v1533, %v1535
      %v1547 = vadd.f32 %v1474, %v1537
      %v1548 = vadd.f32 %v1475, %v1538
      %v1549 = vadd.f32 %v1476, %v1529
      %v1550 = vadd.f32 %v1477, %v1539
      %v1551 = vadd.f32 %v1478, %v1540
      %v1552 = vadd.f32 %v1479, %v1535
      %1553 = vset.pattern.permute.xlu0 8
      %1554 = vperm.xlu0 %1553, %v759
      %v1555 = vpop.permute.xlu0 %1554
      %1557 = vset.pattern.permute.xlu0 8
      %1558 = vperm.xlu0 %1557, %v760
      %v1559 = vpop.permute.xlu0 %1558
      %v1561 = vmul.f32 %v1496, %v1555
      %v1562 = vmul.f32 %v1497, %v1555
      %v1563 = vmul.f32 %v1498, %v1555
      %v1564 = vmul.f32 %v1500, %v1559
      %v1565 = vmul.f32 %v1501, %v1559
      %v1566 = vmul.f32 %v1502, %v1559
      %1573 = vrot.lane.b32.xlu0 %v1561, 109
      %v1574 = vpop.permute.xlu0 %1573
      %1575 = vrot.lane.b32.xlu0 %v1562, 109
      %v1576 = vpop.permute.xlu0 %1575
      %1577 = vrot.lane.b32.xlu0 %v1563, 109
      %v1578 = vpop.permute.xlu0 %1577
      %1579 = vrot.lane.b32.xlu0 %v1564, 109
      %v1580 = vpop.permute.xlu0 %1579
      %1581 = vrot.lane.b32.xlu0 %v1565, 109
      %v1582 = vpop.permute.xlu0 %1581
      %1583 = vrot.lane.b32.xlu0 %v1566, 109
      %v1584 = vpop.permute.xlu0 %1583
      %vm1585 = vcmask 891904
      %v1586 = vsel %vm1585, %v1574, %v1576
      %v1587 = vsel %vm1585, %v1576, %v1578
      %v1588 = vsel %vm1585, %v1580, %v1582
      %v1589 = vsel %vm1585, %v1582, %v1584
      %v1596 = vadd.f32 %v1547, %v1586
      %v1597 = vadd.f32 %v1548, %v1587
      %v1598 = vadd.f32 %v1549, %v1578
      %v1599 = vadd.f32 %v1550, %v1588
      %v1600 = vadd.f32 %v1551, %v1589
      %v1601 = vadd.f32 %v1552, %v1584
      %1602 = vset.pattern.permute.xlu0 13
      %1603 = vperm.xlu0 %1602, %v759
      %v1604 = vpop.permute.xlu0 %1603
      %1606 = vset.pattern.permute.xlu0 13
      %1607 = vperm.xlu0 %1606, %v760
      %v1608 = vpop.permute.xlu0 %1607
      %v1610 = vmul.f32 %v1497, %v1604
      %v1611 = vmul.f32 %v1498, %v1604
      %v1612 = vmul.f32 %v1499, %v1604
      %v1613 = vmul.f32 %v1501, %v1608
      %v1614 = vmul.f32 %v1502, %v1608
      %v1615 = vmul.f32 %v1503, %v1608
      %1622 = vrot.lane.b32.xlu0 %v1610, 93
      %v1623 = vpop.permute.xlu0 %1622
      %1624 = vrot.lane.b32.xlu0 %v1611, 93
      %v1625 = vpop.permute.xlu0 %1624
      %1626 = vrot.lane.b32.xlu0 %v1612, 93
      %v1627 = vpop.permute.xlu0 %1626
      %1628 = vrot.lane.b32.xlu0 %v1613, 93
      %v1629 = vpop.permute.xlu0 %1628
      %1630 = vrot.lane.b32.xlu0 %v1614, 93
      %v1631 = vpop.permute.xlu0 %1630
      %1632 = vrot.lane.b32.xlu0 %v1615, 93
      %v1633 = vpop.permute.xlu0 %1632
      %vm1634 = vcmask 760832
      %v1635 = vsel %vm1634, %v1623, %v1625
      %v1636 = vsel %vm1634, %v1625, %v1627
      %v1637 = vsel %vm1634, %v1629, %v1631
      %v1638 = vsel %vm1634, %v1631, %v1633
      %v1645 = vadd.f32 %v1596, %v1623
      %v1646 = vadd.f32 %v1597, %v1635
      %v1647 = vadd.f32 %v1598, %v1636
      %v1648 = vadd.f32 %v1599, %v1629
      %v1649 = vadd.f32 %v1600, %v1637
      %v1650 = vadd.f32 %v1601, %v1638
      %1651 = vset.pattern.permute.xlu0 18
      %1652 = vperm.xlu0 %1651, %v759
      %v1653 = vpop.permute.xlu0 %1652
      %1655 = vset.pattern.permute.xlu0 18
      %1656 = vperm.xlu0 %1655, %v760
      %v1657 = vpop.permute.xlu0 %1656
      %v1659 = vmul.f32 %v1497, %v1653
      %v1660 = vmul.f32 %v1498, %v1653
      %v1661 = vmul.f32 %v1499, %v1653
      %v1662 = vmul.f32 %v1501, %v1657
      %v1663 = vmul.f32 %v1502, %v1657
      %v1664 = vmul.f32 %v1503, %v1657
      %1671 = vrot.lane.b32.xlu0 %v1659, 77
      %v1672 = vpop.permute.xlu0 %1671
      %1673 = vrot.lane.b32.xlu0 %v1660, 77
      %v1674 = vpop.permute.xlu0 %1673
      %1675 = vrot.lane.b32.xlu0 %v1661, 77
      %v1676 = vpop.permute.xlu0 %1675
      %1677 = vrot.lane.b32.xlu0 %v1662, 77
      %v1678 = vpop.permute.xlu0 %1677
      %1679 = vrot.lane.b32.xlu0 %v1663, 77
      %v1680 = vpop.permute.xlu0 %1679
      %1681 = vrot.lane.b32.xlu0 %v1664, 77
      %v1682 = vpop.permute.xlu0 %1681
      %vm1683 = vcmask 629760
      %v1684 = vsel %vm1683, %v1672, %v1674
      %v1685 = vsel %vm1683, %v1674, %v1676
      %v1686 = vsel %vm1683, %v1678, %v1680
      %v1687 = vsel %vm1683, %v1680, %v1682
      %v1694 = vadd.f32 %v1645, %v1672
      %v1695 = vadd.f32 %v1646, %v1684
      %v1696 = vadd.f32 %v1647, %v1685
      %v1697 = vadd.f32 %v1648, %v1678
      %v1698 = vadd.f32 %v1649, %v1686
      %v1699 = vadd.f32 %v1650, %v1687
      %1700 = vset.pattern.permute.xlu0 23
      %1701 = vperm.xlu0 %1700, %v759
      %v1702 = vpop.permute.xlu0 %1701
      %1704 = vset.pattern.permute.xlu0 23
      %1705 = vperm.xlu0 %1704, %v760
      %v1706 = vpop.permute.xlu0 %1705
      %v1708 = vmul.f32 %v1497, %v1702
      %v1709 = vmul.f32 %v1498, %v1702
      %v1710 = vmul.f32 %v1499, %v1702
      %v1711 = vmul.f32 %v1501, %v1706
      %v1712 = vmul.f32 %v1502, %v1706
      %v1713 = vmul.f32 %v1503, %v1706
      %1720 = vrot.lane.b32.xlu0 %v1708, 61
      %v1721 = vpop.permute.xlu0 %1720
      %1722 = vrot.lane.b32.xlu0 %v1709, 61
      %v1723 = vpop.permute.xlu0 %1722
      %1724 = vrot.lane.b32.xlu0 %v1710, 61
      %v1725 = vpop.permute.xlu0 %1724
      %1726 = vrot.lane.b32.xlu0 %v1711, 61
      %v1727 = vpop.permute.xlu0 %1726
      %1728 = vrot.lane.b32.xlu0 %v1712, 61
      %v1729 = vpop.permute.xlu0 %1728
      %1730 = vrot.lane.b32.xlu0 %v1713, 61
      %v1731 = vpop.permute.xlu0 %1730
      %vm1732 = vcmask 498688
      %v1733 = vsel %vm1732, %v1721, %v1723
      %v1734 = vsel %vm1732, %v1723, %v1725
      %v1735 = vsel %vm1732, %v1727, %v1729
      %v1736 = vsel %vm1732, %v1729, %v1731
      %v1743 = vadd.f32 %v1694, %v1721
      %v1744 = vadd.f32 %v1695, %v1733
      %v1745 = vadd.f32 %v1696, %v1734
      %v1746 = vadd.f32 %v1697, %v1727
      %v1747 = vadd.f32 %v1698, %v1735
      %v1748 = vadd.f32 %v1699, %v1736
      %1752 = vrot.lane.b32.xlu0 %v602, 98
      %v1753 = vpop.permute.xlu0 %1752
      %1754 = vrot.lane.b32.xlu0 %v603, 98
      %v1755 = vpop.permute.xlu0 %1754
      %1756 = vrot.lane.b32.xlu0 %v604, 98
      %v1757 = vpop.permute.xlu0 %1756
      %vm1758 = vcmask 801792
      %v1759 = vsel %vm1758, %v1753, %v1755
      %v1760 = vsel %vm1758, %v1755, %v1757
      %v1765 = vmul.f32 %v727, %v1753
      %v1766 = vmul.f32 %v728, %v1759
      %v1767 = vmul.f32 %v729, %v1760
      %v1768 = vmul.f32 %v730, %v1757
      %v1769 = vmul.f32 %v731, %v1753
      %v1770 = vmul.f32 %v732, %v1759
      %v1771 = vmul.f32 %v733, %v1760
      %v1772 = vmul.f32 %v734, %v1757
      %1773 = vset.pattern.permute.xlu0 4
      %1774 = vperm.xlu0 %1773, %v759
      %v1775 = vpop.permute.xlu0 %1774
      %1777 = vset.pattern.permute.xlu0 4
      %1778 = vperm.xlu0 %1777, %v760
      %v1779 = vpop.permute.xlu0 %1778
      %v1781 = vmul.f32 %v1765, %v1775
      %v1782 = vmul.f32 %v1766, %v1775
      %v1783 = vmul.f32 %v1767, %v1775
      %v1784 = vmul.f32 %v1769, %v1779
      %v1785 = vmul.f32 %v1770, %v1779
      %v1786 = vmul.f32 %v1771, %v1779
      %1793 = vrot.lane.b32.xlu0 %v1781, 124
      %v1794 = vpop.permute.xlu0 %1793
      %1795 = vrot.lane.b32.xlu0 %v1782, 124
      %v1796 = vpop.permute.xlu0 %1795
      %1797 = vrot.lane.b32.xlu0 %v1783, 124
      %v1798 = vpop.permute.xlu0 %1797
      %1799 = vrot.lane.b32.xlu0 %v1784, 124
      %v1800 = vpop.permute.xlu0 %1799
      %1801 = vrot.lane.b32.xlu0 %v1785, 124
      %v1802 = vpop.permute.xlu0 %1801
      %1803 = vrot.lane.b32.xlu0 %v1786, 124
      %v1804 = vpop.permute.xlu0 %1803
      %vm1805 = vcmask 1014784
      %v1806 = vsel %vm1805, %v1794, %v1796
      %v1807 = vsel %vm1805, %v1796, %v1798
      %v1808 = vsel %vm1805, %v1800, %v1802
      %v1809 = vsel %vm1805, %v1802, %v1804
      %v1816 = vadd.f32 %v1743, %v1806
      %v1817 = vadd.f32 %v1744, %v1807
      %v1818 = vadd.f32 %v1745, %v1798
      %v1819 = vadd.f32 %v1746, %v1808
      %v1820 = vadd.f32 %v1747, %v1809
      %v1821 = vadd.f32 %v1748, %v1804
      %1822 = vset.pattern.permute.xlu0 9
      %1823 = vperm.xlu0 %1822, %v759
      %v1824 = vpop.permute.xlu0 %1823
      %1826 = vset.pattern.permute.xlu0 9
      %1827 = vperm.xlu0 %1826, %v760
      %v1828 = vpop.permute.xlu0 %1827
      %v1830 = vmul.f32 %v1765, %v1824
      %v1831 = vmul.f32 %v1766, %v1824
      %v1832 = vmul.f32 %v1767, %v1824
      %v1833 = vmul.f32 %v1769, %v1828
      %v1834 = vmul.f32 %v1770, %v1828
      %v1835 = vmul.f32 %v1771, %v1828
      %1842 = vrot.lane.b32.xlu0 %v1830, 108
      %v1843 = vpop.permute.xlu0 %1842
      %1844 = vrot.lane.b32.xlu0 %v1831, 108
      %v1845 = vpop.permute.xlu0 %1844
      %1846 = vrot.lane.b32.xlu0 %v1832, 108
      %v1847 = vpop.permute.xlu0 %1846
      %1848 = vrot.lane.b32.xlu0 %v1833, 108
      %v1849 = vpop.permute.xlu0 %1848
      %1850 = vrot.lane.b32.xlu0 %v1834, 108
      %v1851 = vpop.permute.xlu0 %1850
      %1852 = vrot.lane.b32.xlu0 %v1835, 108
      %v1853 = vpop.permute.xlu0 %1852
      %vm1854 = vcmask 883712
      %v1855 = vsel %vm1854, %v1843, %v1845
      %v1856 = vsel %vm1854, %v1845, %v1847
      %v1857 = vsel %vm1854, %v1849, %v1851
      %v1858 = vsel %vm1854, %v1851, %v1853
      %v1865 = vadd.f32 %v1816, %v1855
      %v1866 = vadd.f32 %v1817, %v1856
      %v1867 = vadd.f32 %v1818, %v1847
      %v1868 = vadd.f32 %v1819, %v1857
      %v1869 = vadd.f32 %v1820, %v1858
      %v1870 = vadd.f32 %v1821, %v1853
      %1871 = vset.pattern.permute.xlu0 14
      %1872 = vperm.xlu0 %1871, %v759
      %v1873 = vpop.permute.xlu0 %1872
      %1875 = vset.pattern.permute.xlu0 14
      %1876 = vperm.xlu0 %1875, %v760
      %v1877 = vpop.permute.xlu0 %1876
      %v1879 = vmul.f32 %v1766, %v1873
      %v1880 = vmul.f32 %v1767, %v1873
      %v1881 = vmul.f32 %v1768, %v1873
      %v1882 = vmul.f32 %v1770, %v1877
      %v1883 = vmul.f32 %v1771, %v1877
      %v1884 = vmul.f32 %v1772, %v1877
      %1891 = vrot.lane.b32.xlu0 %v1879, 92
      %v1892 = vpop.permute.xlu0 %1891
      %1893 = vrot.lane.b32.xlu0 %v1880, 92
      %v1894 = vpop.permute.xlu0 %1893
      %1895 = vrot.lane.b32.xlu0 %v1881, 92
      %v1896 = vpop.permute.xlu0 %1895
      %1897 = vrot.lane.b32.xlu0 %v1882, 92
      %v1898 = vpop.permute.xlu0 %1897
      %1899 = vrot.lane.b32.xlu0 %v1883, 92
      %v1900 = vpop.permute.xlu0 %1899
      %1901 = vrot.lane.b32.xlu0 %v1884, 92
      %v1902 = vpop.permute.xlu0 %1901
      %vm1903 = vcmask 752640
      %v1904 = vsel %vm1903, %v1892, %v1894
      %v1905 = vsel %vm1903, %v1894, %v1896
      %v1906 = vsel %vm1903, %v1898, %v1900
      %v1907 = vsel %vm1903, %v1900, %v1902
      %v1914 = vadd.f32 %v1865, %v1892
      %v1915 = vadd.f32 %v1866, %v1904
      %v1916 = vadd.f32 %v1867, %v1905
      %v1917 = vadd.f32 %v1868, %v1898
      %v1918 = vadd.f32 %v1869, %v1906
      %v1919 = vadd.f32 %v1870, %v1907
      %1920 = vset.pattern.permute.xlu0 19
      %1921 = vperm.xlu0 %1920, %v759
      %v1922 = vpop.permute.xlu0 %1921
      %1924 = vset.pattern.permute.xlu0 19
      %1925 = vperm.xlu0 %1924, %v760
      %v1926 = vpop.permute.xlu0 %1925
      %v1928 = vmul.f32 %v1766, %v1922
      %v1929 = vmul.f32 %v1767, %v1922
      %v1930 = vmul.f32 %v1768, %v1922
      %v1931 = vmul.f32 %v1770, %v1926
      %v1932 = vmul.f32 %v1771, %v1926
      %v1933 = vmul.f32 %v1772, %v1926
      %1940 = vrot.lane.b32.xlu0 %v1928, 76
      %v1941 = vpop.permute.xlu0 %1940
      %1942 = vrot.lane.b32.xlu0 %v1929, 76
      %v1943 = vpop.permute.xlu0 %1942
      %1944 = vrot.lane.b32.xlu0 %v1930, 76
      %v1945 = vpop.permute.xlu0 %1944
      %1946 = vrot.lane.b32.xlu0 %v1931, 76
      %v1947 = vpop.permute.xlu0 %1946
      %1948 = vrot.lane.b32.xlu0 %v1932, 76
      %v1949 = vpop.permute.xlu0 %1948
      %1950 = vrot.lane.b32.xlu0 %v1933, 76
      %v1951 = vpop.permute.xlu0 %1950
      %vm1952 = vcmask 621568
      %v1953 = vsel %vm1952, %v1941, %v1943
      %v1954 = vsel %vm1952, %v1943, %v1945
      %v1955 = vsel %vm1952, %v1947, %v1949
      %v1956 = vsel %vm1952, %v1949, %v1951
      %v1963 = vadd.f32 %v1914, %v1941
      %v1964 = vadd.f32 %v1915, %v1953
      %v1965 = vadd.f32 %v1916, %v1954
      %v1966 = vadd.f32 %v1917, %v1947
      %v1967 = vadd.f32 %v1918, %v1955
      %v1968 = vadd.f32 %v1919, %v1956
      %1969 = vset.pattern.permute.xlu0 24
      %1970 = vperm.xlu0 %1969, %v759
      %v1971 = vpop.permute.xlu0 %1970
      %1973 = vset.pattern.permute.xlu0 24
      %1974 = vperm.xlu0 %1973, %v760
      %v1975 = vpop.permute.xlu0 %1974
      %v1977 = vmul.f32 %v1766, %v1971
      %v1978 = vmul.f32 %v1767, %v1971
      %v1979 = vmul.f32 %v1768, %v1971
      %v1980 = vmul.f32 %v1770, %v1975
      %v1981 = vmul.f32 %v1771, %v1975
      %v1982 = vmul.f32 %v1772, %v1975
      %1989 = vrot.lane.b32.xlu0 %v1977, 60
      %v1990 = vpop.permute.xlu0 %1989
      %1991 = vrot.lane.b32.xlu0 %v1978, 60
      %v1992 = vpop.permute.xlu0 %1991
      %1993 = vrot.lane.b32.xlu0 %v1979, 60
      %v1994 = vpop.permute.xlu0 %1993
      %1995 = vrot.lane.b32.xlu0 %v1980, 60
      %v1996 = vpop.permute.xlu0 %1995
      %1997 = vrot.lane.b32.xlu0 %v1981, 60
      %v1998 = vpop.permute.xlu0 %1997
      %1999 = vrot.lane.b32.xlu0 %v1982, 60
      %v2000 = vpop.permute.xlu0 %1999
      %vm2001 = vcmask 490496
      %v2002 = vsel %vm2001, %v1990, %v1992
      %v2003 = vsel %vm2001, %v1992, %v1994
      %v2004 = vsel %vm2001, %v1996, %v1998
      %v2005 = vsel %vm2001, %v1998, %v2000
      %v2012 = vadd.f32 %v1963, %v1990
      %v2013 = vadd.f32 %v1964, %v2002
      %v2014 = vadd.f32 %v1965, %v2003
      %v2015 = vadd.f32 %v1966, %v1996
      %v2016 = vadd.f32 %v1967, %v2004
      %v2017 = vadd.f32 %v1968, %v2005
      %v2018 = vld [vmem:[%s5] sm:$0xff]
      %v2019 = vld [vmem:[%s5 + $0x8] sm:$0xff]
      %2021 = vset.pattern.permute.xlu0 0
      %2022 = vperm.xlu0 %2021, %v2018
      %v2023 = vpop.permute.xlu0 %2022
      %2026 = vset.pattern.permute.xlu0 0
      %2027 = vperm.xlu0 %2026, %v2019
      %v2028 = vpop.permute.xlu0 %2027
      %v2030 = vmul.f32 %v2012, %v2023
      %v2031 = vmul.f32 %v2013, %v2023
      %v2032 = vmul.f32 %v2014, %v2023
      %v2033 = vmul.f32 %v2015, %v2028
      %v2034 = vmul.f32 %v2016, %v2028
      %v2035 = vmul.f32 %v2017, %v2028
      %v2036 = vld [vmem:[%s6] sm:$0xff]
      %v2037 = vld [vmem:[%s6 + $0x8] sm:$0xff]
      %2039 = vset.pattern.permute.xlu0 0
      %2040 = vperm.xlu0 %2039, %v2036
      %v2041 = vpop.permute.xlu0 %2040
      %2044 = vset.pattern.permute.xlu0 0
      %2045 = vperm.xlu0 %2044, %v2037
      %v2046 = vpop.permute.xlu0 %2045
      %v2048 = vadd.f32 %v2030, %v2041
      %v2049 = vadd.f32 %v2031, %v2041
      %v2050 = vadd.f32 %v2032, %v2041
      %v2051 = vadd.f32 %v2033, %v2046
      %v2052 = vadd.f32 %v2034, %v2046
      %v2053 = vadd.f32 %v2035, %v2046
      %v2054 = vsub.f32 0.0, %v2048
      %v2055 = vsub.f32 0.0, %v2049
      %v2056 = vsub.f32 0.0, %v2050
      %v2057 = vsub.f32 0.0, %v2051
      %v2058 = vsub.f32 0.0, %v2052
      %v2059 = vsub.f32 0.0, %v2053
      %v2060 = vmul.f32 %v2054, 1.442695
      %v2061 = vpow.pop %v2060
      %v2062 = vmul.f32 %v2055, 1.442695
      %v2063 = vpow.pop %v2062
      %v2064 = vmul.f32 %v2056, 1.442695
      %v2065 = vpow.pop %v2064
      %v2066 = vmul.f32 %v2057, 1.442695
      %v2067 = vpow.pop %v2066
      %v2068 = vmul.f32 %v2058, 1.442695
      %v2069 = vpow.pop %v2068
      %v2070 = vmul.f32 %v2059, 1.442695
      %v2071 = vpow.pop %v2070
      %v2072 = vadd.f32 %v2061, 1.0
      %v2073 = vadd.f32 %v2063, 1.0
      %v2074 = vadd.f32 %v2065, 1.0
      %v2075 = vadd.f32 %v2067, 1.0
      %v2076 = vadd.f32 %v2069, 1.0
      %v2077 = vadd.f32 %v2071, 1.0
      %v2078 = vrcp.pop %v2072
      %v2079 = vmul.f32 1.0, %v2078
      %v2080 = vrcp.pop %v2073
      %v2081 = vmul.f32 1.0, %v2080
      %v2082 = vrcp.pop %v2074
      %v2083 = vmul.f32 1.0, %v2082
      %v2084 = vrcp.pop %v2075
      %v2085 = vmul.f32 1.0, %v2084
      %v2086 = vrcp.pop %v2076
      %v2087 = vmul.f32 1.0, %v2086
      %v2088 = vrcp.pop %v2077
      %v2089 = vmul.f32 1.0, %v2088
      %v2090 = vmul.f32 %v2048, %v2079
      %v2091 = vmul.f32 %v2049, %v2081
      %v2092 = vmul.f32 %v2050, %v2083
      %v2093 = vmul.f32 %v2051, %v2085
      %v2094 = vmul.f32 %v2052, %v2087
      %v2095 = vmul.f32 %v2053, %v2089
      %v2096 = vld [vmem:[%s7] sm:$0xf]
      %v2097 = vld [vmem:[%s7 + $0x4] sm:$0xf]
      %v2098 = vld [vmem:[%s7 + $0x8] sm:$0xf]
      %v2099 = vld [vmem:[%s7 + $0xc] sm:$0xf]
      %v2100 = vpack.c.bf16 %v717, %v715
      %v2101 = vpack.c.bf16 %v718, %v716
      %v2102 = vld [vmem:[%s8] sm:$0xf]
      %v2103 = vld [vmem:[%s8 + $0x4] sm:$0xf]
      %v2104 = vld [vmem:[%s8 + $0x8] sm:$0xf]
      %v2105 = vld [vmem:[%s8 + $0xc] sm:$0xf]
      %v2106 = vpack.c.bf16 %v2093, %v2090
      %v2107 = vpack.c.bf16 %v2094, %v2091
      %v2108 = vpack.c.bf16 %v2095, %v2092
      %v2113 = vunpack.c.l.b16 %v2102
      %v2114 = vunpack.c.l.b16 %v2103
      %v2115 = vunpack.c.l.b16 %v2104
      %v2116 = vunpack.c.l.b16 %v2105
      %v2117 = vpack.c.b16 %v2114, %v2113
      %v2118 = vpack.c.b16 %v2116, %v2115
      %2122 = vrot.lane.b32.xlu0 %v2106, 34
      %v2123 = vpop.permute.xlu0 %2122
      %2124 = vrot.lane.b32.xlu0 %v2107, 34
      %v2125 = vpop.permute.xlu0 %2124
      %2126 = vrot.lane.b32.xlu0 %v2108, 34
      %v2127 = vpop.permute.xlu0 %2126
      %vm2128 = vcmask 277504
      %v2129 = vsel %vm2128, %v2123, %v2125
      %v2130 = vsel %vm2128, %v2125, %v2127
      %vm2133 = vcmask 130048
      %v2135 = vsel %vm2133, %v2117, 0
      %v2138 = vsel %vm2133, %v2118, 0
      %2140 = vmatprep.subr.bf16.mxu0 %v2130
      %2141 = vmatpush1.bf16.msra.mxu0 %v2129
      %2142 = vmatprep.subr.bf16.mxu0 0
      %2143 = vmatpush1.bf16.msra.mxu0 0
      %2144 = vmatprep.subr.bf16.mxu0 0
      %2145 = vmatpush1.bf16.msra.mxu0 0
      %2146 = vmatprep.subr.bf16.mxu0 0
      %2147 = vmatpush1.bf16.msra.mxu0 0
      %2148 = vmatprep.subr.bf16.mxu0 0
      %2149 = vmatpush1.bf16.msra.mxu0 0
      %2150 = vmatprep.subr.bf16.mxu0 0
      %2151 = vmatpush1.bf16.msra.mxu0 0
      %2152 = vmatprep.subr.bf16.mxu0 0
      %2153 = vmatpush1.bf16.msra.mxu0 0
      %2154 = vmatprep.subr.bf16.mxu0 0
      %2155 = vmatpush1.bf16.msra.mxu0 0
      %2156 = vmatprep.subr.bf16.mxu0 0
      %2157 = vmatpush1.bf16.msra.mxu0 0
      %2158 = vmatprep.subr.bf16.mxu0 0
      %2159 = vmatpush1.bf16.msra.mxu0 0
      %2160 = vmatprep.subr.bf16.mxu0 0
      %2161 = vmatpush1.bf16.msra.mxu0 0
      %2162 = vmatprep.subr.bf16.mxu0 0
      %2163 = vmatpush1.bf16.msra.mxu0 0
      %2164 = vmatprep.subr.bf16.mxu0 0
      %2165 = vmatpush1.bf16.msra.mxu0 0
      %2166 = vmatprep.subr.bf16.mxu0 0
      %2167 = vmatpush1.bf16.msra.mxu0 0
      %2168 = vmatprep.subr.bf16.mxu0 0
      %2169 = vmatpush1.bf16.msra.mxu0 0
      %2170 = vmatprep.subr.bf16.mxu0 0
      %2171 = vmatpush1.bf16.msra.mxu0 0
      %2172 = vmatprep.mubr.bf16.mxu0 0
      %2173 = vmatmul.mubr.bf16.gmra.mrb[0].mxu0 %v2135
      %v2174 = vpop.f32.mrb[0].mxu0
      %v2175 = vadd.f32 0.0, %v2174
      %v2176 = vpop.f32.mrb[0].mxu0
      %v2177 = vadd.f32 0.0, %v2176
      %v2178 = vpop.f32.mrb[0].mxu0
      %v2179 = vadd.f32 0.0, %v2178
      %v2180 = vpop.f32.mrb[0].mxu0
      %v2181 = vadd.f32 0.0, %v2180
      %2182 = vmatprep.mubr.bf16.mxu0 0
      %2183 = vmatmul.mubr.bf16.gmra.mrb[0].mxu0 %v2138
      %v2184 = vpop.f32.mrb[0].mxu0
      %v2185 = vadd.f32 0.0, %v2184
      %v2186 = vpop.f32.mrb[0].mxu0
      %v2187 = vadd.f32 0.0, %v2186
      %v2188 = vpop.f32.mrb[0].mxu0
      %v2189 = vadd.f32 0.0, %v2188
      %v2190 = vpop.f32.mrb[0].mxu0
      %v2191 = vadd.f32 0.0, %v2190
      %2192 = vdwg.mxu0
      %v2197 = vunpack.c.l.b16 %v2096
      %v2198 = vunpack.c.l.b16 %v2097
      %v2199 = vunpack.c.l.b16 %v2098
      %v2200 = vunpack.c.l.b16 %v2099
      %v2201 = vpack.c.b16 %v2198, %v2197
      %v2202 = vpack.c.b16 %v2200, %v2199
      %v2204 = vsel %vm2133, %v2201, 0
      %v2207 = vsel %vm2133, %v2202, 0
      %2209 = vmatprep.subr.bf16.mxu0 %v2101
      %2210 = vmatpush1.bf16.msra.mxu0 %v2100
      %2211 = vmatprep.subr.bf16.mxu0 0
      %2212 = vmatpush1.bf16.msra.mxu0 0
      %2213 = vmatprep.subr.bf16.mxu0 0
      %2214 = vmatpush1.bf16.msra.mxu0 0
      %2215 = vmatprep.subr.bf16.mxu0 0
      %2216 = vmatpush1.bf16.msra.mxu0 0
      %2217 = vmatprep.subr.bf16.mxu0 0
      %2218 = vmatpush1.bf16.msra.mxu0 0
      %2219 = vmatprep.subr.bf16.mxu0 0
      %2220 = vmatpush1.bf16.msra.mxu0 0
      %2221 = vmatprep.subr.bf16.mxu0 0
      %2222 = vmatpush1.bf16.msra.mxu0 0
      %2223 = vmatprep.subr.bf16.mxu0 0
      %2224 = vmatpush1.bf16.msra.mxu0 0
      %2225 = vmatprep.subr.bf16.mxu0 0
      %2226 = vmatpush1.bf16.msra.mxu0 0
      %2227 = vmatprep.subr.bf16.mxu0 0
      %2228 = vmatpush1.bf16.msra.mxu0 0
      %2229 = vmatprep.subr.bf16.mxu0 0
      %2230 = vmatpush1.bf16.msra.mxu0 0
      %2231 = vmatprep.subr.bf16.mxu0 0
      %2232 = vmatpush1.bf16.msra.mxu0 0
      %2233 = vmatprep.subr.bf16.mxu0 0
      %2234 = vmatpush1.bf16.msra.mxu0 0
      %2235 = vmatprep.subr.bf16.mxu0 0
      %2236 = vmatpush1.bf16.msra.mxu0 0
      %2237 = vmatprep.subr.bf16.mxu0 0
      %2238 = vmatpush1.bf16.msra.mxu0 0
      %2239 = vmatprep.subr.bf16.mxu0 0
      %2240 = vmatpush1.bf16.msra.mxu0 0
      %2241 = vmatprep.mubr.bf16.mxu0 0
      %2242 = vmatmul.mubr.bf16.gmra.mrb[0].mxu0 %v2204
      %v2243 = vpop.f32.mrb[0].mxu0
      %v2244 = vadd.f32 %v2175, %v2243
      %v2245 = vpop.f32.mrb[0].mxu0
      %v2246 = vadd.f32 %v2177, %v2245
      %v2247 = vpop.f32.mrb[0].mxu0
      %v2248 = vadd.f32 %v2179, %v2247
      %v2249 = vpop.f32.mrb[0].mxu0
      %v2250 = vadd.f32 %v2181, %v2249
      %2251 = vmatprep.mubr.bf16.mxu0 0
      %2252 = vmatmul.mubr.bf16.gmra.mrb[0].mxu0 %v2207
      %v2253 = vpop.f32.mrb[0].mxu0
      %v2254 = vadd.f32 %v2185, %v2253
      %v2255 = vpop.f32.mrb[0].mxu0
      %v2256 = vadd.f32 %v2187, %v2255
      %v2257 = vpop.f32.mrb[0].mxu0
      %v2258 = vadd.f32 %v2189, %v2257
      %v2259 = vpop.f32.mrb[0].mxu0
      %v2260 = vadd.f32 %v2191, %v2259
      %2261 = vdwg.mxu0
      %v2262 = vld [vmem:[%s9] sm:$0xff]
      %v2263 = vld [vmem:[%s9 + $0x8] sm:$0xff]
      %v2264 = vld [vmem:[%s9 + $0x10] sm:$0xff]
      %v2265 = vld [vmem:[%s9 + $0x18] sm:$0xff]
      %2267 = vset.pattern.permute.xlu0 0
      %2268 = vperm.xlu0 %2267, %v2262
      %v2269 = vpop.permute.xlu0 %2268
      %2272 = vset.pattern.permute.xlu0 0
      %2273 = vperm.xlu0 %2272, %v2263
      %v2274 = vpop.permute.xlu0 %2273
      %2277 = vset.pattern.permute.xlu0 0
      %2278 = vperm.xlu0 %2277, %v2264
      %v2279 = vpop.permute.xlu0 %2278
      %2282 = vset.pattern.permute.xlu0 0
      %2283 = vperm.xlu0 %2282, %v2265
      %v2284 = vpop.permute.xlu0 %2283
      %v2286 = vmul.f32 %v2244, %v2269
      %v2287 = vmul.f32 %v2246, %v2269
      %v2288 = vmul.f32 %v2248, %v2274
      %v2289 = vmul.f32 %v2250, %v2274
      %v2290 = vmul.f32 %v2254, %v2279
      %v2291 = vmul.f32 %v2256, %v2279
      %v2292 = vmul.f32 %v2258, %v2284
      %v2293 = vmul.f32 %v2260, %v2284
      %v2294 = vld [vmem:[%s10] sm:$0xff]
      %v2295 = vld [vmem:[%s10 + $0x8] sm:$0xff]
      %v2296 = vld [vmem:[%s10 + $0x10] sm:$0xff]
      %v2297 = vld [vmem:[%s10 + $0x18] sm:$0xff]
      %2299 = vset.pattern.permute.xlu0 0
      %2300 = vperm.xlu0 %2299, %v2294
      %v2301 = vpop.permute.xlu0 %2300
      %2304 = vset.pattern.permute.xlu0 0
      %2305 = vperm.xlu0 %2304, %v2295
      %v2306 = vpop.permute.xlu0 %2305
      %2309 = vset.pattern.permute.xlu0 0
      %2310 = vperm.xlu0 %2309, %v2296
      %v2311 = vpop.permute.xlu0 %2310
      %2314 = vset.pattern.permute.xlu0 0
      %2315 = vperm.xlu0 %2314, %v2297
      %v2316 = vpop.permute.xlu0 %2315
      %v2318 = vadd.f32 %v2286, %v2301
      %v2319 = vadd.f32 %v2287, %v2301
      %v2320 = vadd.f32 %v2288, %v2306
      %v2321 = vadd.f32 %v2289, %v2306
      %v2322 = vadd.f32 %v2290, %v2311
      %v2323 = vadd.f32 %v2291, %v2311
      %v2324 = vadd.f32 %v2292, %v2316
      %v2325 = vadd.f32 %v2293, %v2316
      %2326 = vst [vmem:[#allocation3] sm:$0xff] 0.0
      %2327 = vst [vmem:[#allocation3 + $0x20] sm:$0xff] 0.0
      %2328 = vst [vmem:[#allocation3 + $0x40] sm:$0xff] 0.0
      %2329 = vst [vmem:[#allocation3 + $0x60] sm:$0xff] 0.0
      %2330 = vst [vmem:[#allocation3 + $0x18] sm:$0xff] 0.0
      %2331 = vst [vmem:[#allocation3 + $0x38] sm:$0xff] 0.0
      %2332 = vst [vmem:[#allocation3 + $0x58] sm:$0xff] 0.0
      %2333 = vst [vmem:[#allocation3 + $0x78] sm:$0xff] 0.0
      %2334 = vst [vmem:[#allocation3 + $0x8] sm:$0xff] %v2318
      %2335 = vst [vmem:[#allocation3 + $0x10] sm:$0xff] %v2319
      %2336 = vst [vmem:[#allocation3 + $0x28] sm:$0xff] %v2320
      %2337 = vst [vmem:[#allocation3 + $0x30] sm:$0xff] %v2321
      %2338 = vst [vmem:[#allocation3 + $0x48] sm:$0xff] %v2322
      %2339 = vst [vmem:[#allocation3 + $0x50] sm:$0xff] %v2323
      %2340 = vst [vmem:[#allocation3 + $0x68] sm:$0xff] %v2324
      %2341 = vst [vmem:[#allocation3 + $0x70] sm:$0xff] %v2325
      %v2342 = vld [vmem:[#allocation3] sm:$0xff]
      %v2343 = vld [vmem:[#allocation3 + $0x8] sm:$0xff]
      %v2344 = vld [vmem:[#allocation3 + $0x10] sm:$0xff]
      %v2345 = vld [vmem:[#allocation3 + $0x18] sm:$0xff]
      %v2346 = vld [vmem:[#allocation3 + $0x20] sm:$0xff]
      %v2347 = vld [vmem:[#allocation3 + $0x28] sm:$0xff]
      %v2348 = vld [vmem:[#allocation3 + $0x30] sm:$0xff]
      %v2349 = vld [vmem:[#allocation3 + $0x38] sm:$0xff]
      %v2350 = vld [vmem:[#allocation3 + $0x40] sm:$0xff]
      %v2351 = vld [vmem:[#allocation3 + $0x48] sm:$0xff]
      %v2352 = vld [vmem:[#allocation3 + $0x50] sm:$0xff]
      %v2353 = vld [vmem:[#allocation3 + $0x58] sm:$0xff]
      %v2354 = vld [vmem:[#allocation3 + $0x60] sm:$0xff]
      %v2355 = vld [vmem:[#allocation3 + $0x68] sm:$0xff]
      %v2356 = vld [vmem:[#allocation3 + $0x70] sm:$0xff]
      %v2357 = vld [vmem:[#allocation3 + $0x78] sm:$0xff]
      %v2358 = vmul.f32 %v2342, %v739
      %v2359 = vmul.f32 %v2343, %v745
      %v2360 = vmul.f32 %v2344, %v746
      %v2361 = vmul.f32 %v2345, %v743
      %v2362 = vmul.f32 %v2346, %v739
      %v2363 = vmul.f32 %v2347, %v745
      %v2364 = vmul.f32 %v2348, %v746
      %v2365 = vmul.f32 %v2349, %v743
      %v2366 = vmul.f32 %v2350, %v739
      %v2367 = vmul.f32 %v2351, %v745
      %v2368 = vmul.f32 %v2352, %v746
      %v2369 = vmul.f32 %v2353, %v743
      %v2370 = vmul.f32 %v2354, %v739
      %v2371 = vmul.f32 %v2355, %v745
      %v2372 = vmul.f32 %v2356, %v746
      %v2373 = vmul.f32 %v2357, %v743
      %v2374 = vld [vmem:[%s11] sm:$0xff]
      %v2375 = vld [vmem:[%s11 + $0x8] sm:$0xff]
      %v2376 = vld [vmem:[%s11 + $0x10] sm:$0xff]
      %v2377 = vld [vmem:[%s11 + $0x18] sm:$0xff]
      %2379 = vset.pattern.permute.xlu0 0
      %2380 = vperm.xlu0 %2379, %v2374
      %v2381 = vpop.permute.xlu0 %2380
      %2384 = vset.pattern.permute.xlu0 0
      %2385 = vperm.xlu0 %2384, %v2375
      %v2386 = vpop.permute.xlu0 %2385
      %2389 = vset.pattern.permute.xlu0 0
      %2390 = vperm.xlu0 %2389, %v2376
      %v2391 = vpop.permute.xlu0 %2390
      %2394 = vset.pattern.permute.xlu0 0
      %2395 = vperm.xlu0 %2394, %v2377
      %v2396 = vpop.permute.xlu0 %2395
      %v2398 = vmul.f32 %v2358, %v2381
      %v2399 = vmul.f32 %v2359, %v2381
      %v2400 = vmul.f32 %v2360, %v2381
      %v2401 = vmul.f32 %v2362, %v2386
      %v2402 = vmul.f32 %v2363, %v2386
      %v2403 = vmul.f32 %v2364, %v2386
      %v2404 = vmul.f32 %v2366, %v2391
      %v2405 = vmul.f32 %v2367, %v2391
      %v2406 = vmul.f32 %v2368, %v2391
      %v2407 = vmul.f32 %v2370, %v2396
      %v2408 = vmul.f32 %v2371, %v2396
      %v2409 = vmul.f32 %v2372, %v2396
      %v2410 = vadd.f32 %v2398, 0.0
      %v2411 = vadd.f32 %v2399, 0.0
      %v2412 = vadd.f32 %v2400, 0.0
      %v2413 = vadd.f32 %v2401, 0.0
      %v2414 = vadd.f32 %v2402, 0.0
      %v2415 = vadd.f32 %v2403, 0.0
      %v2416 = vadd.f32 %v2404, 0.0
      %v2417 = vadd.f32 %v2405, 0.0
      %v2418 = vadd.f32 %v2406, 0.0
      %v2419 = vadd.f32 %v2407, 0.0
      %v2420 = vadd.f32 %v2408, 0.0
      %v2421 = vadd.f32 %v2409, 0.0
      %2422 = vset.pattern.permute.xlu0 5
      %2423 = vperm.xlu0 %2422, %v2374
      %v2424 = vpop.permute.xlu0 %2423
      %2426 = vset.pattern.permute.xlu0 5
      %2427 = vperm.xlu0 %2426, %v2375
      %v2428 = vpop.permute.xlu0 %2427
      %2430 = vset.pattern.permute.xlu0 5
      %2431 = vperm.xlu0 %2430, %v2376
      %v2432 = vpop.permute.xlu0 %2431
      %2434 = vset.pattern.permute.xlu0 5
      %2435 = vperm.xlu0 %2434, %v2377
      %v2436 = vpop.permute.xlu0 %2435
      %v2438 = vmul.f32 %v2358, %v2424
      %v2439 = vmul.f32 %v2359, %v2424
      %v2440 = vmul.f32 %v2360, %v2424
      %v2441 = vmul.f32 %v2362, %v2428
      %v2442 = vmul.f32 %v2363, %v2428
      %v2443 = vmul.f32 %v2364, %v2428
      %v2444 = vmul.f32 %v2366, %v2432
      %v2445 = vmul.f32 %v2367, %v2432
      %v2446 = vmul.f32 %v2368, %v2432
      %v2447 = vmul.f32 %v2370, %v2436
      %v2448 = vmul.f32 %v2371, %v2436
      %v2449 = vmul.f32 %v2372, %v2436
      %2462 = vrot.lane.b32.xlu0 %v2438, 112
      %v2463 = vpop.permute.xlu0 %2462
      %2464 = vrot.lane.b32.xlu0 %v2439, 112
      %v2465 = vpop.permute.xlu0 %2464
      %2466 = vrot.lane.b32.xlu0 %v2440, 112
      %v2467 = vpop.permute.xlu0 %2466
      %2468 = vrot.lane.b32.xlu0 %v2441, 112
      %v2469 = vpop.permute.xlu0 %2468
      %2470 = vrot.lane.b32.xlu0 %v2442, 112
      %v2471 = vpop.permute.xlu0 %2470
      %2472 = vrot.lane.b32.xlu0 %v2443, 112
      %v2473 = vpop.permute.xlu0 %2472
      %2474 = vrot.lane.b32.xlu0 %v2444, 112
      %v2475 = vpop.permute.xlu0 %2474
      %2476 = vrot.lane.b32.xlu0 %v2445, 112
      %v2477 = vpop.permute.xlu0 %2476
      %2478 = vrot.lane.b32.xlu0 %v2446, 112
      %v2479 = vpop.permute.xlu0 %2478
      %2480 = vrot.lane.b32.xlu0 %v2447, 112
      %v2481 = vpop.permute.xlu0 %2480
      %2482 = vrot.lane.b32.xlu0 %v2448, 112
      %v2483 = vpop.permute.xlu0 %2482
      %2484 = vrot.lane.b32.xlu0 %v2449, 112
      %v2485 = vpop.permute.xlu0 %2484
      %v2486 = vsel %vm815, %v2463, %v2465
      %v2487 = vsel %vm815, %v2465, %v2467
      %v2488 = vsel %vm815, %v2469, %v2471
      %v2489 = vsel %vm815, %v2471, %v2473
      %v2490 = vsel %vm815, %v2475, %v2477
      %v2491 = vsel %vm815, %v2477, %v2479
      %v2492 = vsel %vm815, %v2481, %v2483
      %v2493 = vsel %vm815, %v2483, %v2485
      %v2506 = vadd.f32 %v2410, %v2486
      %v2507 = vadd.f32 %v2411, %v2487
      %v2508 = vadd.f32 %v2412, %v2467
      %v2509 = vadd.f32 %v2413, %v2488
      %v2510 = vadd.f32 %v2414, %v2489
      %v2511 = vadd.f32 %v2415, %v2473
      %v2512 = vadd.f32 %v2416, %v2490
      %v2513 = vadd.f32 %v2417, %v2491
      %v2514 = vadd.f32 %v2418, %v2479
      %v2515 = vadd.f32 %v2419, %v2492
      %v2516 = vadd.f32 %v2420, %v2493
      %v2517 = vadd.f32 %v2421, %v2485
      %2518 = vset.pattern.permute.xlu0 10
      %2519 = vperm.xlu0 %2518, %v2374
      %v2520 = vpop.permute.xlu0 %2519
      %2522 = vset.pattern.permute.xlu0 10
      %2523 = vperm.xlu0 %2522, %v2375
      %v2524 = vpop.permute.xlu0 %2523
      %2526 = vset.pattern.permute.xlu0 10
      %2527 = vperm.xlu0 %2526, %v2376
      %v2528 = vpop.permute.xlu0 %2527
      %2530 = vset.pattern.permute.xlu0 10
      %2531 = vperm.xlu0 %2530, %v2377
      %v2532 = vpop.permute.xlu0 %2531
      %v2534 = vmul.f32 %v2358, %v2520
      %v2535 = vmul.f32 %v2359, %v2520
      %v2536 = vmul.f32 %v2360, %v2520
      %v2537 = vmul.f32 %v2362, %v2524
      %v2538 = vmul.f32 %v2363, %v2524
      %v2539 = vmul.f32 %v2364, %v2524
      %v2540 = vmul.f32 %v2366, %v2528
      %v2541 = vmul.f32 %v2367, %v2528
      %v2542 = vmul.f32 %v2368, %v2528
      %v2543 = vmul.f32 %v2370, %v2532
      %v2544 = vmul.f32 %v2371, %v2532
      %v2545 = vmul.f32 %v2372, %v2532
      %2558 = vrot.lane.b32.xlu0 %v2534, 96
      %v2559 = vpop.permute.xlu0 %2558
      %2560 = vrot.lane.b32.xlu0 %v2535, 96
      %v2561 = vpop.permute.xlu0 %2560
      %2562 = vrot.lane.b32.xlu0 %v2536, 96
      %v2563 = vpop.permute.xlu0 %2562
      %2564 = vrot.lane.b32.xlu0 %v2537, 96
      %v2565 = vpop.permute.xlu0 %2564
      %2566 = vrot.lane.b32.xlu0 %v2538, 96
      %v2567 = vpop.permute.xlu0 %2566
      %2568 = vrot.lane.b32.xlu0 %v2539, 96
      %v2569 = vpop.permute.xlu0 %2568
      %2570 = vrot.lane.b32.xlu0 %v2540, 96
      %v2571 = vpop.permute.xlu0 %2570
      %2572 = vrot.lane.b32.xlu0 %v2541, 96
      %v2573 = vpop.permute.xlu0 %2572
      %2574 = vrot.lane.b32.xlu0 %v2542, 96
      %v2575 = vpop.permute.xlu0 %2574
      %2576 = vrot.lane.b32.xlu0 %v2543, 96
      %v2577 = vpop.permute.xlu0 %2576
      %2578 = vrot.lane.b32.xlu0 %v2544, 96
      %v2579 = vpop.permute.xlu0 %2578
      %2580 = vrot.lane.b32.xlu0 %v2545, 96
      %v2581 = vpop.permute.xlu0 %2580
      %v2582 = vsel %vm864, %v2559, %v2561
      %v2583 = vsel %vm864, %v2561, %v2563
      %v2584 = vsel %vm864, %v2565, %v2567
      %v2585 = vsel %vm864, %v2567, %v2569
      %v2586 = vsel %vm864, %v2571, %v2573
      %v2587 = vsel %vm864, %v2573, %v2575
      %v2588 = vsel %vm864, %v2577, %v2579
      %v2589 = vsel %vm864, %v2579, %v2581
      %v2602 = vadd.f32 %v2506, %v2582
      %v2603 = vadd.f32 %v2507, %v2583
      %v2604 = vadd.f32 %v2508, %v2563
      %v2605 = vadd.f32 %v2509, %v2584
      %v2606 = vadd.f32 %v2510, %v2585
      %v2607 = vadd.f32 %v2511, %v2569
      %v2608 = vadd.f32 %v2512, %v2586
      %v2609 = vadd.f32 %v2513, %v2587
      %v2610 = vadd.f32 %v2514, %v2575
      %v2611 = vadd.f32 %v2515, %v2588
      %v2612 = vadd.f32 %v2516, %v2589
      %v2613 = vadd.f32 %v2517, %v2581
      %2614 = vset.pattern.permute.xlu0 15
      %2615 = vperm.xlu0 %2614, %v2374
      %v2616 = vpop.permute.xlu0 %2615
      %2618 = vset.pattern.permute.xlu0 15
      %2619 = vperm.xlu0 %2618, %v2375
      %v2620 = vpop.permute.xlu0 %2619
      %2622 = vset.pattern.permute.xlu0 15
      %2623 = vperm.xlu0 %2622, %v2376
      %v2624 = vpop.permute.xlu0 %2623
      %2626 = vset.pattern.permute.xlu0 15
      %2627 = vperm.xlu0 %2626, %v2377
      %v2628 = vpop.permute.xlu0 %2627
      %v2630 = vmul.f32 %v2359, %v2616
      %v2631 = vmul.f32 %v2360, %v2616
      %v2632 = vmul.f32 %v2361, %v2616
      %v2633 = vmul.f32 %v2363, %v2620
      %v2634 = vmul.f32 %v2364, %v2620
      %v2635 = vmul.f32 %v2365, %v2620
      %v2636 = vmul.f32 %v2367, %v2624
      %v2637 = vmul.f32 %v2368, %v2624
      %v2638 = vmul.f32 %v2369, %v2624
      %v2639 = vmul.f32 %v2371, %v2628
      %v2640 = vmul.f32 %v2372, %v2628
      %v2641 = vmul.f32 %v2373, %v2628
      %2654 = vrot.lane.b32.xlu0 %v2630, 80
      %v2655 = vpop.permute.xlu0 %2654
      %2656 = vrot.lane.b32.xlu0 %v2631, 80
      %v2657 = vpop.permute.xlu0 %2656
      %2658 = vrot.lane.b32.xlu0 %v2632, 80
      %v2659 = vpop.permute.xlu0 %2658
      %2660 = vrot.lane.b32.xlu0 %v2633, 80
      %v2661 = vpop.permute.xlu0 %2660
      %2662 = vrot.lane.b32.xlu0 %v2634, 80
      %v2663 = vpop.permute.xlu0 %2662
      %2664 = vrot.lane.b32.xlu0 %v2635, 80
      %v2665 = vpop.permute.xlu0 %2664
      %2666 = vrot.lane.b32.xlu0 %v2636, 80
      %v2667 = vpop.permute.xlu0 %2666
      %2668 = vrot.lane.b32.xlu0 %v2637, 80
      %v2669 = vpop.permute.xlu0 %2668
      %2670 = vrot.lane.b32.xlu0 %v2638, 80
      %v2671 = vpop.permute.xlu0 %2670
      %2672 = vrot.lane.b32.xlu0 %v2639, 80
      %v2673 = vpop.permute.xlu0 %2672
      %2674 = vrot.lane.b32.xlu0 %v2640, 80
      %v2675 = vpop.permute.xlu0 %2674
      %2676 = vrot.lane.b32.xlu0 %v2641, 80
      %v2677 = vpop.permute.xlu0 %2676
      %v2678 = vsel %vm913, %v2655, %v2657
      %v2679 = vsel %vm913, %v2657, %v2659
      %v2680 = vsel %vm913, %v2661, %v2663
      %v2681 = vsel %vm913, %v2663, %v2665
      %v2682 = vsel %vm913, %v2667, %v2669
      %v2683 = vsel %vm913, %v2669, %v2671
      %v2684 = vsel %vm913, %v2673, %v2675
      %v2685 = vsel %vm913, %v2675, %v2677
      %v2698 = vadd.f32 %v2602, %v2655
      %v2699 = vadd.f32 %v2603, %v2678
      %v2700 = vadd.f32 %v2604, %v2679
      %v2701 = vadd.f32 %v2605, %v2661
      %v2702 = vadd.f32 %v2606, %v2680
      %v2703 = vadd.f32 %v2607, %v2681
      %v2704 = vadd.f32 %v2608, %v2667
      %v2705 = vadd.f32 %v2609, %v2682
      %v2706 = vadd.f32 %v2610, %v2683
      %v2707 = vadd.f32 %v2611, %v2673
      %v2708 = vadd.f32 %v2612, %v2684
      %v2709 = vadd.f32 %v2613, %v2685
      %2710 = vset.pattern.permute.xlu0 20
      %2711 = vperm.xlu0 %2710, %v2374
      %v2712 = vpop.permute.xlu0 %2711
      %2714 = vset.pattern.permute.xlu0 20
      %2715 = vperm.xlu0 %2714, %v2375
      %v2716 = vpop.permute.xlu0 %2715
      %2718 = vset.pattern.permute.xlu0 20
      %2719 = vperm.xlu0 %2718, %v2376
      %v2720 = vpop.permute.xlu0 %2719
      %2722 = vset.pattern.permute.xlu0 20
      %2723 = vperm.xlu0 %2722, %v2377
      %v2724 = vpop.permute.xlu0 %2723
      %v2726 = vmul.f32 %v2359, %v2712
      %v2727 = vmul.f32 %v2360, %v2712
      %v2728 = vmul.f32 %v2361, %v2712
      %v2729 = vmul.f32 %v2363, %v2716
      %v2730 = vmul.f32 %v2364, %v2716
      %v2731 = vmul.f32 %v2365, %v2716
      %v2732 = vmul.f32 %v2367, %v2720
      %v2733 = vmul.f32 %v2368, %v2720
      %v2734 = vmul.f32 %v2369, %v2720
      %v2735 = vmul.f32 %v2371, %v2724
      %v2736 = vmul.f32 %v2372, %v2724
      %v2737 = vmul.f32 %v2373, %v2724
      %2750 = vrot.lane.b32.xlu0 %v2726, 64
      %v2751 = vpop.permute.xlu0 %2750
      %2752 = vrot.lane.b32.xlu0 %v2727, 64
      %v2753 = vpop.permute.xlu0 %2752
      %2754 = vrot.lane.b32.xlu0 %v2728, 64
      %v2755 = vpop.permute.xlu0 %2754
      %2756 = vrot.lane.b32.xlu0 %v2729, 64
      %v2757 = vpop.permute.xlu0 %2756
      %2758 = vrot.lane.b32.xlu0 %v2730, 64
      %v2759 = vpop.permute.xlu0 %2758
      %2760 = vrot.lane.b32.xlu0 %v2731, 64
      %v2761 = vpop.permute.xlu0 %2760
      %2762 = vrot.lane.b32.xlu0 %v2732, 64
      %v2763 = vpop.permute.xlu0 %2762
      %2764 = vrot.lane.b32.xlu0 %v2733, 64
      %v2765 = vpop.permute.xlu0 %2764
      %2766 = vrot.lane.b32.xlu0 %v2734, 64
      %v2767 = vpop.permute.xlu0 %2766
      %2768 = vrot.lane.b32.xlu0 %v2735, 64
      %v2769 = vpop.permute.xlu0 %2768
      %2770 = vrot.lane.b32.xlu0 %v2736, 64
      %v2771 = vpop.permute.xlu0 %2770
      %2772 = vrot.lane.b32.xlu0 %v2737, 64
      %v2773 = vpop.permute.xlu0 %2772
      %v2774 = vsel %vm612, %v2751, %v2753
      %v2775 = vsel %vm612, %v2753, %v2755
      %v2776 = vsel %vm612, %v2757, %v2759
      %v2777 = vsel %vm612, %v2759, %v2761
      %v2778 = vsel %vm612, %v2763, %v2765
      %v2779 = vsel %vm612, %v2765, %v2767
      %v2780 = vsel %vm612, %v2769, %v2771
      %v2781 = vsel %vm612, %v2771, %v2773
      %v2794 = vadd.f32 %v2698, %v2751
      %v2795 = vadd.f32 %v2699, %v2774
      %v2796 = vadd.f32 %v2700, %v2775
      %v2797 = vadd.f32 %v2701, %v2757
      %v2798 = vadd.f32 %v2702, %v2776
      %v2799 = vadd.f32 %v2703, %v2777
      %v2800 = vadd.f32 %v2704, %v2763
      %v2801 = vadd.f32 %v2705, %v2778
      %v2802 = vadd.f32 %v2706, %v2779
      %v2803 = vadd.f32 %v2707, %v2769
      %v2804 = vadd.f32 %v2708, %v2780
      %v2805 = vadd.f32 %v2709, %v2781
      %v2806 = vmul.f32 %v2342, %v982
      %v2807 = vmul.f32 %v2343, %v988
      %v2808 = vmul.f32 %v2344, %v989
      %v2809 = vmul.f32 %v2345, %v986
      %v2810 = vmul.f32 %v2346, %v982
      %v2811 = vmul.f32 %v2347, %v988
      %v2812 = vmul.f32 %v2348, %v989
      %v2813 = vmul.f32 %v2349, %v986
      %v2814 = vmul.f32 %v2350, %v982
      %v2815 = vmul.f32 %v2351, %v988
      %v2816 = vmul.f32 %v2352, %v989
      %v2817 = vmul.f32 %v2353, %v986
      %v2818 = vmul.f32 %v2354, %v982
      %v2819 = vmul.f32 %v2355, %v988
      %v2820 = vmul.f32 %v2356, %v989
      %v2821 = vmul.f32 %v2357, %v986
      %2822 = vset.pattern.permute.xlu0 1
      %2823 = vperm.xlu0 %2822, %v2374
      %v2824 = vpop.permute.xlu0 %2823
      %2826 = vset.pattern.permute.xlu0 1
      %2827 = vperm.xlu0 %2826, %v2375
      %v2828 = vpop.permute.xlu0 %2827
      %2830 = vset.pattern.permute.xlu0 1
      %2831 = vperm.xlu0 %2830, %v2376
      %v2832 = vpop.permute.xlu0 %2831
      %2834 = vset.pattern.permute.xlu0 1
      %2835 = vperm.xlu0 %2834, %v2377
      %v2836 = vpop.permute.xlu0 %2835
      %v2838 = vmul.f32 %v2806, %v2824
      %v2839 = vmul.f32 %v2807, %v2824
      %v2840 = vmul.f32 %v2808, %v2824
      %v2841 = vmul.f32 %v2810, %v2828
      %v2842 = vmul.f32 %v2811, %v2828
      %v2843 = vmul.f32 %v2812, %v2828
      %v2844 = vmul.f32 %v2814, %v2832
      %v2845 = vmul.f32 %v2815, %v2832
      %v2846 = vmul.f32 %v2816, %v2832
      %v2847 = vmul.f32 %v2818, %v2836
      %v2848 = vmul.f32 %v2819, %v2836
      %v2849 = vmul.f32 %v2820, %v2836
      %2862 = vrot.lane.b32.xlu0 %v2838, 127
      %v2863 = vpop.permute.xlu0 %2862
      %2864 = vrot.lane.b32.xlu0 %v2839, 127
      %v2865 = vpop.permute.xlu0 %2864
      %2866 = vrot.lane.b32.xlu0 %v2840, 127
      %v2867 = vpop.permute.xlu0 %2866
      %2868 = vrot.lane.b32.xlu0 %v2841, 127
      %v2869 = vpop.permute.xlu0 %2868
      %2870 = vrot.lane.b32.xlu0 %v2842, 127
      %v2871 = vpop.permute.xlu0 %2870
      %2872 = vrot.lane.b32.xlu0 %v2843, 127
      %v2873 = vpop.permute.xlu0 %2872
      %2874 = vrot.lane.b32.xlu0 %v2844, 127
      %v2875 = vpop.permute.xlu0 %2874
      %2876 = vrot.lane.b32.xlu0 %v2845, 127
      %v2877 = vpop.permute.xlu0 %2876
      %2878 = vrot.lane.b32.xlu0 %v2846, 127
      %v2879 = vpop.permute.xlu0 %2878
      %2880 = vrot.lane.b32.xlu0 %v2847, 127
      %v2881 = vpop.permute.xlu0 %2880
      %2882 = vrot.lane.b32.xlu0 %v2848, 127
      %v2883 = vpop.permute.xlu0 %2882
      %2884 = vrot.lane.b32.xlu0 %v2849, 127
      %v2885 = vpop.permute.xlu0 %2884
      %v2886 = vsel %vm1034, %v2863, %v2865
      %v2887 = vsel %vm1034, %v2865, %v2867
      %v2888 = vsel %vm1034, %v2869, %v2871
      %v2889 = vsel %vm1034, %v2871, %v2873
      %v2890 = vsel %vm1034, %v2875, %v2877
      %v2891 = vsel %vm1034, %v2877, %v2879
      %v2892 = vsel %vm1034, %v2881, %v2883
      %v2893 = vsel %vm1034, %v2883, %v2885
      %v2906 = vadd.f32 %v2794, %v2886
      %v2907 = vadd.f32 %v2795, %v2887
      %v2908 = vadd.f32 %v2796, %v2867
      %v2909 = vadd.f32 %v2797, %v2888
      %v2910 = vadd.f32 %v2798, %v2889
      %v2911 = vadd.f32 %v2799, %v2873
      %v2912 = vadd.f32 %v2800, %v2890
      %v2913 = vadd.f32 %v2801, %v2891
      %v2914 = vadd.f32 %v2802, %v2879
      %v2915 = vadd.f32 %v2803, %v2892
      %v2916 = vadd.f32 %v2804, %v2893
      %v2917 = vadd.f32 %v2805, %v2885
      %2918 = vset.pattern.permute.xlu0 6
      %2919 = vperm.xlu0 %2918, %v2374
      %v2920 = vpop.permute.xlu0 %2919
      %2922 = vset.pattern.permute.xlu0 6
      %2923 = vperm.xlu0 %2922, %v2375
      %v2924 = vpop.permute.xlu0 %2923
      %2926 = vset.pattern.permute.xlu0 6
      %2927 = vperm.xlu0 %2926, %v2376
      %v2928 = vpop.permute.xlu0 %2927
      %2930 = vset.pattern.permute.xlu0 6
      %2931 = vperm.xlu0 %2930, %v2377
      %v2932 = vpop.permute.xlu0 %2931
      %v2934 = vmul.f32 %v2806, %v2920
      %v2935 = vmul.f32 %v2807, %v2920
      %v2936 = vmul.f32 %v2808, %v2920
      %v2937 = vmul.f32 %v2810, %v2924
      %v2938 = vmul.f32 %v2811, %v2924
      %v2939 = vmul.f32 %v2812, %v2924
      %v2940 = vmul.f32 %v2814, %v2928
      %v2941 = vmul.f32 %v2815, %v2928
      %v2942 = vmul.f32 %v2816, %v2928
      %v2943 = vmul.f32 %v2818, %v2932
      %v2944 = vmul.f32 %v2819, %v2932
      %v2945 = vmul.f32 %v2820, %v2932
      %2958 = vrot.lane.b32.xlu0 %v2934, 111
      %v2959 = vpop.permute.xlu0 %2958
      %2960 = vrot.lane.b32.xlu0 %v2935, 111
      %v2961 = vpop.permute.xlu0 %2960
      %2962 = vrot.lane.b32.xlu0 %v2936, 111
      %v2963 = vpop.permute.xlu0 %2962
      %2964 = vrot.lane.b32.xlu0 %v2937, 111
      %v2965 = vpop.permute.xlu0 %2964
      %2966 = vrot.lane.b32.xlu0 %v2938, 111
      %v2967 = vpop.permute.xlu0 %2966
      %2968 = vrot.lane.b32.xlu0 %v2939, 111
      %v2969 = vpop.permute.xlu0 %2968
      %2970 = vrot.lane.b32.xlu0 %v2940, 111
      %v2971 = vpop.permute.xlu0 %2970
      %2972 = vrot.lane.b32.xlu0 %v2941, 111
      %v2973 = vpop.permute.xlu0 %2972
      %2974 = vrot.lane.b32.xlu0 %v2942, 111
      %v2975 = vpop.permute.xlu0 %2974
      %2976 = vrot.lane.b32.xlu0 %v2943, 111
      %v2977 = vpop.permute.xlu0 %2976
      %2978 = vrot.lane.b32.xlu0 %v2944, 111
      %v2979 = vpop.permute.xlu0 %2978
      %2980 = vrot.lane.b32.xlu0 %v2945, 111
      %v2981 = vpop.permute.xlu0 %2980
      %v2982 = vsel %vm1083, %v2959, %v2961
      %v2983 = vsel %vm1083, %v2961, %v2963
      %v2984 = vsel %vm1083, %v2965, %v2967
      %v2985 = vsel %vm1083, %v2967, %v2969
      %v2986 = vsel %vm1083, %v2971, %v2973
      %v2987 = vsel %vm1083, %v2973, %v2975
      %v2988 = vsel %vm1083, %v2977, %v2979
      %v2989 = vsel %vm1083, %v2979, %v2981
      %v3002 = vadd.f32 %v2906, %v2982
      %v3003 = vadd.f32 %v2907, %v2983
      %v3004 = vadd.f32 %v2908, %v2963
      %v3005 = vadd.f32 %v2909, %v2984
      %v3006 = vadd.f32 %v2910, %v2985
      %v3007 = vadd.f32 %v2911, %v2969
      %v3008 = vadd.f32 %v2912, %v2986
      %v3009 = vadd.f32 %v2913, %v2987
      %v3010 = vadd.f32 %v2914, %v2975
      %v3011 = vadd.f32 %v2915, %v2988
      %v3012 = vadd.f32 %v2916, %v2989
      %v3013 = vadd.f32 %v2917, %v2981
      %3014 = vset.pattern.permute.xlu0 11
      %3015 = vperm.xlu0 %3014, %v2374
      %v3016 = vpop.permute.xlu0 %3015
      %3018 = vset.pattern.permute.xlu0 11
      %3019 = vperm.xlu0 %3018, %v2375
      %v3020 = vpop.permute.xlu0 %3019
      %3022 = vset.pattern.permute.xlu0 11
      %3023 = vperm.xlu0 %3022, %v2376
      %v3024 = vpop.permute.xlu0 %3023
      %3026 = vset.pattern.permute.xlu0 11
      %3027 = vperm.xlu0 %3026, %v2377
      %v3028 = vpop.permute.xlu0 %3027
      %v3030 = vmul.f32 %v2806, %v3016
      %v3031 = vmul.f32 %v2807, %v3016
      %v3032 = vmul.f32 %v2808, %v3016
      %v3033 = vmul.f32 %v2810, %v3020
      %v3034 = vmul.f32 %v2811, %v3020
      %v3035 = vmul.f32 %v2812, %v3020
      %v3036 = vmul.f32 %v2814, %v3024
      %v3037 = vmul.f32 %v2815, %v3024
      %v3038 = vmul.f32 %v2816, %v3024
      %v3039 = vmul.f32 %v2818, %v3028
      %v3040 = vmul.f32 %v2819, %v3028
      %v3041 = vmul.f32 %v2820, %v3028
      %3054 = vrot.lane.b32.xlu0 %v3030, 95
      %v3055 = vpop.permute.xlu0 %3054
      %3056 = vrot.lane.b32.xlu0 %v3031, 95
      %v3057 = vpop.permute.xlu0 %3056
      %3058 = vrot.lane.b32.xlu0 %v3032, 95
      %v3059 = vpop.permute.xlu0 %3058
      %3060 = vrot.lane.b32.xlu0 %v3033, 95
      %v3061 = vpop.permute.xlu0 %3060
      %3062 = vrot.lane.b32.xlu0 %v3034, 95
      %v3063 = vpop.permute.xlu0 %3062
      %3064 = vrot.lane.b32.xlu0 %v3035, 95
      %v3065 = vpop.permute.xlu0 %3064
      %3066 = vrot.lane.b32.xlu0 %v3036, 95
      %v3067 = vpop.permute.xlu0 %3066
      %3068 = vrot.lane.b32.xlu0 %v3037, 95
      %v3069 = vpop.permute.xlu0 %3068
      %3070 = vrot.lane.b32.xlu0 %v3038, 95
      %v3071 = vpop.permute.xlu0 %3070
      %3072 = vrot.lane.b32.xlu0 %v3039, 95
      %v3073 = vpop.permute.xlu0 %3072
      %3074 = vrot.lane.b32.xlu0 %v3040, 95
      %v3075 = vpop.permute.xlu0 %3074
      %3076 = vrot.lane.b32.xlu0 %v3041, 95
      %v3077 = vpop.permute.xlu0 %3076
      %v3078 = vsel %vm987, %v3055, %v3057
      %v3079 = vsel %vm987, %v3057, %v3059
      %v3080 = vsel %vm987, %v3061, %v3063
      %v3081 = vsel %vm987, %v3063, %v3065
      %v3082 = vsel %vm987, %v3067, %v3069
      %v3083 = vsel %vm987, %v3069, %v3071
      %v3084 = vsel %vm987, %v3073, %v3075
      %v3085 = vsel %vm987, %v3075, %v3077
      %v3098 = vadd.f32 %v3002, %v3078
      %v3099 = vadd.f32 %v3003, %v3079
      %v3100 = vadd.f32 %v3004, %v3059
      %v3101 = vadd.f32 %v3005, %v3080
      %v3102 = vadd.f32 %v3006, %v3081
      %v3103 = vadd.f32 %v3007, %v3065
      %v3104 = vadd.f32 %v3008, %v3082
      %v3105 = vadd.f32 %v3009, %v3083
      %v3106 = vadd.f32 %v3010, %v3071
      %v3107 = vadd.f32 %v3011, %v3084
      %v3108 = vadd.f32 %v3012, %v3085
      %v3109 = vadd.f32 %v3013, %v3077
      %3110 = vset.pattern.permute.xlu0 16
      %3111 = vperm.xlu0 %3110, %v2374
      %v3112 = vpop.permute.xlu0 %3111
      %3114 = vset.pattern.permute.xlu0 16
      %3115 = vperm.xlu0 %3114, %v2375
      %v3116 = vpop.permute.xlu0 %3115
      %3118 = vset.pattern.permute.xlu0 16
      %3119 = vperm.xlu0 %3118, %v2376
      %v3120 = vpop.permute.xlu0 %3119
      %3122 = vset.pattern.permute.xlu0 16
      %3123 = vperm.xlu0 %3122, %v2377
      %v3124 = vpop.permute.xlu0 %3123
      %v3126 = vmul.f32 %v2807, %v3112
      %v3127 = vmul.f32 %v2808, %v3112
      %v3128 = vmul.f32 %v2809, %v3112
      %v3129 = vmul.f32 %v2811, %v3116
      %v3130 = vmul.f32 %v2812, %v3116
      %v3131 = vmul.f32 %v2813, %v3116
      %v3132 = vmul.f32 %v2815, %v3120
      %v3133 = vmul.f32 %v2816, %v3120
      %v3134 = vmul.f32 %v2817, %v3120
      %v3135 = vmul.f32 %v2819, %v3124
      %v3136 = vmul.f32 %v2820, %v3124
      %v3137 = vmul.f32 %v2821, %v3124
      %3150 = vrot.lane.b32.xlu0 %v3126, 79
      %v3151 = vpop.permute.xlu0 %3150
      %3152 = vrot.lane.b32.xlu0 %v3127, 79
      %v3153 = vpop.permute.xlu0 %3152
      %3154 = vrot.lane.b32.xlu0 %v3128, 79
      %v3155 = vpop.permute.xlu0 %3154
      %3156 = vrot.lane.b32.xlu0 %v3129, 79
      %v3157 = vpop.permute.xlu0 %3156
      %3158 = vrot.lane.b32.xlu0 %v3130, 79
      %v3159 = vpop.permute.xlu0 %3158
      %3160 = vrot.lane.b32.xlu0 %v3131, 79
      %v3161 = vpop.permute.xlu0 %3160
      %3162 = vrot.lane.b32.xlu0 %v3132, 79
      %v3163 = vpop.permute.xlu0 %3162
      %3164 = vrot.lane.b32.xlu0 %v3133, 79
      %v3165 = vpop.permute.xlu0 %3164
      %3166 = vrot.lane.b32.xlu0 %v3134, 79
      %v3167 = vpop.permute.xlu0 %3166
      %3168 = vrot.lane.b32.xlu0 %v3135, 79
      %v3169 = vpop.permute.xlu0 %3168
      %3170 = vrot.lane.b32.xlu0 %v3136, 79
      %v3171 = vpop.permute.xlu0 %3170
      %3172 = vrot.lane.b32.xlu0 %v3137, 79
      %v3173 = vpop.permute.xlu0 %3172
      %v3174 = vsel %vm1180, %v3151, %v3153
      %v3175 = vsel %vm1180, %v3153, %v3155
      %v3176 = vsel %vm1180, %v3157, %v3159
      %v3177 = vsel %vm1180, %v3159, %v3161
      %v3178 = vsel %vm1180, %v3163, %v3165
      %v3179 = vsel %vm1180, %v3165, %v3167
      %v3180 = vsel %vm1180, %v3169, %v3171
      %v3181 = vsel %vm1180, %v3171, %v3173
      %v3194 = vadd.f32 %v3098, %v3151
      %v3195 = vadd.f32 %v3099, %v3174
      %v3196 = vadd.f32 %v3100, %v3175
      %v3197 = vadd.f32 %v3101, %v3157
      %v3198 = vadd.f32 %v3102, %v3176
      %v3199 = vadd.f32 %v3103, %v3177
      %v3200 = vadd.f32 %v3104, %v3163
      %v3201 = vadd.f32 %v3105, %v3178
      %v3202 = vadd.f32 %v3106, %v3179
      %v3203 = vadd.f32 %v3107, %v3169
      %v3204 = vadd.f32 %v3108, %v3180
      %v3205 = vadd.f32 %v3109, %v3181
      %3206 = vset.pattern.permute.xlu0 21
      %3207 = vperm.xlu0 %3206, %v2374
      %v3208 = vpop.permute.xlu0 %3207
      %3210 = vset.pattern.permute.xlu0 21
      %3211 = vperm.xlu0 %3210, %v2375
      %v3212 = vpop.permute.xlu0 %3211
      %3214 = vset.pattern.permute.xlu0 21
      %3215 = vperm.xlu0 %3214, %v2376
      %v3216 = vpop.permute.xlu0 %3215
      %3218 = vset.pattern.permute.xlu0 21
      %3219 = vperm.xlu0 %3218, %v2377
      %v3220 = vpop.permute.xlu0 %3219
      %v3222 = vmul.f32 %v2807, %v3208
      %v3223 = vmul.f32 %v2808, %v3208
      %v3224 = vmul.f32 %v2809, %v3208
      %v3225 = vmul.f32 %v2811, %v3212
      %v3226 = vmul.f32 %v2812, %v3212
      %v3227 = vmul.f32 %v2813, %v3212
      %v3228 = vmul.f32 %v2815, %v3216
      %v3229 = vmul.f32 %v2816, %v3216
      %v3230 = vmul.f32 %v2817, %v3216
      %v3231 = vmul.f32 %v2819, %v3220
      %v3232 = vmul.f32 %v2820, %v3220
      %v3233 = vmul.f32 %v2821, %v3220
      %3246 = vrot.lane.b32.xlu0 %v3222, 63
      %v3247 = vpop.permute.xlu0 %3246
      %3248 = vrot.lane.b32.xlu0 %v3223, 63
      %v3249 = vpop.permute.xlu0 %3248
      %3250 = vrot.lane.b32.xlu0 %v3224, 63
      %v3251 = vpop.permute.xlu0 %3250
      %3252 = vrot.lane.b32.xlu0 %v3225, 63
      %v3253 = vpop.permute.xlu0 %3252
      %3254 = vrot.lane.b32.xlu0 %v3226, 63
      %v3255 = vpop.permute.xlu0 %3254
      %3256 = vrot.lane.b32.xlu0 %v3227, 63
      %v3257 = vpop.permute.xlu0 %3256
      %3258 = vrot.lane.b32.xlu0 %v3228, 63
      %v3259 = vpop.permute.xlu0 %3258
      %3260 = vrot.lane.b32.xlu0 %v3229, 63
      %v3261 = vpop.permute.xlu0 %3260
      %3262 = vrot.lane.b32.xlu0 %v3230, 63
      %v3263 = vpop.permute.xlu0 %3262
      %3264 = vrot.lane.b32.xlu0 %v3231, 63
      %v3265 = vpop.permute.xlu0 %3264
      %3266 = vrot.lane.b32.xlu0 %v3232, 63
      %v3267 = vpop.permute.xlu0 %3266
      %3268 = vrot.lane.b32.xlu0 %v3233, 63
      %v3269 = vpop.permute.xlu0 %3268
      %v3270 = vsel %vm1229, %v3247, %v3249
      %v3271 = vsel %vm1229, %v3249, %v3251
      %v3272 = vsel %vm1229, %v3253, %v3255
      %v3273 = vsel %vm1229, %v3255, %v3257
      %v3274 = vsel %vm1229, %v3259, %v3261
      %v3275 = vsel %vm1229, %v3261, %v3263
      %v3276 = vsel %vm1229, %v3265, %v3267
      %v3277 = vsel %vm1229, %v3267, %v3269
      %v3290 = vadd.f32 %v3194, %v3247
      %v3291 = vadd.f32 %v3195, %v3270
      %v3292 = vadd.f32 %v3196, %v3271
      %v3293 = vadd.f32 %v3197, %v3253
      %v3294 = vadd.f32 %v3198, %v3272
      %v3295 = vadd.f32 %v3199, %v3273
      %v3296 = vadd.f32 %v3200, %v3259
      %v3297 = vadd.f32 %v3201, %v3274
      %v3298 = vadd.f32 %v3202, %v3275
      %v3299 = vadd.f32 %v3203, %v3265
      %v3300 = vadd.f32 %v3204, %v3276
      %v3301 = vadd.f32 %v3205, %v3277
      %3302 = vset.pattern.permute.xlu0 2
      %3303 = vperm.xlu0 %3302, %v2374
      %v3304 = vpop.permute.xlu0 %3303
      %3306 = vset.pattern.permute.xlu0 2
      %3307 = vperm.xlu0 %3306, %v2375
      %v3308 = vpop.permute.xlu0 %3307
      %3310 = vset.pattern.permute.xlu0 2
      %3311 = vperm.xlu0 %3310, %v2376
      %v3312 = vpop.permute.xlu0 %3311
      %3314 = vset.pattern.permute.xlu0 2
      %3315 = vperm.xlu0 %3314, %v2377
      %v3316 = vpop.permute.xlu0 %3315
      %v3318 = vmul.f32 %v2342, %v3304
      %v3319 = vmul.f32 %v2343, %v3304
      %v3320 = vmul.f32 %v2344, %v3304
      %v3321 = vmul.f32 %v2346, %v3308
      %v3322 = vmul.f32 %v2347, %v3308
      %v3323 = vmul.f32 %v2348, %v3308
      %v3324 = vmul.f32 %v2350, %v3312
      %v3325 = vmul.f32 %v2351, %v3312
      %v3326 = vmul.f32 %v2352, %v3312
      %v3327 = vmul.f32 %v2354, %v3316
      %v3328 = vmul.f32 %v2355, %v3316
      %v3329 = vmul.f32 %v2356, %v3316
      %3342 = vrot.lane.b32.xlu0 %v3318, 126
      %v3343 = vpop.permute.xlu0 %3342
      %3344 = vrot.lane.b32.xlu0 %v3319, 126
      %v3345 = vpop.permute.xlu0 %3344
      %3346 = vrot.lane.b32.xlu0 %v3320, 126
      %v3347 = vpop.permute.xlu0 %3346
      %3348 = vrot.lane.b32.xlu0 %v3321, 126
      %v3349 = vpop.permute.xlu0 %3348
      %3350 = vrot.lane.b32.xlu0 %v3322, 126
      %v3351 = vpop.permute.xlu0 %3350
      %3352 = vrot.lane.b32.xlu0 %v3323, 126
      %v3353 = vpop.permute.xlu0 %3352
      %3354 = vrot.lane.b32.xlu0 %v3324, 126
      %v3355 = vpop.permute.xlu0 %3354
      %3356 = vrot.lane.b32.xlu0 %v3325, 126
      %v3357 = vpop.permute.xlu0 %3356
      %3358 = vrot.lane.b32.xlu0 %v3326, 126
      %v3359 = vpop.permute.xlu0 %3358
      %3360 = vrot.lane.b32.xlu0 %v3327, 126
      %v3361 = vpop.permute.xlu0 %3360
      %3362 = vrot.lane.b32.xlu0 %v3328, 126
      %v3363 = vpop.permute.xlu0 %3362
      %3364 = vrot.lane.b32.xlu0 %v3329, 126
      %v3365 = vpop.permute.xlu0 %3364
      %v3366 = vsel %vm1278, %v3343, %v3345
      %v3367 = vsel %vm1278, %v3345, %v3347
      %v3368 = vsel %vm1278, %v3349, %v3351
      %v3369 = vsel %vm1278, %v3351, %v3353
      %v3370 = vsel %vm1278, %v3355, %v3357
      %v3371 = vsel %vm1278, %v3357, %v3359
      %v3372 = vsel %vm1278, %v3361, %v3363
      %v3373 = vsel %vm1278, %v3363, %v3365
      %v3386 = vadd.f32 %v3290, %v3366
      %v3387 = vadd.f32 %v3291, %v3367
      %v3388 = vadd.f32 %v3292, %v3347
      %v3389 = vadd.f32 %v3293, %v3368
      %v3390 = vadd.f32 %v3294, %v3369
      %v3391 = vadd.f32 %v3295, %v3353
      %v3392 = vadd.f32 %v3296, %v3370
      %v3393 = vadd.f32 %v3297, %v3371
      %v3394 = vadd.f32 %v3298, %v3359
      %v3395 = vadd.f32 %v3299, %v3372
      %v3396 = vadd.f32 %v3300, %v3373
      %v3397 = vadd.f32 %v3301, %v3365
      %3398 = vset.pattern.permute.xlu0 7
      %3399 = vperm.xlu0 %3398, %v2374
      %v3400 = vpop.permute.xlu0 %3399
      %3402 = vset.pattern.permute.xlu0 7
      %3403 = vperm.xlu0 %3402, %v2375
      %v3404 = vpop.permute.xlu0 %3403
      %3406 = vset.pattern.permute.xlu0 7
      %3407 = vperm.xlu0 %3406, %v2376
      %v3408 = vpop.permute.xlu0 %3407
      %3410 = vset.pattern.permute.xlu0 7
      %3411 = vperm.xlu0 %3410, %v2377
      %v3412 = vpop.permute.xlu0 %3411
      %v3414 = vmul.f32 %v2342, %v3400
      %v3415 = vmul.f32 %v2343, %v3400
      %v3416 = vmul.f32 %v2344, %v3400
      %v3417 = vmul.f32 %v2346, %v3404
      %v3418 = vmul.f32 %v2347, %v3404
      %v3419 = vmul.f32 %v2348, %v3404
      %v3420 = vmul.f32 %v2350, %v3408
      %v3421 = vmul.f32 %v2351, %v3408
      %v3422 = vmul.f32 %v2352, %v3408
      %v3423 = vmul.f32 %v2354, %v3412
      %v3424 = vmul.f32 %v2355, %v3412
      %v3425 = vmul.f32 %v2356, %v3412
      %3438 = vrot.lane.b32.xlu0 %v3414, 110
      %v3439 = vpop.permute.xlu0 %3438
      %3440 = vrot.lane.b32.xlu0 %v3415, 110
      %v3441 = vpop.permute.xlu0 %3440
      %3442 = vrot.lane.b32.xlu0 %v3416, 110
      %v3443 = vpop.permute.xlu0 %3442
      %3444 = vrot.lane.b32.xlu0 %v3417, 110
      %v3445 = vpop.permute.xlu0 %3444
      %3446 = vrot.lane.b32.xlu0 %v3418, 110
      %v3447 = vpop.permute.xlu0 %3446
      %3448 = vrot.lane.b32.xlu0 %v3419, 110
      %v3449 = vpop.permute.xlu0 %3448
      %3450 = vrot.lane.b32.xlu0 %v3420, 110
      %v3451 = vpop.permute.xlu0 %3450
      %3452 = vrot.lane.b32.xlu0 %v3421, 110
      %v3453 = vpop.permute.xlu0 %3452
      %3454 = vrot.lane.b32.xlu0 %v3422, 110
      %v3455 = vpop.permute.xlu0 %3454
      %3456 = vrot.lane.b32.xlu0 %v3423, 110
      %v3457 = vpop.permute.xlu0 %3456
      %3458 = vrot.lane.b32.xlu0 %v3424, 110
      %v3459 = vpop.permute.xlu0 %3458
      %3460 = vrot.lane.b32.xlu0 %v3425, 110
      %v3461 = vpop.permute.xlu0 %3460
      %v3462 = vsel %vm1327, %v3439, %v3441
      %v3463 = vsel %vm1327, %v3441, %v3443
      %v3464 = vsel %vm1327, %v3445, %v3447
      %v3465 = vsel %vm1327, %v3447, %v3449
      %v3466 = vsel %vm1327, %v3451, %v3453
      %v3467 = vsel %vm1327, %v3453, %v3455
      %v3468 = vsel %vm1327, %v3457, %v3459
      %v3469 = vsel %vm1327, %v3459, %v3461
      %v3482 = vadd.f32 %v3386, %v3462
      %v3483 = vadd.f32 %v3387, %v3463
      %v3484 = vadd.f32 %v3388, %v3443
      %v3485 = vadd.f32 %v3389, %v3464
      %v3486 = vadd.f32 %v3390, %v3465
      %v3487 = vadd.f32 %v3391, %v3449
      %v3488 = vadd.f32 %v3392, %v3466
      %v3489 = vadd.f32 %v3393, %v3467
      %v3490 = vadd.f32 %v3394, %v3455
      %v3491 = vadd.f32 %v3395, %v3468
      %v3492 = vadd.f32 %v3396, %v3469
      %v3493 = vadd.f32 %v3397, %v3461
      %3494 = vset.pattern.permute.xlu0 12
      %3495 = vperm.xlu0 %3494, %v2374
      %v3496 = vpop.permute.xlu0 %3495
      %3498 = vset.pattern.permute.xlu0 12
      %3499 = vperm.xlu0 %3498, %v2375
      %v3500 = vpop.permute.xlu0 %3499
      %3502 = vset.pattern.permute.xlu0 12
      %3503 = vperm.xlu0 %3502, %v2376
      %v3504 = vpop.permute.xlu0 %3503
      %3506 = vset.pattern.permute.xlu0 12
      %3507 = vperm.xlu0 %3506, %v2377
      %v3508 = vpop.permute.xlu0 %3507
      %v3510 = vmul.f32 %v2343, %v3496
      %v3511 = vmul.f32 %v2344, %v3496
      %v3512 = vmul.f32 %v2347, %v3500
      %v3513 = vmul.f32 %v2348, %v3500
      %v3514 = vmul.f32 %v2351, %v3504
      %v3515 = vmul.f32 %v2352, %v3504
      %v3516 = vmul.f32 %v2355, %v3508
      %v3517 = vmul.f32 %v2356, %v3508
      %3526 = vrot.lane.b32.xlu0 %v3510, 94
      %v3527 = vpop.permute.xlu0 %3526
      %3528 = vrot.lane.b32.xlu0 %v3511, 94
      %v3529 = vpop.permute.xlu0 %3528
      %3530 = vrot.lane.b32.xlu0 %v3512, 94
      %v3531 = vpop.permute.xlu0 %3530
      %3532 = vrot.lane.b32.xlu0 %v3513, 94
      %v3533 = vpop.permute.xlu0 %3532
      %3534 = vrot.lane.b32.xlu0 %v3514, 94
      %v3535 = vpop.permute.xlu0 %3534
      %3536 = vrot.lane.b32.xlu0 %v3515, 94
      %v3537 = vpop.permute.xlu0 %3536
      %3538 = vrot.lane.b32.xlu0 %v3516, 94
      %v3539 = vpop.permute.xlu0 %3538
      %3540 = vrot.lane.b32.xlu0 %v3517, 94
      %v3541 = vpop.permute.xlu0 %3540
      %v3542 = vsel %vm744, %v3527, %v3529
      %v3543 = vsel %vm744, %v3531, %v3533
      %v3544 = vsel %vm744, %v3535, %v3537
      %v3545 = vsel %vm744, %v3539, %v3541
      %v3558 = vadd.f32 %v3482, %v3527
      %v3559 = vadd.f32 %v3483, %v3542
      %v3560 = vadd.f32 %v3484, %v3529
      %v3561 = vadd.f32 %v3485, %v3531
      %v3562 = vadd.f32 %v3486, %v3543
      %v3563 = vadd.f32 %v3487, %v3533
      %v3564 = vadd.f32 %v3488, %v3535
      %v3565 = vadd.f32 %v3489, %v3544
      %v3566 = vadd.f32 %v3490, %v3537
      %v3567 = vadd.f32 %v3491, %v3539
      %v3568 = vadd.f32 %v3492, %v3545
      %v3569 = vadd.f32 %v3493, %v3541
      %3570 = vset.pattern.permute.xlu0 17
      %3571 = vperm.xlu0 %3570, %v2374
      %v3572 = vpop.permute.xlu0 %3571
      %3574 = vset.pattern.permute.xlu0 17
      %3575 = vperm.xlu0 %3574, %v2375
      %v3576 = vpop.permute.xlu0 %3575
      %3578 = vset.pattern.permute.xlu0 17
      %3579 = vperm.xlu0 %3578, %v2376
      %v3580 = vpop.permute.xlu0 %3579
      %3582 = vset.pattern.permute.xlu0 17
      %3583 = vperm.xlu0 %3582, %v2377
      %v3584 = vpop.permute.xlu0 %3583
      %v3586 = vmul.f32 %v2343, %v3572
      %v3587 = vmul.f32 %v2344, %v3572
      %v3588 = vmul.f32 %v2345, %v3572
      %v3589 = vmul.f32 %v2347, %v3576
      %v3590 = vmul.f32 %v2348, %v3576
      %v3591 = vmul.f32 %v2349, %v3576
      %v3592 = vmul.f32 %v2351, %v3580
      %v3593 = vmul.f32 %v2352, %v3580
      %v3594 = vmul.f32 %v2353, %v3580
      %v3595 = vmul.f32 %v2355, %v3584
      %v3596 = vmul.f32 %v2356, %v3584
      %v3597 = vmul.f32 %v2357, %v3584
      %3610 = vrot.lane.b32.xlu0 %v3586, 78
      %v3611 = vpop.permute.xlu0 %3610
      %3612 = vrot.lane.b32.xlu0 %v3587, 78
      %v3613 = vpop.permute.xlu0 %3612
      %3614 = vrot.lane.b32.xlu0 %v3588, 78
      %v3615 = vpop.permute.xlu0 %3614
      %3616 = vrot.lane.b32.xlu0 %v3589, 78
      %v3617 = vpop.permute.xlu0 %3616
      %3618 = vrot.lane.b32.xlu0 %v3590, 78
      %v3619 = vpop.permute.xlu0 %3618
      %3620 = vrot.lane.b32.xlu0 %v3591, 78
      %v3621 = vpop.permute.xlu0 %3620
      %3622 = vrot.lane.b32.xlu0 %v3592, 78
      %v3623 = vpop.permute.xlu0 %3622
      %3624 = vrot.lane.b32.xlu0 %v3593, 78
      %v3625 = vpop.permute.xlu0 %3624
      %3626 = vrot.lane.b32.xlu0 %v3594, 78
      %v3627 = vpop.permute.xlu0 %3626
      %3628 = vrot.lane.b32.xlu0 %v3595, 78
      %v3629 = vpop.permute.xlu0 %3628
      %3630 = vrot.lane.b32.xlu0 %v3596, 78
      %v3631 = vpop.permute.xlu0 %3630
      %3632 = vrot.lane.b32.xlu0 %v3597, 78
      %v3633 = vpop.permute.xlu0 %3632
      %v3634 = vsel %vm1414, %v3611, %v3613
      %v3635 = vsel %vm1414, %v3613, %v3615
      %v3636 = vsel %vm1414, %v3617, %v3619
      %v3637 = vsel %vm1414, %v3619, %v3621
      %v3638 = vsel %vm1414, %v3623, %v3625
      %v3639 = vsel %vm1414, %v3625, %v3627
      %v3640 = vsel %vm1414, %v3629, %v3631
      %v3641 = vsel %vm1414, %v3631, %v3633
      %v3654 = vadd.f32 %v3558, %v3611
      %v3655 = vadd.f32 %v3559, %v3634
      %v3656 = vadd.f32 %v3560, %v3635
      %v3657 = vadd.f32 %v3561, %v3617
      %v3658 = vadd.f32 %v3562, %v3636
      %v3659 = vadd.f32 %v3563, %v3637
      %v3660 = vadd.f32 %v3564, %v3623
      %v3661 = vadd.f32 %v3565, %v3638
      %v3662 = vadd.f32 %v3566, %v3639
      %v3663 = vadd.f32 %v3567, %v3629
      %v3664 = vadd.f32 %v3568, %v3640
      %v3665 = vadd.f32 %v3569, %v3641
      %3666 = vset.pattern.permute.xlu0 22
      %3667 = vperm.xlu0 %3666, %v2374
      %v3668 = vpop.permute.xlu0 %3667
      %3670 = vset.pattern.permute.xlu0 22
      %3671 = vperm.xlu0 %3670, %v2375
      %v3672 = vpop.permute.xlu0 %3671
      %3674 = vset.pattern.permute.xlu0 22
      %3675 = vperm.xlu0 %3674, %v2376
      %v3676 = vpop.permute.xlu0 %3675
      %3678 = vset.pattern.permute.xlu0 22
      %3679 = vperm.xlu0 %3678, %v2377
      %v3680 = vpop.permute.xlu0 %3679
      %v3682 = vmul.f32 %v2343, %v3668
      %v3683 = vmul.f32 %v2344, %v3668
      %v3684 = vmul.f32 %v2345, %v3668
      %v3685 = vmul.f32 %v2347, %v3672
      %v3686 = vmul.f32 %v2348, %v3672
      %v3687 = vmul.f32 %v2349, %v3672
      %v3688 = vmul.f32 %v2351, %v3676
      %v3689 = vmul.f32 %v2352, %v3676
      %v3690 = vmul.f32 %v2353, %v3676
      %v3691 = vmul.f32 %v2355, %v3680
      %v3692 = vmul.f32 %v2356, %v3680
      %v3693 = vmul.f32 %v2357, %v3680
      %3706 = vrot.lane.b32.xlu0 %v3682, 62
      %v3707 = vpop.permute.xlu0 %3706
      %3708 = vrot.lane.b32.xlu0 %v3683, 62
      %v3709 = vpop.permute.xlu0 %3708
      %3710 = vrot.lane.b32.xlu0 %v3684, 62
      %v3711 = vpop.permute.xlu0 %3710
      %3712 = vrot.lane.b32.xlu0 %v3685, 62
      %v3713 = vpop.permute.xlu0 %3712
      %3714 = vrot.lane.b32.xlu0 %v3686, 62
      %v3715 = vpop.permute.xlu0 %3714
      %3716 = vrot.lane.b32.xlu0 %v3687, 62
      %v3717 = vpop.permute.xlu0 %3716
      %3718 = vrot.lane.b32.xlu0 %v3688, 62
      %v3719 = vpop.permute.xlu0 %3718
      %3720 = vrot.lane.b32.xlu0 %v3689, 62
      %v3721 = vpop.permute.xlu0 %3720
      %3722 = vrot.lane.b32.xlu0 %v3690, 62
      %v3723 = vpop.permute.xlu0 %3722
      %3724 = vrot.lane.b32.xlu0 %v3691, 62
      %v3725 = vpop.permute.xlu0 %3724
      %3726 = vrot.lane.b32.xlu0 %v3692, 62
      %v3727 = vpop.permute.xlu0 %3726
      %3728 = vrot.lane.b32.xlu0 %v3693, 62
      %v3729 = vpop.permute.xlu0 %3728
      %v3730 = vsel %vm1463, %v3707, %v3709
      %v3731 = vsel %vm1463, %v3709, %v3711
      %v3732 = vsel %vm1463, %v3713, %v3715
      %v3733 = vsel %vm1463, %v3715, %v3717
      %v3734 = vsel %vm1463, %v3719, %v3721
      %v3735 = vsel %vm1463, %v3721, %v3723
      %v3736 = vsel %vm1463, %v3725, %v3727
      %v3737 = vsel %vm1463, %v3727, %v3729
      %v3750 = vadd.f32 %v3654, %v3707
      %v3751 = vadd.f32 %v3655, %v3730
      %v3752 = vadd.f32 %v3656, %v3731
      %v3753 = vadd.f32 %v3657, %v3713
      %v3754 = vadd.f32 %v3658, %v3732
      %v3755 = vadd.f32 %v3659, %v3733
      %v3756 = vadd.f32 %v3660, %v3719
      %v3757 = vadd.f32 %v3661, %v3734
      %v3758 = vadd.f32 %v3662, %v3735
      %v3759 = vadd.f32 %v3663, %v3725
      %v3760 = vadd.f32 %v3664, %v3736
      %v3761 = vadd.f32 %v3665, %v3737
      %v3762 = vmul.f32 %v2342, %v1484
      %v3763 = vmul.f32 %v2343, %v1490
      %v3764 = vmul.f32 %v2344, %v1491
      %v3765 = vmul.f32 %v2345, %v1488
      %v3766 = vmul.f32 %v2346, %v1484
      %v3767 = vmul.f32 %v2347, %v1490
      %v3768 = vmul.f32 %v2348, %v1491
      %v3769 = vmul.f32 %v2349, %v1488
      %v3770 = vmul.f32 %v2350, %v1484
      %v3771 = vmul.f32 %v2351, %v1490
      %v3772 = vmul.f32 %v2352, %v1491
      %v3773 = vmul.f32 %v2353, %v1488
      %v3774 = vmul.f32 %v2354, %v1484
      %v3775 = vmul.f32 %v2355, %v1490
      %v3776 = vmul.f32 %v2356, %v1491
      %v3777 = vmul.f32 %v2357, %v1488
      %3778 = vset.pattern.permute.xlu0 3
      %3779 = vperm.xlu0 %3778, %v2374
      %v3780 = vpop.permute.xlu0 %3779
      %3782 = vset.pattern.permute.xlu0 3
      %3783 = vperm.xlu0 %3782, %v2375
      %v3784 = vpop.permute.xlu0 %3783
      %3786 = vset.pattern.permute.xlu0 3
      %3787 = vperm.xlu0 %3786, %v2376
      %v3788 = vpop.permute.xlu0 %3787
      %3790 = vset.pattern.permute.xlu0 3
      %3791 = vperm.xlu0 %3790, %v2377
      %v3792 = vpop.permute.xlu0 %3791
      %v3794 = vmul.f32 %v3762, %v3780
      %v3795 = vmul.f32 %v3763, %v3780
      %v3796 = vmul.f32 %v3764, %v3780
      %v3797 = vmul.f32 %v3766, %v3784
      %v3798 = vmul.f32 %v3767, %v3784
      %v3799 = vmul.f32 %v3768, %v3784
      %v3800 = vmul.f32 %v3770, %v3788
      %v3801 = vmul.f32 %v3771, %v3788
      %v3802 = vmul.f32 %v3772, %v3788
      %v3803 = vmul.f32 %v3774, %v3792
      %v3804 = vmul.f32 %v3775, %v3792
      %v3805 = vmul.f32 %v3776, %v3792
      %3818 = vrot.lane.b32.xlu0 %v3794, 125
      %v3819 = vpop.permute.xlu0 %3818
      %3820 = vrot.lane.b32.xlu0 %v3795, 125
      %v3821 = vpop.permute.xlu0 %3820
      %3822 = vrot.lane.b32.xlu0 %v3796, 125
      %v3823 = vpop.permute.xlu0 %3822
      %3824 = vrot.lane.b32.xlu0 %v3797, 125
      %v3825 = vpop.permute.xlu0 %3824
      %3826 = vrot.lane.b32.xlu0 %v3798, 125
      %v3827 = vpop.permute.xlu0 %3826
      %3828 = vrot.lane.b32.xlu0 %v3799, 125
      %v3829 = vpop.permute.xlu0 %3828
      %3830 = vrot.lane.b32.xlu0 %v3800, 125
      %v3831 = vpop.permute.xlu0 %3830
      %3832 = vrot.lane.b32.xlu0 %v3801, 125
      %v3833 = vpop.permute.xlu0 %3832
      %3834 = vrot.lane.b32.xlu0 %v3802, 125
      %v3835 = vpop.permute.xlu0 %3834
      %3836 = vrot.lane.b32.xlu0 %v3803, 125
      %v3837 = vpop.permute.xlu0 %3836
      %3838 = vrot.lane.b32.xlu0 %v3804, 125
      %v3839 = vpop.permute.xlu0 %3838
      %3840 = vrot.lane.b32.xlu0 %v3805, 125
      %v3841 = vpop.permute.xlu0 %3840
      %v3842 = vsel %vm1536, %v3819, %v3821
      %v3843 = vsel %vm1536, %v3821, %v3823
      %v3844 = vsel %vm1536, %v3825, %v3827
      %v3845 = vsel %vm1536, %v3827, %v3829
      %v3846 = vsel %vm1536, %v3831, %v3833
      %v3847 = vsel %vm1536, %v3833, %v3835
      %v3848 = vsel %vm1536, %v3837, %v3839
      %v3849 = vsel %vm1536, %v3839, %v3841
      %v3862 = vadd.f32 %v3750, %v3842
      %v3863 = vadd.f32 %v3751, %v3843
      %v3864 = vadd.f32 %v3752, %v3823
      %v3865 = vadd.f32 %v3753, %v3844
      %v3866 = vadd.f32 %v3754, %v3845
      %v3867 = vadd.f32 %v3755, %v3829
      %v3868 = vadd.f32 %v3756, %v3846
      %v3869 = vadd.f32 %v3757, %v3847
      %v3870 = vadd.f32 %v3758, %v3835
      %v3871 = vadd.f32 %v3759, %v3848
      %v3872 = vadd.f32 %v3760, %v3849
      %v3873 = vadd.f32 %v3761, %v3841
      %3874 = vset.pattern.permute.xlu0 8
      %3875 = vperm.xlu0 %3874, %v2374
      %v3876 = vpop.permute.xlu0 %3875
      %3878 = vset.pattern.permute.xlu0 8
      %3879 = vperm.xlu0 %3878, %v2375
      %v3880 = vpop.permute.xlu0 %3879
      %3882 = vset.pattern.permute.xlu0 8
      %3883 = vperm.xlu0 %3882, %v2376
      %v3884 = vpop.permute.xlu0 %3883
      %3886 = vset.pattern.permute.xlu0 8
      %3887 = vperm.xlu0 %3886, %v2377
      %v3888 = vpop.permute.xlu0 %3887
      %v3890 = vmul.f32 %v3762, %v3876
      %v3891 = vmul.f32 %v3763, %v3876
      %v3892 = vmul.f32 %v3764, %v3876
      %v3893 = vmul.f32 %v3766, %v3880
      %v3894 = vmul.f32 %v3767, %v3880
      %v3895 = vmul.f32 %v3768, %v3880
      %v3896 = vmul.f32 %v3770, %v3884
      %v3897 = vmul.f32 %v3771, %v3884
      %v3898 = vmul.f32 %v3772, %v3884
      %v3899 = vmul.f32 %v3774, %v3888
      %v3900 = vmul.f32 %v3775, %v3888
      %v3901 = vmul.f32 %v3776, %v3888
      %3914 = vrot.lane.b32.xlu0 %v3890, 109
      %v3915 = vpop.permute.xlu0 %3914
      %3916 = vrot.lane.b32.xlu0 %v3891, 109
      %v3917 = vpop.permute.xlu0 %3916
      %3918 = vrot.lane.b32.xlu0 %v3892, 109
      %v3919 = vpop.permute.xlu0 %3918
      %3920 = vrot.lane.b32.xlu0 %v3893, 109
      %v3921 = vpop.permute.xlu0 %3920
      %3922 = vrot.lane.b32.xlu0 %v3894, 109
      %v3923 = vpop.permute.xlu0 %3922
      %3924 = vrot.lane.b32.xlu0 %v3895, 109
      %v3925 = vpop.permute.xlu0 %3924
      %3926 = vrot.lane.b32.xlu0 %v3896, 109
      %v3927 = vpop.permute.xlu0 %3926
      %3928 = vrot.lane.b32.xlu0 %v3897, 109
      %v3929 = vpop.permute.xlu0 %3928
      %3930 = vrot.lane.b32.xlu0 %v3898, 109
      %v3931 = vpop.permute.xlu0 %3930
      %3932 = vrot.lane.b32.xlu0 %v3899, 109
      %v3933 = vpop.permute.xlu0 %3932
      %3934 = vrot.lane.b32.xlu0 %v3900, 109
      %v3935 = vpop.permute.xlu0 %3934
      %3936 = vrot.lane.b32.xlu0 %v3901, 109
      %v3937 = vpop.permute.xlu0 %3936
      %v3938 = vsel %vm1585, %v3915, %v3917
      %v3939 = vsel %vm1585, %v3917, %v3919
      %v3940 = vsel %vm1585, %v3921, %v3923
      %v3941 = vsel %vm1585, %v3923, %v3925
      %v3942 = vsel %vm1585, %v3927, %v3929
      %v3943 = vsel %vm1585, %v3929, %v3931
      %v3944 = vsel %vm1585, %v3933, %v3935
      %v3945 = vsel %vm1585, %v3935, %v3937
      %v3958 = vadd.f32 %v3862, %v3938
      %v3959 = vadd.f32 %v3863, %v3939
      %v3960 = vadd.f32 %v3864, %v3919
      %v3961 = vadd.f32 %v3865, %v3940
      %v3962 = vadd.f32 %v3866, %v3941
      %v3963 = vadd.f32 %v3867, %v3925
      %v3964 = vadd.f32 %v3868, %v3942
      %v3965 = vadd.f32 %v3869, %v3943
      %v3966 = vadd.f32 %v3870, %v3931
      %v3967 = vadd.f32 %v3871, %v3944
      %v3968 = vadd.f32 %v3872, %v3945
      %v3969 = vadd.f32 %v3873, %v3937
      %3970 = vset.pattern.permute.xlu0 13
      %3971 = vperm.xlu0 %3970, %v2374
      %v3972 = vpop.permute.xlu0 %3971
      %3974 = vset.pattern.permute.xlu0 13
      %3975 = vperm.xlu0 %3974, %v2375
      %v3976 = vpop.permute.xlu0 %3975
      %3978 = vset.pattern.permute.xlu0 13
      %3979 = vperm.xlu0 %3978, %v2376
      %v3980 = vpop.permute.xlu0 %3979
      %3982 = vset.pattern.permute.xlu0 13
      %3983 = vperm.xlu0 %3982, %v2377
      %v3984 = vpop.permute.xlu0 %3983
      %v3986 = vmul.f32 %v3763, %v3972
      %v3987 = vmul.f32 %v3764, %v3972
      %v3988 = vmul.f32 %v3765, %v3972
      %v3989 = vmul.f32 %v3767, %v3976
      %v3990 = vmul.f32 %v3768, %v3976
      %v3991 = vmul.f32 %v3769, %v3976
      %v3992 = vmul.f32 %v3771, %v3980
      %v3993 = vmul.f32 %v3772, %v3980
      %v3994 = vmul.f32 %v3773, %v3980
      %v3995 = vmul.f32 %v3775, %v3984
      %v3996 = vmul.f32 %v3776, %v3984
      %v3997 = vmul.f32 %v3777, %v3984
      %4010 = vrot.lane.b32.xlu0 %v3986, 93
      %v4011 = vpop.permute.xlu0 %4010
      %4012 = vrot.lane.b32.xlu0 %v3987, 93
      %v4013 = vpop.permute.xlu0 %4012
      %4014 = vrot.lane.b32.xlu0 %v3988, 93
      %v4015 = vpop.permute.xlu0 %4014
      %4016 = vrot.lane.b32.xlu0 %v3989, 93
      %v4017 = vpop.permute.xlu0 %4016
      %4018 = vrot.lane.b32.xlu0 %v3990, 93
      %v4019 = vpop.permute.xlu0 %4018
      %4020 = vrot.lane.b32.xlu0 %v3991, 93
      %v4021 = vpop.permute.xlu0 %4020
      %4022 = vrot.lane.b32.xlu0 %v3992, 93
      %v4023 = vpop.permute.xlu0 %4022
      %4024 = vrot.lane.b32.xlu0 %v3993, 93
      %v4025 = vpop.permute.xlu0 %4024
      %4026 = vrot.lane.b32.xlu0 %v3994, 93
      %v4027 = vpop.permute.xlu0 %4026
      %4028 = vrot.lane.b32.xlu0 %v3995, 93
      %v4029 = vpop.permute.xlu0 %4028
      %4030 = vrot.lane.b32.xlu0 %v3996, 93
      %v4031 = vpop.permute.xlu0 %4030
      %4032 = vrot.lane.b32.xlu0 %v3997, 93
      %v4033 = vpop.permute.xlu0 %4032
      %v4034 = vsel %vm1634, %v4011, %v4013
      %v4035 = vsel %vm1634, %v4013, %v4015
      %v4036 = vsel %vm1634, %v4017, %v4019
      %v4037 = vsel %vm1634, %v4019, %v4021
      %v4038 = vsel %vm1634, %v4023, %v4025
      %v4039 = vsel %vm1634, %v4025, %v4027
      %v4040 = vsel %vm1634, %v4029, %v4031
      %v4041 = vsel %vm1634, %v4031, %v4033
      %v4054 = vadd.f32 %v3958, %v4011
      %v4055 = vadd.f32 %v3959, %v4034
      %v4056 = vadd.f32 %v3960, %v4035
      %v4057 = vadd.f32 %v3961, %v4017
      %v4058 = vadd.f32 %v3962, %v4036
      %v4059 = vadd.f32 %v3963, %v4037
      %v4060 = vadd.f32 %v3964, %v4023
      %v4061 = vadd.f32 %v3965, %v4038
      %v4062 = vadd.f32 %v3966, %v4039
      %v4063 = vadd.f32 %v3967, %v4029
      %v4064 = vadd.f32 %v3968, %v4040
      %v4065 = vadd.f32 %v3969, %v4041
      %4066 = vset.pattern.permute.xlu0 18
      %4067 = vperm.xlu0 %4066, %v2374
      %v4068 = vpop.permute.xlu0 %4067
      %4070 = vset.pattern.permute.xlu0 18
      %4071 = vperm.xlu0 %4070, %v2375
      %v4072 = vpop.permute.xlu0 %4071
      %4074 = vset.pattern.permute.xlu0 18
      %4075 = vperm.xlu0 %4074, %v2376
      %v4076 = vpop.permute.xlu0 %4075
      %4078 = vset.pattern.permute.xlu0 18
      %4079 = vperm.xlu0 %4078, %v2377
      %v4080 = vpop.permute.xlu0 %4079
      %v4082 = vmul.f32 %v3763, %v4068
      %v4083 = vmul.f32 %v3764, %v4068
      %v4084 = vmul.f32 %v3765, %v4068
      %v4085 = vmul.f32 %v3767, %v4072
      %v4086 = vmul.f32 %v3768, %v4072
      %v4087 = vmul.f32 %v3769, %v4072
      %v4088 = vmul.f32 %v3771, %v4076
      %v4089 = vmul.f32 %v3772, %v4076
      %v4090 = vmul.f32 %v3773, %v4076
      %v4091 = vmul.f32 %v3775, %v4080
      %v4092 = vmul.f32 %v3776, %v4080
      %v4093 = vmul.f32 %v3777, %v4080
      %4106 = vrot.lane.b32.xlu0 %v4082, 77
      %v4107 = vpop.permute.xlu0 %4106
      %4108 = vrot.lane.b32.xlu0 %v4083, 77
      %v4109 = vpop.permute.xlu0 %4108
      %4110 = vrot.lane.b32.xlu0 %v4084, 77
      %v4111 = vpop.permute.xlu0 %4110
      %4112 = vrot.lane.b32.xlu0 %v4085, 77
      %v4113 = vpop.permute.xlu0 %4112
      %4114 = vrot.lane.b32.xlu0 %v4086, 77
      %v4115 = vpop.permute.xlu0 %4114
      %4116 = vrot.lane.b32.xlu0 %v4087, 77
      %v4117 = vpop.permute.xlu0 %4116
      %4118 = vrot.lane.b32.xlu0 %v4088, 77
      %v4119 = vpop.permute.xlu0 %4118
      %4120 = vrot.lane.b32.xlu0 %v4089, 77
      %v4121 = vpop.permute.xlu0 %4120
      %4122 = vrot.lane.b32.xlu0 %v4090, 77
      %v4123 = vpop.permute.xlu0 %4122
      %4124 = vrot.lane.b32.xlu0 %v4091, 77
      %v4125 = vpop.permute.xlu0 %4124
      %4126 = vrot.lane.b32.xlu0 %v4092, 77
      %v4127 = vpop.permute.xlu0 %4126
      %4128 = vrot.lane.b32.xlu0 %v4093, 77
      %v4129 = vpop.permute.xlu0 %4128
      %v4130 = vsel %vm1683, %v4107, %v4109
      %v4131 = vsel %vm1683, %v4109, %v4111
      %v4132 = vsel %vm1683, %v4113, %v4115
      %v4133 = vsel %vm1683, %v4115, %v4117
      %v4134 = vsel %vm1683, %v4119, %v4121
      %v4135 = vsel %vm1683, %v4121, %v4123
      %v4136 = vsel %vm1683, %v4125, %v4127
      %v4137 = vsel %vm1683, %v4127, %v4129
      %v4150 = vadd.f32 %v4054, %v4107
      %v4151 = vadd.f32 %v4055, %v4130
      %v4152 = vadd.f32 %v4056, %v4131
      %v4153 = vadd.f32 %v4057, %v4113
      %v4154 = vadd.f32 %v4058, %v4132
      %v4155 = vadd.f32 %v4059, %v4133
      %v4156 = vadd.f32 %v4060, %v4119
      %v4157 = vadd.f32 %v4061, %v4134
      %v4158 = vadd.f32 %v4062, %v4135
      %v4159 = vadd.f32 %v4063, %v4125
      %v4160 = vadd.f32 %v4064, %v4136
      %v4161 = vadd.f32 %v4065, %v4137
      %4162 = vset.pattern.permute.xlu0 23
      %4163 = vperm.xlu0 %4162, %v2374
      %v4164 = vpop.permute.xlu0 %4163
      %4166 = vset.pattern.permute.xlu0 23
      %4167 = vperm.xlu0 %4166, %v2375
      %v4168 = vpop.permute.xlu0 %4167
      %4170 = vset.pattern.permute.xlu0 23
      %4171 = vperm.xlu0 %4170, %v2376
      %v4172 = vpop.permute.xlu0 %4171
      %4174 = vset.pattern.permute.xlu0 23
      %4175 = vperm.xlu0 %4174, %v2377
      %v4176 = vpop.permute.xlu0 %4175
      %v4178 = vmul.f32 %v3763, %v4164
      %v4179 = vmul.f32 %v3764, %v4164
      %v4180 = vmul.f32 %v3765, %v4164
      %v4181 = vmul.f32 %v3767, %v4168
      %v4182 = vmul.f32 %v3768, %v4168
      %v4183 = vmul.f32 %v3769, %v4168
      %v4184 = vmul.f32 %v3771, %v4172
      %v4185 = vmul.f32 %v3772, %v4172
      %v4186 = vmul.f32 %v3773, %v4172
      %v4187 = vmul.f32 %v3775, %v4176
      %v4188 = vmul.f32 %v3776, %v4176
      %v4189 = vmul.f32 %v3777, %v4176
      %4202 = vrot.lane.b32.xlu0 %v4178, 61
      %v4203 = vpop.permute.xlu0 %4202
      %4204 = vrot.lane.b32.xlu0 %v4179, 61
      %v4205 = vpop.permute.xlu0 %4204
      %4206 = vrot.lane.b32.xlu0 %v4180, 61
      %v4207 = vpop.permute.xlu0 %4206
      %4208 = vrot.lane.b32.xlu0 %v4181, 61
      %v4209 = vpop.permute.xlu0 %4208
      %4210 = vrot.lane.b32.xlu0 %v4182, 61
      %v4211 = vpop.permute.xlu0 %4210
      %4212 = vrot.lane.b32.xlu0 %v4183, 61
      %v4213 = vpop.permute.xlu0 %4212
      %4214 = vrot.lane.b32.xlu0 %v4184, 61
      %v4215 = vpop.permute.xlu0 %4214
      %4216 = vrot.lane.b32.xlu0 %v4185, 61
      %v4217 = vpop.permute.xlu0 %4216
      %4218 = vrot.lane.b32.xlu0 %v4186, 61
      %v4219 = vpop.permute.xlu0 %4218
      %4220 = vrot.lane.b32.xlu0 %v4187, 61
      %v4221 = vpop.permute.xlu0 %4220
      %4222 = vrot.lane.b32.xlu0 %v4188, 61
      %v4223 = vpop.permute.xlu0 %4222
      %4224 = vrot.lane.b32.xlu0 %v4189, 61
      %v4225 = vpop.permute.xlu0 %4224
      %v4226 = vsel %vm1732, %v4203, %v4205
      %v4227 = vsel %vm1732, %v4205, %v4207
      %v4228 = vsel %vm1732, %v4209, %v4211
      %v4229 = vsel %vm1732, %v4211, %v4213
      %v4230 = vsel %vm1732, %v4215, %v4217
      %v4231 = vsel %vm1732, %v4217, %v4219
      %v4232 = vsel %vm1732, %v4221, %v4223
      %v4233 = vsel %vm1732, %v4223, %v4225
      %v4246 = vadd.f32 %v4150, %v4203
      %v4247 = vadd.f32 %v4151, %v4226
      %v4248 = vadd.f32 %v4152, %v4227
      %v4249 = vadd.f32 %v4153, %v4209
      %v4250 = vadd.f32 %v4154, %v4228
      %v4251 = vadd.f32 %v4155, %v4229
      %v4252 = vadd.f32 %v4156, %v4215
      %v4253 = vadd.f32 %v4157, %v4230
      %v4254 = vadd.f32 %v4158, %v4231
      %v4255 = vadd.f32 %v4159, %v4221
      %v4256 = vadd.f32 %v4160, %v4232
      %v4257 = vadd.f32 %v4161, %v4233
      %v4258 = vmul.f32 %v2342, %v1753
      %v4259 = vmul.f32 %v2343, %v1759
      %v4260 = vmul.f32 %v2344, %v1760
      %v4261 = vmul.f32 %v2345, %v1757
      %v4262 = vmul.f32 %v2346, %v1753
      %v4263 = vmul.f32 %v2347, %v1759
      %v4264 = vmul.f32 %v2348, %v1760
      %v4265 = vmul.f32 %v2349, %v1757
      %v4266 = vmul.f32 %v2350, %v1753
      %v4267 = vmul.f32 %v2351, %v1759
      %v4268 = vmul.f32 %v2352, %v1760
      %v4269 = vmul.f32 %v2353, %v1757
      %v4270 = vmul.f32 %v2354, %v1753
      %v4271 = vmul.f32 %v2355, %v1759
      %v4272 = vmul.f32 %v2356, %v1760
      %v4273 = vmul.f32 %v2357, %v1757
      %4274 = vset.pattern.permute.xlu0 4
      %4275 = vperm.xlu0 %4274, %v2374
      %v4276 = vpop.permute.xlu0 %4275
      %4278 = vset.pattern.permute.xlu0 4
      %4279 = vperm.xlu0 %4278, %v2375
      %v4280 = vpop.permute.xlu0 %4279
      %4282 = vset.pattern.permute.xlu0 4
      %4283 = vperm.xlu0 %4282, %v2376
      %v4284 = vpop.permute.xlu0 %4283
      %4286 = vset.pattern.permute.xlu0 4
      %4287 = vperm.xlu0 %4286, %v2377
      %v4288 = vpop.permute.xlu0 %4287
      %v4290 = vmul.f32 %v4258, %v4276
      %v4291 = vmul.f32 %v4259, %v4276
      %v4292 = vmul.f32 %v4260, %v4276
      %v4293 = vmul.f32 %v4262, %v4280
      %v4294 = vmul.f32 %v4263, %v4280
      %v4295 = vmul.f32 %v4264, %v4280
      %v4296 = vmul.f32 %v4266, %v4284
      %v4297 = vmul.f32 %v4267, %v4284
      %v4298 = vmul.f32 %v4268, %v4284
      %v4299 = vmul.f32 %v4270, %v4288
      %v4300 = vmul.f32 %v4271, %v4288
      %v4301 = vmul.f32 %v4272, %v4288
      %4314 = vrot.lane.b32.xlu0 %v4290, 124
      %v4315 = vpop.permute.xlu0 %4314
      %4316 = vrot.lane.b32.xlu0 %v4291, 124
      %v4317 = vpop.permute.xlu0 %4316
      %4318 = vrot.lane.b32.xlu0 %v4292, 124
      %v4319 = vpop.permute.xlu0 %4318
      %4320 = vrot.lane.b32.xlu0 %v4293, 124
      %v4321 = vpop.permute.xlu0 %4320
      %4322 = vrot.lane.b32.xlu0 %v4294, 124
      %v4323 = vpop.permute.xlu0 %4322
      %4324 = vrot.lane.b32.xlu0 %v4295, 124
      %v4325 = vpop.permute.xlu0 %4324
      %4326 = vrot.lane.b32.xlu0 %v4296, 124
      %v4327 = vpop.permute.xlu0 %4326
      %4328 = vrot.lane.b32.xlu0 %v4297, 124
      %v4329 = vpop.permute.xlu0 %4328
      %4330 = vrot.lane.b32.xlu0 %v4298, 124
      %v4331 = vpop.permute.xlu0 %4330
      %4332 = vrot.lane.b32.xlu0 %v4299, 124
      %v4333 = vpop.permute.xlu0 %4332
      %4334 = vrot.lane.b32.xlu0 %v4300, 124
      %v4335 = vpop.permute.xlu0 %4334
      %4336 = vrot.lane.b32.xlu0 %v4301, 124
      %v4337 = vpop.permute.xlu0 %4336
      %v4338 = vsel %vm1805, %v4315, %v4317
      %v4339 = vsel %vm1805, %v4317, %v4319
      %v4340 = vsel %vm1805, %v4321, %v4323
      %v4341 = vsel %vm1805, %v4323, %v4325
      %v4342 = vsel %vm1805, %v4327, %v4329
      %v4343 = vsel %vm1805, %v4329, %v4331
      %v4344 = vsel %vm1805, %v4333, %v4335
      %v4345 = vsel %vm1805, %v4335, %v4337
      %v4358 = vadd.f32 %v4246, %v4338
      %v4359 = vadd.f32 %v4247, %v4339
      %v4360 = vadd.f32 %v4248, %v4319
      %v4361 = vadd.f32 %v4249, %v4340
      %v4362 = vadd.f32 %v4250, %v4341
      %v4363 = vadd.f32 %v4251, %v4325
      %v4364 = vadd.f32 %v4252, %v4342
      %v4365 = vadd.f32 %v4253, %v4343
      %v4366 = vadd.f32 %v4254, %v4331
      %v4367 = vadd.f32 %v4255, %v4344
      %v4368 = vadd.f32 %v4256, %v4345
      %v4369 = vadd.f32 %v4257, %v4337
      %4370 = vset.pattern.permute.xlu0 9
      %4371 = vperm.xlu0 %4370, %v2374
      %v4372 = vpop.permute.xlu0 %4371
      %4374 = vset.pattern.permute.xlu0 9
      %4375 = vperm.xlu0 %4374, %v2375
      %v4376 = vpop.permute.xlu0 %4375
      %4378 = vset.pattern.permute.xlu0 9
      %4379 = vperm.xlu0 %4378, %v2376
      %v4380 = vpop.permute.xlu0 %4379
      %4382 = vset.pattern.permute.xlu0 9
      %4383 = vperm.xlu0 %4382, %v2377
      %v4384 = vpop.permute.xlu0 %4383
      %v4386 = vmul.f32 %v4258, %v4372
      %v4387 = vmul.f32 %v4259, %v4372
      %v4388 = vmul.f32 %v4260, %v4372
      %v4389 = vmul.f32 %v4262, %v4376
      %v4390 = vmul.f32 %v4263, %v4376
      %v4391 = vmul.f32 %v4264, %v4376
      %v4392 = vmul.f32 %v4266, %v4380
      %v4393 = vmul.f32 %v4267, %v4380
      %v4394 = vmul.f32 %v4268, %v4380
      %v4395 = vmul.f32 %v4270, %v4384
      %v4396 = vmul.f32 %v4271, %v4384
      %v4397 = vmul.f32 %v4272, %v4384
      %4410 = vrot.lane.b32.xlu0 %v4386, 108
      %v4411 = vpop.permute.xlu0 %4410
      %4412 = vrot.lane.b32.xlu0 %v4387, 108
      %v4413 = vpop.permute.xlu0 %4412
      %4414 = vrot.lane.b32.xlu0 %v4388, 108
      %v4415 = vpop.permute.xlu0 %4414
      %4416 = vrot.lane.b32.xlu0 %v4389, 108
      %v4417 = vpop.permute.xlu0 %4416
      %4418 = vrot.lane.b32.xlu0 %v4390, 108
      %v4419 = vpop.permute.xlu0 %4418
      %4420 = vrot.lane.b32.xlu0 %v4391, 108
      %v4421 = vpop.permute.xlu0 %4420
      %4422 = vrot.lane.b32.xlu0 %v4392, 108
      %v4423 = vpop.permute.xlu0 %4422
      %4424 = vrot.lane.b32.xlu0 %v4393, 108
      %v4425 = vpop.permute.xlu0 %4424
      %4426 = vrot.lane.b32.xlu0 %v4394, 108
      %v4427 = vpop.permute.xlu0 %4426
      %4428 = vrot.lane.b32.xlu0 %v4395, 108
      %v4429 = vpop.permute.xlu0 %4428
      %4430 = vrot.lane.b32.xlu0 %v4396, 108
      %v4431 = vpop.permute.xlu0 %4430
      %4432 = vrot.lane.b32.xlu0 %v4397, 108
      %v4433 = vpop.permute.xlu0 %4432
      %v4434 = vsel %vm1854, %v4411, %v4413
      %v4435 = vsel %vm1854, %v4413, %v4415
      %v4436 = vsel %vm1854, %v4417, %v4419
      %v4437 = vsel %vm1854, %v4419, %v4421
      %v4438 = vsel %vm1854, %v4423, %v4425
      %v4439 = vsel %vm1854, %v4425, %v4427
      %v4440 = vsel %vm1854, %v4429, %v4431
      %v4441 = vsel %vm1854, %v4431, %v4433
      %v4454 = vadd.f32 %v4358, %v4434
      %v4455 = vadd.f32 %v4359, %v4435
      %v4456 = vadd.f32 %v4360, %v4415
      %v4457 = vadd.f32 %v4361, %v4436
      %v4458 = vadd.f32 %v4362, %v4437
      %v4459 = vadd.f32 %v4363, %v4421
      %v4460 = vadd.f32 %v4364, %v4438
      %v4461 = vadd.f32 %v4365, %v4439
      %v4462 = vadd.f32 %v4366, %v4427
      %v4463 = vadd.f32 %v4367, %v4440
      %v4464 = vadd.f32 %v4368, %v4441
      %v4465 = vadd.f32 %v4369, %v4433
      %4466 = vset.pattern.permute.xlu0 14
      %4467 = vperm.xlu0 %4466, %v2374
      %v4468 = vpop.permute.xlu0 %4467
      %4470 = vset.pattern.permute.xlu0 14
      %4471 = vperm.xlu0 %4470, %v2375
      %v4472 = vpop.permute.xlu0 %4471
      %4474 = vset.pattern.permute.xlu0 14
      %4475 = vperm.xlu0 %4474, %v2376
      %v4476 = vpop.permute.xlu0 %4475
      %4478 = vset.pattern.permute.xlu0 14
      %4479 = vperm.xlu0 %4478, %v2377
      %v4480 = vpop.permute.xlu0 %4479
      %v4482 = vmul.f32 %v4259, %v4468
      %v4483 = vmul.f32 %v4260, %v4468
      %v4484 = vmul.f32 %v4261, %v4468
      %v4485 = vmul.f32 %v4263, %v4472
      %v4486 = vmul.f32 %v4264, %v4472
      %v4487 = vmul.f32 %v4265, %v4472
      %v4488 = vmul.f32 %v4267, %v4476
      %v4489 = vmul.f32 %v4268, %v4476
      %v4490 = vmul.f32 %v4269, %v4476
      %v4491 = vmul.f32 %v4271, %v4480
      %v4492 = vmul.f32 %v4272, %v4480
      %v4493 = vmul.f32 %v4273, %v4480
      %4506 = vrot.lane.b32.xlu0 %v4482, 92
      %v4507 = vpop.permute.xlu0 %4506
      %4508 = vrot.lane.b32.xlu0 %v4483, 92
      %v4509 = vpop.permute.xlu0 %4508
      %4510 = vrot.lane.b32.xlu0 %v4484, 92
      %v4511 = vpop.permute.xlu0 %4510
      %4512 = vrot.lane.b32.xlu0 %v4485, 92
      %v4513 = vpop.permute.xlu0 %4512
      %4514 = vrot.lane.b32.xlu0 %v4486, 92
      %v4515 = vpop.permute.xlu0 %4514
      %4516 = vrot.lane.b32.xlu0 %v4487, 92
      %v4517 = vpop.permute.xlu0 %4516
      %4518 = vrot.lane.b32.xlu0 %v4488, 92
      %v4519 = vpop.permute.xlu0 %4518
      %4520 = vrot.lane.b32.xlu0 %v4489, 92
      %v4521 = vpop.permute.xlu0 %4520
      %4522 = vrot.lane.b32.xlu0 %v4490, 92
      %v4523 = vpop.permute.xlu0 %4522
      %4524 = vrot.lane.b32.xlu0 %v4491, 92
      %v4525 = vpop.permute.xlu0 %4524
      %4526 = vrot.lane.b32.xlu0 %v4492, 92
      %v4527 = vpop.permute.xlu0 %4526
      %4528 = vrot.lane.b32.xlu0 %v4493, 92
      %v4529 = vpop.permute.xlu0 %4528
      %v4530 = vsel %vm1903, %v4507, %v4509
      %v4531 = vsel %vm1903, %v4509, %v4511
      %v4532 = vsel %vm1903, %v4513, %v4515
      %v4533 = vsel %vm1903, %v4515, %v4517
      %v4534 = vsel %vm1903, %v4519, %v4521
      %v4535 = vsel %vm1903, %v4521, %v4523
      %v4536 = vsel %vm1903, %v4525, %v4527
      %v4537 = vsel %vm1903, %v4527, %v4529
      %v4550 = vadd.f32 %v4454, %v4507
      %v4551 = vadd.f32 %v4455, %v4530
      %v4552 = vadd.f32 %v4456, %v4531
      %v4553 = vadd.f32 %v4457, %v4513
      %v4554 = vadd.f32 %v4458, %v4532
      %v4555 = vadd.f32 %v4459, %v4533
      %v4556 = vadd.f32 %v4460, %v4519
      %v4557 = vadd.f32 %v4461, %v4534
      %v4558 = vadd.f32 %v4462, %v4535
      %v4559 = vadd.f32 %v4463, %v4525
      %v4560 = vadd.f32 %v4464, %v4536
      %v4561 = vadd.f32 %v4465, %v4537
      %4562 = vset.pattern.permute.xlu0 19
      %4563 = vperm.xlu0 %4562, %v2374
      %v4564 = vpop.permute.xlu0 %4563
      %4566 = vset.pattern.permute.xlu0 19
      %4567 = vperm.xlu0 %4566, %v2375
      %v4568 = vpop.permute.xlu0 %4567
      %4570 = vset.pattern.permute.xlu0 19
      %4571 = vperm.xlu0 %4570, %v2376
      %v4572 = vpop.permute.xlu0 %4571
      %4574 = vset.pattern.permute.xlu0 19
      %4575 = vperm.xlu0 %4574, %v2377
      %v4576 = vpop.permute.xlu0 %4575
      %v4578 = vmul.f32 %v4259, %v4564
      %v4579 = vmul.f32 %v4260, %v4564
      %v4580 = vmul.f32 %v4261, %v4564
      %v4581 = vmul.f32 %v4263, %v4568
      %v4582 = vmul.f32 %v4264, %v4568
      %v4583 = vmul.f32 %v4265, %v4568
      %v4584 = vmul.f32 %v4267, %v4572
      %v4585 = vmul.f32 %v4268, %v4572
      %v4586 = vmul.f32 %v4269, %v4572
      %v4587 = vmul.f32 %v4271, %v4576
      %v4588 = vmul.f32 %v4272, %v4576
      %v4589 = vmul.f32 %v4273, %v4576
      %4602 = vrot.lane.b32.xlu0 %v4578, 76
      %v4603 = vpop.permute.xlu0 %4602
      %4604 = vrot.lane.b32.xlu0 %v4579, 76
      %v4605 = vpop.permute.xlu0 %4604
      %4606 = vrot.lane.b32.xlu0 %v4580, 76
      %v4607 = vpop.permute.xlu0 %4606
      %4608 = vrot.lane.b32.xlu0 %v4581, 76
      %v4609 = vpop.permute.xlu0 %4608
      %4610 = vrot.lane.b32.xlu0 %v4582, 76
      %v4611 = vpop.permute.xlu0 %4610
      %4612 = vrot.lane.b32.xlu0 %v4583, 76
      %v4613 = vpop.permute.xlu0 %4612
      %4614 = vrot.lane.b32.xlu0 %v4584, 76
      %v4615 = vpop.permute.xlu0 %4614
      %4616 = vrot.lane.b32.xlu0 %v4585, 76
      %v4617 = vpop.permute.xlu0 %4616
      %4618 = vrot.lane.b32.xlu0 %v4586, 76
      %v4619 = vpop.permute.xlu0 %4618
      %4620 = vrot.lane.b32.xlu0 %v4587, 76
      %v4621 = vpop.permute.xlu0 %4620
      %4622 = vrot.lane.b32.xlu0 %v4588, 76
      %v4623 = vpop.permute.xlu0 %4622
      %4624 = vrot.lane.b32.xlu0 %v4589, 76
      %v4625 = vpop.permute.xlu0 %4624
      %v4626 = vsel %vm1952, %v4603, %v4605
      %v4627 = vsel %vm1952, %v4605, %v4607
      %v4628 = vsel %vm1952, %v4609, %v4611
      %v4629 = vsel %vm1952, %v4611, %v4613
      %v4630 = vsel %vm1952, %v4615, %v4617
      %v4631 = vsel %vm1952, %v4617, %v4619
      %v4632 = vsel %vm1952, %v4621, %v4623
      %v4633 = vsel %vm1952, %v4623, %v4625
      %v4646 = vadd.f32 %v4550, %v4603
      %v4647 = vadd.f32 %v4551, %v4626
      %v4648 = vadd.f32 %v4552, %v4627
      %v4649 = vadd.f32 %v4553, %v4609
      %v4650 = vadd.f32 %v4554, %v4628
      %v4651 = vadd.f32 %v4555, %v4629
      %v4652 = vadd.f32 %v4556, %v4615
      %v4653 = vadd.f32 %v4557, %v4630
      %v4654 = vadd.f32 %v4558, %v4631
      %v4655 = vadd.f32 %v4559, %v4621
      %v4656 = vadd.f32 %v4560, %v4632
      %v4657 = vadd.f32 %v4561, %v4633
      %4658 = vset.pattern.permute.xlu0 24
      %4659 = vperm.xlu0 %4658, %v2374
      %v4660 = vpop.permute.xlu0 %4659
      %4662 = vset.pattern.permute.xlu0 24
      %4663 = vperm.xlu0 %4662, %v2375
      %v4664 = vpop.permute.xlu0 %4663
      %4666 = vset.pattern.permute.xlu0 24
      %4667 = vperm.xlu0 %4666, %v2376
      %v4668 = vpop.permute.xlu0 %4667
      %4670 = vset.pattern.permute.xlu0 24
      %4671 = vperm.xlu0 %4670, %v2377
      %v4672 = vpop.permute.xlu0 %4671
      %v4674 = vmul.f32 %v4259, %v4660
      %v4675 = vmul.f32 %v4260, %v4660
      %v4676 = vmul.f32 %v4261, %v4660
      %v4677 = vmul.f32 %v4263, %v4664
      %v4678 = vmul.f32 %v4264, %v4664
      %v4679 = vmul.f32 %v4265, %v4664
      %v4680 = vmul.f32 %v4267, %v4668
      %v4681 = vmul.f32 %v4268, %v4668
      %v4682 = vmul.f32 %v4269, %v4668
      %v4683 = vmul.f32 %v4271, %v4672
      %v4684 = vmul.f32 %v4272, %v4672
      %v4685 = vmul.f32 %v4273, %v4672
      %4698 = vrot.lane.b32.xlu0 %v4674, 60
      %v4699 = vpop.permute.xlu0 %4698
      %4700 = vrot.lane.b32.xlu0 %v4675, 60
      %v4701 = vpop.permute.xlu0 %4700
      %4702 = vrot.lane.b32.xlu0 %v4676, 60
      %v4703 = vpop.permute.xlu0 %4702
      %4704 = vrot.lane.b32.xlu0 %v4677, 60
      %v4705 = vpop.permute.xlu0 %4704
      %4706 = vrot.lane.b32.xlu0 %v4678, 60
      %v4707 = vpop.permute.xlu0 %4706
      %4708 = vrot.lane.b32.xlu0 %v4679, 60
      %v4709 = vpop.permute.xlu0 %4708
      %4710 = vrot.lane.b32.xlu0 %v4680, 60
      %v4711 = vpop.permute.xlu0 %4710
      %4712 = vrot.lane.b32.xlu0 %v4681, 60
      %v4713 = vpop.permute.xlu0 %4712
      %4714 = vrot.lane.b32.xlu0 %v4682, 60
      %v4715 = vpop.permute.xlu0 %4714
      %4716 = vrot.lane.b32.xlu0 %v4683, 60
      %v4717 = vpop.permute.xlu0 %4716
      %4718 = vrot.lane.b32.xlu0 %v4684, 60
      %v4719 = vpop.permute.xlu0 %4718
      %4720 = vrot.lane.b32.xlu0 %v4685, 60
      %v4721 = vpop.permute.xlu0 %4720
      %v4722 = vsel %vm2001, %v4699, %v4701
      %v4723 = vsel %vm2001, %v4701, %v4703
      %v4724 = vsel %vm2001, %v4705, %v4707
      %v4725 = vsel %vm2001, %v4707, %v4709
      %v4726 = vsel %vm2001, %v4711, %v4713
      %v4727 = vsel %vm2001, %v4713, %v4715
      %v4728 = vsel %vm2001, %v4717, %v4719
      %v4729 = vsel %vm2001, %v4719, %v4721
      %v4742 = vadd.f32 %v4646, %v4699
      %v4743 = vadd.f32 %v4647, %v4722
      %v4744 = vadd.f32 %v4648, %v4723
      %v4745 = vadd.f32 %v4649, %v4705
      %v4746 = vadd.f32 %v4650, %v4724
      %v4747 = vadd.f32 %v4651, %v4725
      %v4748 = vadd.f32 %v4652, %v4711
      %v4749 = vadd.f32 %v4653, %v4726
      %v4750 = vadd.f32 %v4654, %v4727
      %v4751 = vadd.f32 %v4655, %v4717
      %v4752 = vadd.f32 %v4656, %v4728
      %v4753 = vadd.f32 %v4657, %v4729
      %v4754 = vld [vmem:[%s12] sm:$0xff]
      %v4755 = vld [vmem:[%s12 + $0x8] sm:$0xff]
      %v4756 = vld [vmem:[%s12 + $0x10] sm:$0xff]
      %v4757 = vld [vmem:[%s12 + $0x18] sm:$0xff]
      %4759 = vset.pattern.permute.xlu0 0
      %4760 = vperm.xlu0 %4759, %v4754
      %v4761 = vpop.permute.xlu0 %4760
      %4764 = vset.pattern.permute.xlu0 0
      %4765 = vperm.xlu0 %4764, %v4755
      %v4766 = vpop.permute.xlu0 %4765
      %4769 = vset.pattern.permute.xlu0 0
      %4770 = vperm.xlu0 %4769, %v4756
      %v4771 = vpop.permute.xlu0 %4770
      %4774 = vset.pattern.permute.xlu0 0
      %4775 = vperm.xlu0 %4774, %v4757
      %v4776 = vpop.permute.xlu0 %4775
      %v4778 = vmul.f32 %v4742, %v4761
      %v4779 = vmul.f32 %v4743, %v4761
      %v4780 = vmul.f32 %v4744, %v4761
      %v4781 = vmul.f32 %v4745, %v4766
      %v4782 = vmul.f32 %v4746, %v4766
      %v4783 = vmul.f32 %v4747, %v4766
      %v4784 = vmul.f32 %v4748, %v4771
      %v4785 = vmul.f32 %v4749, %v4771
      %v4786 = vmul.f32 %v4750, %v4771
      %v4787 = vmul.f32 %v4751, %v4776
      %v4788 = vmul.f32 %v4752, %v4776
      %v4789 = vmul.f32 %v4753, %v4776
      %v4790 = vld [vmem:[%s13] sm:$0xff]
      %v4791 = vld [vmem:[%s13 + $0x8] sm:$0xff]
      %v4792 = vld [vmem:[%s13 + $0x10] sm:$0xff]
      %v4793 = vld [vmem:[%s13 + $0x18] sm:$0xff]
      %4795 = vset.pattern.permute.xlu0 0
      %4796 = vperm.xlu0 %4795, %v4790
      %v4797 = vpop.permute.xlu0 %4796
      %4800 = vset.pattern.permute.xlu0 0
      %4801 = vperm.xlu0 %4800, %v4791
      %v4802 = vpop.permute.xlu0 %4801
      %4805 = vset.pattern.permute.xlu0 0
      %4806 = vperm.xlu0 %4805, %v4792
      %v4807 = vpop.permute.xlu0 %4806
      %4810 = vset.pattern.permute.xlu0 0
      %4811 = vperm.xlu0 %4810, %v4793
      %v4812 = vpop.permute.xlu0 %4811
      %v4814 = vadd.f32 %v4778, %v4797
      %v4815 = vadd.f32 %v4779, %v4797
      %v4816 = vadd.f32 %v4780, %v4797
      %v4817 = vadd.f32 %v4781, %v4802
      %v4818 = vadd.f32 %v4782, %v4802
      %v4819 = vadd.f32 %v4783, %v4802
      %v4820 = vadd.f32 %v4784, %v4807
      %v4821 = vadd.f32 %v4785, %v4807
      %v4822 = vadd.f32 %v4786, %v4807
      %v4823 = vadd.f32 %v4787, %v4812
      %v4824 = vadd.f32 %v4788, %v4812
      %v4825 = vadd.f32 %v4789, %v4812
      %v4826 = vadd.f32 %v2318, %v469
      %v4827 = vadd.f32 %v2319, %v470
      %v4828 = vadd.f32 %v2320, %v471
      %v4829 = vadd.f32 %v2321, %v472
      %v4830 = vadd.f32 %v2322, %v473
      %v4831 = vadd.f32 %v2323, %v474
      %v4832 = vadd.f32 %v2324, %v475
      %v4833 = vadd.f32 %v2325, %v476
      %4834 = vst [vmem:[%s467] sm:$0xff] %v4826
      %4835 = vst [vmem:[%s467 + $0x8] sm:$0xff] %v4827
      %4836 = vst [vmem:[%s467 + $0x10] sm:$0xff] %v4828
      %4837 = vst [vmem:[%s467 + $0x18] sm:$0xff] %v4829
      %4838 = vst [vmem:[%s467 + $0x20] sm:$0xff] %v4830
      %4839 = vst [vmem:[%s467 + $0x28] sm:$0xff] %v4831
      %4840 = vst [vmem:[%s467 + $0x30] sm:$0xff] %v4832
      %4841 = vst [vmem:[%s467 + $0x38] sm:$0xff] %v4833
      %4850 = vrot.lane.b32.xlu0 %v477, 94
      %v4851 = vpop.permute.xlu0 %4850
      %4852 = vrot.lane.b32.xlu0 %v478, 94
      %v4853 = vpop.permute.xlu0 %4852
      %4854 = vrot.lane.b32.xlu0 %v479, 94
      %v4855 = vpop.permute.xlu0 %4854
      %4856 = vrot.lane.b32.xlu0 %v480, 94
      %v4857 = vpop.permute.xlu0 %4856
      %4858 = vrot.lane.b32.xlu0 %v481, 94
      %v4859 = vpop.permute.xlu0 %4858
      %4860 = vrot.lane.b32.xlu0 %v482, 94
      %v4861 = vpop.permute.xlu0 %4860
      %4862 = vrot.lane.b32.xlu0 %v483, 94
      %v4863 = vpop.permute.xlu0 %4862
      %4864 = vrot.lane.b32.xlu0 %v484, 94
      %v4865 = vpop.permute.xlu0 %4864
      %v4866 = vsel %vm744, %v4851, %v4853
      %v4867 = vsel %vm744, %v4855, %v4857
      %v4868 = vsel %vm744, %v4859, %v4861
      %v4869 = vsel %vm744, %v4863, %v4865
      %v4882 = vadd.f32 %v4814, %v4851
      %v4883 = vadd.f32 %v4815, %v4866
      %v4884 = vadd.f32 %v4816, %v4853
      %v4885 = vadd.f32 %v4817, %v4855
      %v4886 = vadd.f32 %v4818, %v4867
      %v4887 = vadd.f32 %v4819, %v4857
      %v4888 = vadd.f32 %v4820, %v4859
      %v4889 = vadd.f32 %v4821, %v4868
      %v4890 = vadd.f32 %v4822, %v4861
      %v4891 = vadd.f32 %v4823, %v4863
      %v4892 = vadd.f32 %v4824, %v4869
      %v4893 = vadd.f32 %v4825, %v4865
      %4906 = vrot.lane.b32.xlu0 %v4882, 34
      %v4907 = vpop.permute.xlu0 %4906
      %4908 = vrot.lane.b32.xlu0 %v4883, 34
      %v4909 = vpop.permute.xlu0 %4908
      %4910 = vrot.lane.b32.xlu0 %v4884, 34
      %v4911 = vpop.permute.xlu0 %4910
      %4912 = vrot.lane.b32.xlu0 %v4885, 34
      %v4913 = vpop.permute.xlu0 %4912
      %4914 = vrot.lane.b32.xlu0 %v4886, 34
      %v4915 = vpop.permute.xlu0 %4914
      %4916 = vrot.lane.b32.xlu0 %v4887, 34
      %v4917 = vpop.permute.xlu0 %4916
      %4918 = vrot.lane.b32.xlu0 %v4888, 34
      %v4919 = vpop.permute.xlu0 %4918
      %4920 = vrot.lane.b32.xlu0 %v4889, 34
      %v4921 = vpop.permute.xlu0 %4920
      %4922 = vrot.lane.b32.xlu0 %v4890, 34
      %v4923 = vpop.permute.xlu0 %4922
      %4924 = vrot.lane.b32.xlu0 %v4891, 34
      %v4925 = vpop.permute.xlu0 %4924
      %4926 = vrot.lane.b32.xlu0 %v4892, 34
      %v4927 = vpop.permute.xlu0 %4926
      %4928 = vrot.lane.b32.xlu0 %v4893, 34
      %v4929 = vpop.permute.xlu0 %4928
      %vm4930 = vcmask 277504
      %v4931 = vsel %vm4930, %v4907, %v4909
      %v4932 = vsel %vm4930, %v4909, %v4911
      %v4933 = vsel %vm4930, %v4913, %v4915
      %v4934 = vsel %vm4930, %v4915, %v4917
      %v4935 = vsel %vm4930, %v4919, %v4921
      %v4936 = vsel %vm4930, %v4921, %v4923
      %v4937 = vsel %vm4930, %v4925, %v4927
      %v4938 = vsel %vm4930, %v4927, %v4929
      %4947 = vst [vmem:[%s467 + $0x40] sm:$0xff] %v4931
      %4948 = vst [vmem:[%s467 + $0x48] sm:$0xff] %v4932
      %4949 = vst [vmem:[%s467 + $0x50] sm:$0xff] %v4933
      %4950 = vst [vmem:[%s467 + $0x58] sm:$0xff] %v4934
      %4951 = vst [vmem:[%s467 + $0x60] sm:$0xff] %v4935
      %4952 = vst [vmem:[%s467 + $0x68] sm:$0xff] %v4936
      %4953 = vst [vmem:[%s467 + $0x70] sm:$0xff] %v4937
      %4954 = vst [vmem:[%s467 + $0x78] sm:$0xff] %v4938
      %p4955 = scmp.lt.s32.totalorder %s25, 1
      %s4956 = scalar_select %p4955, %s25, 1
      %s4957 = smul.addr %s4956, 16
      %s4958 = smul.addr %s4957, 8
      %s4959 = scalar_lea.vmem %s14, %s4958
      // Predicated region
      $region77: #{ghost_bottleneck_forward.1} parent=75 // pred_check
        %p4960 = pneg %p342
      $region78: #{ghost_bottleneck_forward.1} parent=75 // pred_check_branch
        %4962 = sbr.rel (%p4960) target = $region80
      $region79: #{ghost_bottleneck_forward.1} parent=75 // pred_region
        _
      $region80: #{ghost_bottleneck_forward.1} parent=75 // pred_fallthru
        _
    $region76: #{ghost_bottleneck_forward.1} parent=5 // pred_fallthru
      _
    %p4963 = scmp.le.s32.totalorder 2, %s20
    // Predicated region
    $region81: #{ghost_bottleneck_forward.1} parent=5 // pred_check
      %p4964 = pneg %p4963
    $region82: #{ghost_bottleneck_forward.1} parent=5 // pred_check_branch
      %4966 = sbr.rel (%p4964) target = $region84
    $region83: #{ghost_bottleneck_forward.1} parent=5 // pred_region
      %s4967 = ssub.s32 %s20, 2
      // Predicated region
      $region85: #{ghost_bottleneck_forward.1} parent=83 // pred_check
        %p4968 = pneg %p348
      $region86: #{ghost_bottleneck_forward.1} parent=83 // pred_check_branch
        %4970 = sbr.rel (%p4968) target = $region88
      $region87: #{ghost_bottleneck_forward.1} parent=83 // pred_region
        %p4971 = scmp.lt.s32.totalorder %s26, 1
        %s4972 = scalar_select %p4971, %s26, 1
        %s4973 = smul.addr %s4972, 16
        %s4974 = smul.addr %s4973, 8
        %s4975 = scalar_lea.vmem %s14, %s4974
      $region88: #{ghost_bottleneck_forward.1} parent=83 // pred_fallthru
        _
    $region84: #{ghost_bottleneck_forward.1} parent=5 // pred_fallthru
      _
  $region6: #{ghost_bottleneck_forward.1} parent=0 // loop_footer
    %s24 = sadd.s32 1, %s20
  $region7: #{ghost_bottleneck_forward.1} parent=0 // loop_footer_branch
    %19 = sbr.rel target = $region3
  $region8: #{ghost_bottleneck_forward.1} parent=0 // loop_exit
    _

</llo_original>
